<compile_context>
chip_gen: v6e
topology: v6e:2x2x1
jax: 0.10.0
libtpu: 0.0.40
codegen_flags: <defaults>
</compile_context>

<pallas_src>
import functools

import jax
import jax.numpy as jnp
from jax import lax
from jax.experimental import pallas as pl
from jax.experimental.pallas import tpu as pltpu

EPS = 1e-5  # PyTorch LayerNorm default eps


def _cond_mixer_kernel(
    xs_ref,                                # (Bt, L*C + S): [x lane-flat | static]
    wkron_ref, taff_ref,                   # temporal: kron(Wt^T, I_C) (L*C,L*C), rows [bt|gamma|beta] (3, L*C)
    ws_ref, w2s_ref, svec_ref,             # static block: [wrs|w1s] (S,2H), w2s (H,H), rows [brs;b1s;b2s;gs;bls] (5,H)
    wxb_ref, whb_ref, bbig_ref, w2b_ref,   # main block: block-diag x-weights (L*C, L*(O+H)), lane-tiled stat weights
    mrows_ref,                             #   (H, L*(O+H)), bias row (1, L*(O+H)), block-diag w2 (L*H, L*O),
    o_ref,                                 #   rows [b2_tiled; gamma; beta] (3, L*O); output (Bt, L*O)
    *, L, C, H, O, S,
):
    f32 = jnp.float32
    xs = xs_ref[...].astype(f32)                        # (Bt, L*C + S)
    xf = xs[:, : L * C]                                 # (Bt, L*C)  lane-flat x
    s = xs[:, L * C:]                                   # (Bt, S)

    # ---------------- TemporalResBlock (lane-flat) ----------------
    ta = taff_ref[...]                                  # (3, L*C): [bt_flat; gamma; beta]
    t = jnp.dot(xf, wkron_ref[...], preferred_element_type=f32) + ta[0:1, :]
    t = jnp.maximum(t, 0.0)                             # relu; dropout = identity
    zt = xf + t                                         # (Bt, L*C)
    n1 = 1.0 / float(L * C)                             # LayerNorm over [L, C] == lane axis
    mu1 = jnp.sum(zt, axis=1, keepdims=True) * n1
    d1 = zt - mu1
    var1 = jnp.sum(d1 * d1, axis=1, keepdims=True) * n1
    xin = d1 * lax.rsqrt(var1 + EPS) * ta[1:2, :] + ta[2:3, :]   # (Bt, L*C)

    # ---------------- static FeaturalResBlock (input_len = 1) ----------------
    sv = svec_ref[...]                                  # (5, H): [brs; b1s; b2s; gamma_s; beta_s]
    sh = jnp.dot(s, ws_ref[...], preferred_element_type=f32)     # (Bt, 2H)
    res_s = sh[:, :H] + sv[0:1, :]
    h1 = jnp.maximum(sh[:, H:] + sv[1:2, :], 0.0)
    z = res_s + jnp.dot(h1, w2s_ref[...], preferred_element_type=f32) + sv[2:3, :]
    nh = 1.0 / float(H)
    mu_s = jnp.sum(z, axis=1, keepdims=True) * nh
    ds = z - mu_s
    var_s = jnp.sum(ds * ds, axis=1, keepdims=True) * nh
    stat = ds * lax.rsqrt(var_s + EPS) * sv[3:4, :] + sv[4:5, :]  # (Bt, H)

    # ---------------- main FeaturalResBlock (lane-dense, block-diag weights) --
    # rh lanes: [res(l=0..L-1, o)  (L*O lanes) | hidden(l=0..L-1, h) (L*H lanes)]
    rh = (jnp.dot(xin, wxb_ref[...], preferred_element_type=f32)
          + jnp.dot(stat, whb_ref[...], preferred_element_type=f32)
          + bbig_ref[...])                              # (Bt, L*(O+H))
    resf = rh[:, : L * O]                               # (Bt, L*O)
    hf = jnp.maximum(rh[:, L * O:], 0.0)                # (Bt, L*H)
    y2 = jnp.dot(hf, w2b_ref[...], preferred_element_type=f32)   # (Bt, L*O)
    mr = mrows_ref[...]                                 # (3, L*O): [b2_tiled; gamma; beta]
    z2 = resf + y2 + mr[0:1, :]                         # (Bt, L*O), l-major over (l, o)
    n2 = 1.0 / float(L * O)                             # LayerNorm over [L, O] == lane axis
    mu2 = jnp.sum(z2, axis=1, keepdims=True) * n2
    d2 = z2 - mu2
    var2 = jnp.sum(d2 * d2, axis=1, keepdims=True) * n2
    out = d2 * lax.rsqrt(var2 + EPS) * mr[1:2, :] + mr[2:3, :]
    o_ref[...] = out.astype(o_ref.dtype)


_PACKED_ORDER = ["wkron", "taff", "ws_cat", "w2s_t", "svec",
                 "wx_big", "wh_big", "bias_big", "w2_big", "mrows"]


def _pack_params(p):
    """Build lane-dense weight slabs wrapper-side (runs once, in XLA)."""
    L, C = p["gt"].shape
    H = p["w2s_t"].shape[0]
    O = p["w2_t"].shape[1]
    assert p["g"].shape == (L, O) and p["bl"].shape == (L, O)
    f32 = jnp.float32
    eyeL = jnp.eye(L, dtype=f32)
    eyeC = jnp.eye(C, dtype=f32)

    # temporal: t_flat = x_flat @ kron(Wt^T, I_C) + bt_flat  (row-major (l, c))
    bt_flat = jnp.broadcast_to(p["bt"][:, None], (L, C)).reshape(1, L * C)
    packed = {
        "wkron": jnp.kron(p["wt"].T, eyeC),                                   # (L*C, L*C)
        "taff": jnp.concatenate(
            [bt_flat, p["gt"].reshape(1, L * C), p["blt"].reshape(1, L * C)], 0),  # (3, L*C)
        "ws_cat": jnp.concatenate([p["wrs_t"], p["w1s_t"]], 1),               # (S, 2H)
        "w2s_t": p["w2s_t"],                                                  # (H, H)
        "svec": jnp.concatenate(
            [p["brs"], p["b1s"], p["b2s"], p["gs"], p["bls"]], 0),            # (5, H)
        # main block: res columns first (l-major (l,o)), then hidden columns (l-major (l,h))
        "wx_big": jnp.concatenate(
            [jnp.kron(eyeL, p["wrx_t"]), jnp.kron(eyeL, p["w1x_t"])], 1),     # (L*C, L*(O+H))
        "wh_big": jnp.concatenate(
            [jnp.tile(p["wrh_t"], (1, L)), jnp.tile(p["w1h_t"], (1, L))], 1), # (H, L*(O+H))
        "bias_big": jnp.concatenate(
            [jnp.tile(p["br"], (1, L)), jnp.tile(p["b1"], (1, L))], 1),       # (1, L*(O+H))
        "w2_big": jnp.kron(eyeL, p["w2_t"]),                                  # (L*H, L*O)
        # row-major (l, o) flatten of the LN affine matches the z2 lane layout
        "mrows": jnp.concatenate(
            [jnp.tile(p["b2"], (1, L)), p["g"].reshape(1, L * O),
             p["bl"].reshape(1, L * O)], 0),                                  # (3, L*O)
    }
    return packed, (L, C, H, O)


def _pick_batch_tile(B):
    """Largest multiple-of-8 divisor of B (<= 256) that yields >= 2 grid steps."""
    best = B
    for bt in range(8, min(B, 256) + 1, 8):
        if B % bt == 0 and B // bt >= 2:
            best = bt
    return best


def conditional_mixer_block(x, static, params, *, batch_tile=None):
    B, L, C = x.shape
    S = static.shape[1]
    packed, (Lp, Cp, H, O) = _pack_params(params)
    assert (Lp, Cp) == (L, C), "param shapes inconsistent with x"

    Bt = _pick_batch_tile(B) if batch_tile is None else batch_tile
    assert B % Bt == 0, "batch_tile must divide batch"

    # Lane-flatten x (row-major over (l, c)) and fuse `static` into the same
    # input slab so one DMA feeds the whole grid step.
    xs = jnp.concatenate([x.reshape(B, L * C), static], axis=1)   # (B, L*C + S)

    weights = [packed[k] for k in _PACKED_ORDER]

    def const_spec(a):                   # params: full block, resident across grid
        nd = a.ndim
        return pl.BlockSpec(a.shape, lambda i, nd=nd: (0,) * nd)

    in_specs = [pl.BlockSpec((Bt, L * C + S), lambda i: (i, 0))] + \
               [const_spec(w) for w in weights]

    kernel = functools.partial(_cond_mixer_kernel, L=L, C=C, H=H, O=O, S=S)
    out_flat = pl.pallas_call(
        kernel,
        out_shape=jax.ShapeDtypeStruct((B, L * O), x.dtype),   # lane-dense output
        grid_spec=pltpu.PrefetchScalarGridSpec(
            num_scalar_prefetch=0,
            grid=(B // Bt,),
            in_specs=in_specs,
            out_specs=pl.BlockSpec((Bt, L * O), lambda i: (i, 0)),
        ),
        compiler_params=pltpu.CompilerParams(
            dimension_semantics=("parallel",)),
    )(xs, *weights)
    return out_flat.reshape(B, L, O)


def _init_params(key, L, C, H, O, S):
    ks = jax.random.split(key, 22)
    f32 = jnp.float32

    def r(k, shape, s=0.1):
        return s * jax.random.normal(k, shape, f32)

    p = {}
    # TemporalResBlock: Linear(L, L), LayerNorm([L, C])
    p["wt"] = r(ks[0], (L, L))
    p["bt"] = r(ks[1], (L,))
    p["gt"] = jnp.ones((L, C), f32) + r(ks[2], (L, C), 0.05)
    p["blt"] = r(ks[3], (L, C))
    # static FeaturalResBlock(1, S, H, H): linear1 (H,S), linear2 (H,H), res (H,S), LN [1,H]
    p["w1s_t"] = r(ks[4], (S, H))
    p["b1s"] = r(ks[5], (1, H))
    p["w2s_t"] = r(ks[6], (H, H))
    p["b2s"] = r(ks[7], (1, H))
    p["wrs_t"] = r(ks[8], (S, H))
    p["brs"] = r(ks[9], (1, H))
    p["gs"] = jnp.ones((1, H), f32) + r(ks[10], (1, H), 0.05)
    p["bls"] = r(ks[11], (1, H))
    # main FeaturalResBlock(L, C+H, H, O): linear1 (H,C+H), linear2 (O,H), res (O,C+H), LN [L,O]
    p["w1x_t"] = r(ks[12], (C, H))
    p["w1h_t"] = r(ks[13], (H, H))
    p["b1"] = r(ks[14], (1, H))
    p["w2_t"] = r(ks[15], (H, O))
    p["b2"] = r(ks[16], (1, O))
    p["wrx_t"] = r(ks[17], (C, O))
    p["wrh_t"] = r(ks[18], (H, O))
    p["br"] = r(ks[19], (1, O))
    p["g"] = jnp.ones((L, O), f32) + r(ks[20], (L, O), 0.05)
    p["bl"] = r(ks[21], (L, O))
    return p


def _reference(x, static, p):
    # pure-JAX mirror of the PyTorch forward (eval mode, dropout = identity)
    # TemporalResBlock
    t = jnp.einsum("lm,bmc->blc", p["wt"], x) + p["bt"][None, :, None]
    t = jax.nn.relu(t)
    zt = x + t
    mu = zt.mean(axis=(1, 2), keepdims=True)
    var = ((zt - mu) ** 2).mean(axis=(1, 2), keepdims=True)
    xin = (zt - mu) / jnp.sqrt(var + EPS) * p["gt"] + p["blt"]
    # ConditionalFeaturalResBlock: static block
    s = static[:, None, :]
    res_s = s @ p["wrs_t"] + p["brs"]
    h = jax.nn.relu(s @ p["w1s_t"] + p["b1s"])
    y = h @ p["w2s_t"] + p["b2s"]
    z = res_s + y
    mu = z.mean(axis=(1, 2), keepdims=True)
    var = ((z - mu) ** 2).mean(axis=(1, 2), keepdims=True)
    stat = (z - mu) / jnp.sqrt(var + EPS) * p["gs"] + p["bls"]
    L = x.shape[1]
    stat = jnp.repeat(stat, L, axis=1)                       # repeat_interleave dim=1
    cat = jnp.concatenate([xin, stat], axis=2)
    # main block
    wr_t = jnp.concatenate([p["wrx_t"], p["wrh_t"]], axis=0)
    w1_t = jnp.concatenate([p["w1x_t"], p["w1h_t"]], axis=0)
    res = cat @ wr_t + p["br"]
    h2 = jax.nn.relu(cat @ w1_t + p["b1"])
    y2 = h2 @ p["w2_t"] + p["b2"]
    z2 = res + y2
    mu2 = z2.mean(axis=(1, 2), keepdims=True)
    var2 = ((z2 - mu2) ** 2).mean(axis=(1, 2), keepdims=True)
    return (z2 - mu2) / jnp.sqrt(var2 + EPS) * p["g"] + p["bl"]


if __name__ == "__main__":
    # batch, input_len, input_size, hidden, output, static
    # B chosen so the auto batch tile gives Bt=128 -> grid=(2,): DMA/compute
    # pipelining + both v7x TensorCores busy; matmul M = 128.
    B, L, C, H, O, S = 256, 8, 4, 32, 16, 6
    key = jax.random.PRNGKey(0)
    kx, ks, kp = jax.random.split(key, 3)
    x = jax.random.normal(kx, (B, L, C), jnp.float32)
    static = jax.random.normal(ks, (B, S), jnp.float32)
    params = _init_params(kp, L, C, H, O, S)

    out = conditional_mixer_block(x, static, params)
    out = jax.block_until_ready(out)

    ref = _reference(x, static, params)
    assert out.shape == (B, L, O)
    max_err = float(jnp.max(jnp.abs(out - ref)))
    assert jnp.allclose(out, ref, atol=1e-3, rtol=1e-3), (
        f"mismatch vs pure-JAX reference, max abs err = {max_err}")
    print("KERNEL_OK")
</pallas_src>

<mosaic_0001>
module attributes {stable_mosaic.version = 11 : i64} {
  func.func @_cond_mixer_kernel(%arg0: i32, %arg1: memref<128x38xf32, #tpu.memory_space<vmem>>, %arg2: memref<32x32xf32, #tpu.memory_space<vmem>>, %arg3: memref<3x32xf32, #tpu.memory_space<vmem>>, %arg4: memref<6x64xf32, #tpu.memory_space<vmem>>, %arg5: memref<32x32xf32, #tpu.memory_space<vmem>>, %arg6: memref<5x32xf32, #tpu.memory_space<vmem>>, %arg7: memref<32x384xf32, #tpu.memory_space<vmem>>, %arg8: memref<32x384xf32, #tpu.memory_space<vmem>>, %arg9: memref<1x384xf32, #tpu.memory_space<vmem>>, %arg10: memref<256x128xf32, #tpu.memory_space<vmem>>, %arg11: memref<3x128xf32, #tpu.memory_space<vmem>>, %arg12: memref<128x128xf32, #tpu.memory_space<vmem>>) attributes {dimension_semantics = [#tpu.dimension_semantics<parallel>], iteration_bounds = array<i64: 2>, scalar_prefetch = 0 : i64, scratch_operands = 0 : i64, tpu.core_type = #tpu.core_type<tc>, window_params = [{transform_indices = @transform_0, window_bounds = array<i64: 128, 38>}, {pipeline_mode = #tpu.pipeline_mode<synchronous>, transform_indices = @transform_1, window_bounds = array<i64: 32, 32>}, {pipeline_mode = #tpu.pipeline_mode<synchronous>, transform_indices = @transform_2, window_bounds = array<i64: 3, 32>}, {pipeline_mode = #tpu.pipeline_mode<synchronous>, transform_indices = @transform_3, window_bounds = array<i64: 6, 64>}, {pipeline_mode = #tpu.pipeline_mode<synchronous>, transform_indices = @transform_4, window_bounds = array<i64: 32, 32>}, {pipeline_mode = #tpu.pipeline_mode<synchronous>, transform_indices = @transform_5, window_bounds = array<i64: 5, 32>}, {pipeline_mode = #tpu.pipeline_mode<synchronous>, transform_indices = @transform_6, window_bounds = array<i64: 32, 384>}, {pipeline_mode = #tpu.pipeline_mode<synchronous>, transform_indices = @transform_7, window_bounds = array<i64: 32, 384>}, {pipeline_mode = #tpu.pipeline_mode<synchronous>, transform_indices = @transform_8, window_bounds = array<i64: 1, 384>}, {pipeline_mode = #tpu.pipeline_mode<synchronous>, transform_indices = @transform_9, window_bounds = array<i64: 256, 128>}, {pipeline_mode = #tpu.pipeline_mode<synchronous>, transform_indices = @transform_10, window_bounds = array<i64: 3, 128>}, {transform_indices = @transform_11, window_bounds = array<i64: 128, 128>}]} {
    %c0 = arith.constant 0 : index
    %c0_0 = arith.constant 0 : index
    %0 = vector.load %arg1[%c0, %c0_0] : memref<128x38xf32, #tpu.memory_space<vmem>>, vector<128x38xf32>
    %1 = vector.extract_strided_slice %0 {offsets = [0, 0], sizes = [128, 32], strides = [1, 1]} : vector<128x38xf32> to vector<128x32xf32>
    %2 = vector.extract_strided_slice %0 {offsets = [0, 32], sizes = [128, 6], strides = [1, 1]} : vector<128x38xf32> to vector<128x6xf32>
    %c0_1 = arith.constant 0 : index
    %c0_2 = arith.constant 0 : index
    %3 = vector.load %arg3[%c0_1, %c0_2] : memref<3x32xf32, #tpu.memory_space<vmem>>, vector<3x32xf32>
    %c0_3 = arith.constant 0 : index
    %c0_4 = arith.constant 0 : index
    %4 = vector.load %arg2[%c0_3, %c0_4] : memref<32x32xf32, #tpu.memory_space<vmem>>, vector<32x32xf32>
    %cst = arith.constant dense<0.000000e+00> : vector<128x32xf32>
    %5 = tpu.matmul %1, %4, %cst {dimension_numbers = #tpu.dot_dimension_numbers<[1], [0], [0], [1], [0, 0, 1, 1], [], []>} : vector<128x32xf32>, vector<32x32xf32>, vector<128x32xf32> -> vector<128x32xf32>
    %6 = vector.extract_strided_slice %3 {offsets = [0, 0], sizes = [1, 32], strides = [1, 1]} : vector<3x32xf32> to vector<1x32xf32>
    %7 = vector.broadcast %6 : vector<1x32xf32> to vector<128x32xf32>
    %8 = arith.addf %5, %7 : vector<128x32xf32>
    %cst_5 = arith.constant 0.000000e+00 : f32
    %9 = vector.broadcast %cst_5 : f32 to vector<128x32xf32>
    %10 = arith.maximumf %8, %9 : vector<128x32xf32>
    %11 = arith.addf %1, %10 : vector<128x32xf32>
    %cst_6 = arith.constant dense<0.000000e+00> : vector<128xf32>
    %12 = vector.multi_reduction <add>, %11, %cst_6 [1] : vector<128x32xf32> to vector<128xf32>
    %13 = vector.shape_cast %12 : vector<128xf32> to vector<128x1xf32>
    %cst_7 = arith.constant 3.125000e-02 : f32
    %14 = vector.broadcast %cst_7 : f32 to vector<128x1xf32>
    %15 = arith.mulf %13, %14 : vector<128x1xf32>
    %16 = vector.broadcast %15 : vector<128x1xf32> to vector<128x32xf32>
    %17 = arith.subf %11, %16 : vector<128x32xf32>
    %18 = arith.mulf %17, %17 : vector<128x32xf32>
    %cst_8 = arith.constant dense<0.000000e+00> : vector<128xf32>
    %19 = vector.multi_reduction <add>, %18, %cst_8 [1] : vector<128x32xf32> to vector<128xf32>
    %20 = vector.shape_cast %19 : vector<128xf32> to vector<128x1xf32>
    %cst_9 = arith.constant 3.125000e-02 : f32
    %21 = vector.broadcast %cst_9 : f32 to vector<128x1xf32>
    %22 = arith.mulf %20, %21 : vector<128x1xf32>
    %cst_10 = arith.constant 9.99999974E-6 : f32
    %23 = vector.broadcast %cst_10 : f32 to vector<128x1xf32>
    %24 = arith.addf %22, %23 : vector<128x1xf32>
    %25 = math.rsqrt %24 : vector<128x1xf32>
    %26 = vector.broadcast %25 : vector<128x1xf32> to vector<128x32xf32>
    %27 = arith.mulf %17, %26 : vector<128x32xf32>
    %28 = vector.extract_strided_slice %3 {offsets = [1, 0], sizes = [1, 32], strides = [1, 1]} : vector<3x32xf32> to vector<1x32xf32>
    %29 = vector.broadcast %28 : vector<1x32xf32> to vector<128x32xf32>
    %30 = arith.mulf %27, %29 : vector<128x32xf32>
    %31 = vector.extract_strided_slice %3 {offsets = [2, 0], sizes = [1, 32], strides = [1, 1]} : vector<3x32xf32> to vector<1x32xf32>
    %32 = vector.broadcast %31 : vector<1x32xf32> to vector<128x32xf32>
    %33 = arith.addf %30, %32 : vector<128x32xf32>
    %c0_11 = arith.constant 0 : index
    %c0_12 = arith.constant 0 : index
    %34 = vector.load %arg6[%c0_11, %c0_12] : memref<5x32xf32, #tpu.memory_space<vmem>>, vector<5x32xf32>
    %c0_13 = arith.constant 0 : index
    %c0_14 = arith.constant 0 : index
    %35 = vector.load %arg4[%c0_13, %c0_14] : memref<6x64xf32, #tpu.memory_space<vmem>>, vector<6x64xf32>
    %cst_15 = arith.constant dense<0.000000e+00> : vector<128x64xf32>
    %36 = tpu.matmul %2, %35, %cst_15 {dimension_numbers = #tpu.dot_dimension_numbers<[1], [0], [0], [1], [0, 0, 1, 1], [], []>} : vector<128x6xf32>, vector<6x64xf32>, vector<128x64xf32> -> vector<128x64xf32>
    %37 = vector.extract_strided_slice %36 {offsets = [0, 0], sizes = [128, 32], strides = [1, 1]} : vector<128x64xf32> to vector<128x32xf32>
    %38 = vector.extract_strided_slice %34 {offsets = [0, 0], sizes = [1, 32], strides = [1, 1]} : vector<5x32xf32> to vector<1x32xf32>
    %39 = vector.broadcast %38 : vector<1x32xf32> to vector<128x32xf32>
    %40 = arith.addf %37, %39 : vector<128x32xf32>
    %41 = vector.extract_strided_slice %36 {offsets = [0, 32], sizes = [128, 32], strides = [1, 1]} : vector<128x64xf32> to vector<128x32xf32>
    %42 = vector.extract_strided_slice %34 {offsets = [1, 0], sizes = [1, 32], strides = [1, 1]} : vector<5x32xf32> to vector<1x32xf32>
    %43 = vector.broadcast %42 : vector<1x32xf32> to vector<128x32xf32>
    %44 = arith.addf %41, %43 : vector<128x32xf32>
    %cst_16 = arith.constant 0.000000e+00 : f32
    %45 = vector.broadcast %cst_16 : f32 to vector<128x32xf32>
    %46 = arith.maximumf %44, %45 : vector<128x32xf32>
    %c0_17 = arith.constant 0 : index
    %c0_18 = arith.constant 0 : index
    %47 = vector.load %arg5[%c0_17, %c0_18] : memref<32x32xf32, #tpu.memory_space<vmem>>, vector<32x32xf32>
    %cst_19 = arith.constant dense<0.000000e+00> : vector<128x32xf32>
    %48 = tpu.matmul %46, %47, %cst_19 {dimension_numbers = #tpu.dot_dimension_numbers<[1], [0], [0], [1], [0, 0, 1, 1], [], []>} : vector<128x32xf32>, vector<32x32xf32>, vector<128x32xf32> -> vector<128x32xf32>
    %49 = arith.addf %40, %48 : vector<128x32xf32>
    %50 = vector.extract_strided_slice %34 {offsets = [2, 0], sizes = [1, 32], strides = [1, 1]} : vector<5x32xf32> to vector<1x32xf32>
    %51 = vector.broadcast %50 : vector<1x32xf32> to vector<128x32xf32>
    %52 = arith.addf %49, %51 : vector<128x32xf32>
    %cst_20 = arith.constant dense<0.000000e+00> : vector<128xf32>
    %53 = vector.multi_reduction <add>, %52, %cst_20 [1] : vector<128x32xf32> to vector<128xf32>
    %54 = vector.shape_cast %53 : vector<128xf32> to vector<128x1xf32>
    %cst_21 = arith.constant 3.125000e-02 : f32
    %55 = vector.broadcast %cst_21 : f32 to vector<128x1xf32>
    %56 = arith.mulf %54, %55 : vector<128x1xf32>
    %57 = vector.broadcast %56 : vector<128x1xf32> to vector<128x32xf32>
    %58 = arith.subf %52, %57 : vector<128x32xf32>
    %59 = arith.mulf %58, %58 : vector<128x32xf32>
    %cst_22 = arith.constant dense<0.000000e+00> : vector<128xf32>
    %60 = vector.multi_reduction <add>, %59, %cst_22 [1] : vector<128x32xf32> to vector<128xf32>
    %61 = vector.shape_cast %60 : vector<128xf32> to vector<128x1xf32>
    %cst_23 = arith.constant 3.125000e-02 : f32
    %62 = vector.broadcast %cst_23 : f32 to vector<128x1xf32>
    %63 = arith.mulf %61, %62 : vector<128x1xf32>
    %cst_24 = arith.constant 9.99999974E-6 : f32
    %64 = vector.broadcast %cst_24 : f32 to vector<128x1xf32>
    %65 = arith.addf %63, %64 : vector<128x1xf32>
    %66 = math.rsqrt %65 : vector<128x1xf32>
    %67 = vector.broadcast %66 : vector<128x1xf32> to vector<128x32xf32>
    %68 = arith.mulf %58, %67 : vector<128x32xf32>
    %69 = vector.extract_strided_slice %34 {offsets = [3, 0], sizes = [1, 32], strides = [1, 1]} : vector<5x32xf32> to vector<1x32xf32>
    %70 = vector.broadcast %69 : vector<1x32xf32> to vector<128x32xf32>
    %71 = arith.mulf %68, %70 : vector<128x32xf32>
    %72 = vector.extract_strided_slice %34 {offsets = [4, 0], sizes = [1, 32], strides = [1, 1]} : vector<5x32xf32> to vector<1x32xf32>
    %73 = vector.broadcast %72 : vector<1x32xf32> to vector<128x32xf32>
    %74 = arith.addf %71, %73 : vector<128x32xf32>
    %c0_25 = arith.constant 0 : index
    %c0_26 = arith.constant 0 : index
    %75 = vector.load %arg7[%c0_25, %c0_26] : memref<32x384xf32, #tpu.memory_space<vmem>>, vector<32x384xf32>
    %cst_27 = arith.constant dense<0.000000e+00> : vector<128x384xf32>
    %76 = tpu.matmul %33, %75, %cst_27 {dimension_numbers = #tpu.dot_dimension_numbers<[1], [0], [0], [1], [0, 0, 1, 1], [], []>} : vector<128x32xf32>, vector<32x384xf32>, vector<128x384xf32> -> vector<128x384xf32>
    %c0_28 = arith.constant 0 : index
    %c0_29 = arith.constant 0 : index
    %77 = vector.load %arg8[%c0_28, %c0_29] : memref<32x384xf32, #tpu.memory_space<vmem>>, vector<32x384xf32>
    %cst_30 = arith.constant dense<0.000000e+00> : vector<128x384xf32>
    %78 = tpu.matmul %74, %77, %cst_30 {dimension_numbers = #tpu.dot_dimension_numbers<[1], [0], [0], [1], [0, 0, 1, 1], [], []>} : vector<128x32xf32>, vector<32x384xf32>, vector<128x384xf32> -> vector<128x384xf32>
    %79 = arith.addf %76, %78 : vector<128x384xf32>
    %c0_31 = arith.constant 0 : index
    %c0_32 = arith.constant 0 : index
    %80 = vector.load %arg9[%c0_31, %c0_32] : memref<1x384xf32, #tpu.memory_space<vmem>>, vector<1x384xf32>
    %81 = vector.broadcast %80 : vector<1x384xf32> to vector<128x384xf32>
    %82 = arith.addf %79, %81 : vector<128x384xf32>
    %83 = vector.extract_strided_slice %82 {offsets = [0, 0], sizes = [128, 128], strides = [1, 1]} : vector<128x384xf32> to vector<128x128xf32>
    %84 = vector.extract_strided_slice %82 {offsets = [0, 128], sizes = [128, 256], strides = [1, 1]} : vector<128x384xf32> to vector<128x256xf32>
    %cst_33 = arith.constant 0.000000e+00 : f32
    %85 = vector.broadcast %cst_33 : f32 to vector<128x256xf32>
    %86 = arith.maximumf %84, %85 : vector<128x256xf32>
    %c0_34 = arith.constant 0 : index
    %c0_35 = arith.constant 0 : index
    %87 = vector.load %arg10[%c0_34, %c0_35] : memref<256x128xf32, #tpu.memory_space<vmem>>, vector<256x128xf32>
    %cst_36 = arith.constant dense<0.000000e+00> : vector<128x128xf32>
    %88 = tpu.matmul %86, %87, %cst_36 {dimension_numbers = #tpu.dot_dimension_numbers<[1], [0], [0], [1], [0, 0, 1, 1], [], []>} : vector<128x256xf32>, vector<256x128xf32>, vector<128x128xf32> -> vector<128x128xf32>
    %c0_37 = arith.constant 0 : index
    %c0_38 = arith.constant 0 : index
    %89 = vector.load %arg11[%c0_37, %c0_38] : memref<3x128xf32, #tpu.memory_space<vmem>>, vector<3x128xf32>
    %90 = arith.addf %83, %88 : vector<128x128xf32>
    %91 = vector.extract_strided_slice %89 {offsets = [0, 0], sizes = [1, 128], strides = [1, 1]} : vector<3x128xf32> to vector<1x128xf32>
    %92 = vector.broadcast %91 : vector<1x128xf32> to vector<128x128xf32>
    %93 = arith.addf %90, %92 : vector<128x128xf32>
    %cst_39 = arith.constant dense<0.000000e+00> : vector<128xf32>
    %94 = vector.multi_reduction <add>, %93, %cst_39 [1] : vector<128x128xf32> to vector<128xf32>
    %95 = vector.shape_cast %94 : vector<128xf32> to vector<128x1xf32>
    %cst_40 = arith.constant 7.812500e-03 : f32
    %96 = vector.broadcast %cst_40 : f32 to vector<128x1xf32>
    %97 = arith.mulf %95, %96 : vector<128x1xf32>
    %98 = vector.broadcast %97 : vector<128x1xf32> to vector<128x128xf32>
    %99 = arith.subf %93, %98 : vector<128x128xf32>
    %100 = arith.mulf %99, %99 : vector<128x128xf32>
    %cst_41 = arith.constant dense<0.000000e+00> : vector<128xf32>
    %101 = vector.multi_reduction <add>, %100, %cst_41 [1] : vector<128x128xf32> to vector<128xf32>
    %102 = vector.shape_cast %101 : vector<128xf32> to vector<128x1xf32>
    %cst_42 = arith.constant 7.812500e-03 : f32
    %103 = vector.broadcast %cst_42 : f32 to vector<128x1xf32>
    %104 = arith.mulf %102, %103 : vector<128x1xf32>
    %cst_43 = arith.constant 9.99999974E-6 : f32
    %105 = vector.broadcast %cst_43 : f32 to vector<128x1xf32>
    %106 = arith.addf %104, %105 : vector<128x1xf32>
    %107 = math.rsqrt %106 : vector<128x1xf32>
    %108 = vector.broadcast %107 : vector<128x1xf32> to vector<128x128xf32>
    %109 = arith.mulf %99, %108 : vector<128x128xf32>
    %110 = vector.extract_strided_slice %89 {offsets = [1, 0], sizes = [1, 128], strides = [1, 1]} : vector<3x128xf32> to vector<1x128xf32>
    %111 = vector.broadcast %110 : vector<1x128xf32> to vector<128x128xf32>
    %112 = arith.mulf %109, %111 : vector<128x128xf32>
    %113 = vector.extract_strided_slice %89 {offsets = [2, 0], sizes = [1, 128], strides = [1, 1]} : vector<3x128xf32> to vector<1x128xf32>
    %114 = vector.broadcast %113 : vector<1x128xf32> to vector<128x128xf32>
    %115 = arith.addf %112, %114 : vector<128x128xf32>
    %c0_44 = arith.constant 0 : index
    %c0_45 = arith.constant 0 : index
    %116 = vector.load %arg12[%c0_44, %c0_45] : memref<128x128xf32, #tpu.memory_space<vmem>>, vector<128x128xf32>
    tpu.vector_store %arg12[%c0_44, %c0_45], %115 {strides = array<i32>} : memref<128x128xf32, #tpu.memory_space<vmem>>, vector<128x128xf32>,
    return
  }
  func.func @transform_0(%arg0: i32) -> (i32, i32) {
    %c0_i32 = arith.constant 0 : i32
    %c0_i32_0 = arith.constant 0 : i32
    return %arg0, %c0_i32 : i32, i32
  }
  func.func @transform_1(%arg0: i32) -> (i32, i32) {
    %c0_i32 = arith.constant 0 : i32
    %c0_i32_0 = arith.constant 0 : i32
    %c0_i32_1 = arith.constant 0 : i32
    return %c0_i32, %c0_i32_0 : i32, i32
  }
  func.func @transform_2(%arg0: i32) -> (i32, i32) {
    %c0_i32 = arith.constant 0 : i32
    %c0_i32_0 = arith.constant 0 : i32
    %c0_i32_1 = arith.constant 0 : i32
    return %c0_i32, %c0_i32_0 : i32, i32
  }
  func.func @transform_3(%arg0: i32) -> (i32, i32) {
    %c0_i32 = arith.constant 0 : i32
    %c0_i32_0 = arith.constant 0 : i32
    %c0_i32_1 = arith.constant 0 : i32
    return %c0_i32, %c0_i32_0 : i32, i32
  }
  func.func @transform_4(%arg0: i32) -> (i32, i32) {
    %c0_i32 = arith.constant 0 : i32
    %c0_i32_0 = arith.constant 0 : i32
    %c0_i32_1 = arith.constant 0 : i32
    return %c0_i32, %c0_i32_0 : i32, i32
  }
  func.func @transform_5(%arg0: i32) -> (i32, i32) {
    %c0_i32 = arith.constant 0 : i32
    %c0_i32_0 = arith.constant 0 : i32
    %c0_i32_1 = arith.constant 0 : i32
    return %c0_i32, %c0_i32_0 : i32, i32
  }
  func.func @transform_6(%arg0: i32) -> (i32, i32) {
    %c0_i32 = arith.constant 0 : i32
    %c0_i32_0 = arith.constant 0 : i32
    %c0_i32_1 = arith.constant 0 : i32
    return %c0_i32, %c0_i32_0 : i32, i32
  }
  func.func @transform_7(%arg0: i32) -> (i32, i32) {
    %c0_i32 = arith.constant 0 : i32
    %c0_i32_0 = arith.constant 0 : i32
    %c0_i32_1 = arith.constant 0 : i32
    return %c0_i32, %c0_i32_0 : i32, i32
  }
  func.func @transform_8(%arg0: i32) -> (i32, i32) {
    %c0_i32 = arith.constant 0 : i32
    %c0_i32_0 = arith.constant 0 : i32
    %c0_i32_1 = arith.constant 0 : i32
    return %c0_i32, %c0_i32_0 : i32, i32
  }
  func.func @transform_9(%arg0: i32) -> (i32, i32) {
    %c0_i32 = arith.constant 0 : i32
    %c0_i32_0 = arith.constant 0 : i32
    %c0_i32_1 = arith.constant 0 : i32
    return %c0_i32, %c0_i32_0 : i32, i32
  }
  func.func @transform_10(%arg0: i32) -> (i32, i32) {
    %c0_i32 = arith.constant 0 : i32
    %c0_i32_0 = arith.constant 0 : i32
    %c0_i32_1 = arith.constant 0 : i32
    return %c0_i32, %c0_i32_0 : i32, i32
  }
  func.func @transform_11(%arg0: i32) -> (i32, i32) {
    %c0_i32 = arith.constant 0 : i32
    %c0_i32_0 = arith.constant 0 : i32
    return %arg0, %c0_i32 : i32, i32
  }
}

</mosaic_0001>

<llo_original>
// kernel: tpu_custom_call.1
$region0: #{tpu_custom_call.1}
  #allocation0 [shape = 'u32[]', space=smem, size = 0x4, offset = 0x4, fixed_abs, tag = 'smem constant byte address 0x4 - core index']
  #allocation1 [shape = 'u32[144,128]{1,0:T(1,128)}', space=vmem, size = 0x12000, scoped, tag = 'internal scratch']
  %s0 = inlined_call_operand.vmem [shape: f32[256,38], index: 0, kind: input, shape index: {}]
  %s1 = inlined_call_operand.hbm [shape: f32[32,32], index: 1, kind: input, shape index: {}]
  %s2 = inlined_call_operand.hbm [shape: f32[3,32], index: 2, kind: input, shape index: {}]
  %s3 = inlined_call_operand.hbm [shape: f32[6,64], index: 3, kind: input, shape index: {}]
  %s4 = inlined_call_operand.hbm [shape: f32[32,32], index: 4, kind: input, shape index: {}]
  %s5 = inlined_call_operand.hbm [shape: f32[5,32], index: 5, kind: input, shape index: {}]
  %s6 = inlined_call_operand.vmem [shape: f32[32,384], index: 6, kind: input, shape index: {}]
  %s7 = inlined_call_operand.hbm [shape: f32[32,384], index: 7, kind: input, shape index: {}]
  %s8 = inlined_call_operand.hbm [shape: f32[1,384], index: 8, kind: input, shape index: {}]
  %s9 = inlined_call_operand.vmem [shape: f32[256,128], index: 9, kind: input, shape index: {}]
  %s10 = inlined_call_operand.hbm [shape: f32[3,128], index: 10, kind: input, shape index: {}]
  %s11 = inlined_call_operand.hbm [shape: f32[256,128], index: 11, kind: output, shape index: {}]
  %s12 = sld [smem:[#allocation0]]
  $region109: #{tpu_custom_call.1} parent=0
    _
  %s14 = ssub.s32 1, %s12
  %s15 = scalar_select 0, %s14, %s12
  $region1: #{tpu_custom_call.1} parent=0
    #allocation2 [shape = 'u8[16384]{0}', space=vmem, size = 0x4000, scoped, tag = 'input window, operand 1, single buffered']
    #allocation3 [shape = 's32[2]{0}', space=sflag, size = 0x8, scoped, tag = 'scoped memory for tpu_custom_call.1']
    #allocation4 [shape = 's32[2]{0}', space=sflag, size = 0x8, scoped, tag = 'scoped memory for tpu_custom_call.1']
    #allocation5 [shape = 'u8[2048]{0}', space=vmem, size = 0x800, scoped, tag = 'input window, operand 2, single buffered']
    #allocation6 [shape = 's32[1]{0}', space=sflag, size = 0x4, scoped, tag = 'scoped memory for tpu_custom_call.1']
    #allocation7 [shape = 'u8[4096]{0}', space=vmem, size = 0x1000, scoped, tag = 'input window, operand 3, single buffered']
    #allocation8 [shape = 'u8[16384]{0}', space=vmem, size = 0x4000, scoped, tag = 'input window, operand 4, single buffered']
    #allocation9 [shape = 's32[1]{0}', space=sflag, size = 0x4, scoped, tag = 'scoped memory for tpu_custom_call.1']
    #allocation10 [shape = 'u8[4096]{0}', space=vmem, size = 0x1000, scoped, tag = 'input window, operand 5, single buffered']
    #allocation11 [shape = 'u8[49152]{0}', space=vmem, size = 0xc000, scoped, tag = 'input window, operand 7, single buffered']
    #allocation12 [shape = 's32[1]{0}', space=sflag, size = 0x4, scoped, tag = 'scoped memory for tpu_custom_call.1']
    #allocation13 [shape = 'u8[1536]{0}', space=vmem, size = 0x800, scoped, tag = 'input window, operand 8, single buffered']
    #allocation14 [shape = 'u8[2048]{0}', space=vmem, size = 0x800, scoped, tag = 'input window, operand 10, single buffered']
    #allocation15 [shape = 's32[1]{0}', space=sflag, size = 0x4, scoped, tag = 'scoped memory for tpu_custom_call.1']
    #allocation16 [shape = 'u8[131072]{0}', space=vmem, size = 0x20000, scoped, tag = 'output window, operand 0']
    %16 = vsyncpa [#allocation3], 0
    %17 = vsyncpa [#allocation6], 0
    %18 = vsyncpa [#allocation9], 0
    %19 = vsyncpa [#allocation12], 0
    %20 = vsyncpa [#allocation15], 0
    %21 = vsyncpa [#allocation4], 0
    %s22 = scalar_lea.sflag [#allocation4], 1
    %23 = vsyncpa %s22, 0
    loop: start=0, step=1, limit=4
    $region2: #{tpu_custom_call.1} parent=1 // loop_pre_header
      _
    $region3: #{tpu_custom_call.1} parent=1 // loop_header
      %s25 = sphi 0, %s29
      %p26 = scmp.ge.s32.totalorder %s25, 4
      %s35 = sphi 0, %s37
      %s38 = sphi 0, %s35
      %s39 = sphi 0, %s38
      %s55 = sphi 0, %s39
      %s59 = sphi 0, %s59
      %s61 = sphi 0, %s59
      %s62 = sphi 0, %s61
      %s76 = sphi 0, %s62
      %s80 = sphi 0, %s80
      %s82 = sphi 0, %s80
      %s83 = sphi 0, %s82
      %s97 = sphi 0, %s83
      %s101 = sphi 0, %s101
      %s103 = sphi 0, %s101
      %s104 = sphi 0, %s103
      %s118 = sphi 0, %s104
      %s122 = sphi 0, %s122
      %s124 = sphi 0, %s122
      %s125 = sphi 0, %s124
      %s139 = sphi 0, %s125
      %s143 = sphi 0, %s143
      %s145 = sphi 0, %s143
      %s146 = sphi 0, %s145
      %s160 = sphi 0, %s146
      %s164 = sphi 0, %s164
      %s166 = sphi 0, %s164
      %s167 = sphi 0, %s166
      %s181 = sphi 0, %s167
      %s185 = sphi 0, %s185
      %s187 = sphi 0, %s185
      %s188 = sphi 0, %s187
      %s202 = sphi 0, %s188
      %s206 = sphi 0, %s206
      %s208 = sphi 0, %s206
      %s209 = sphi 0, %s208
      %s223 = sphi 0, %s209
      %s227 = sphi 0, %s227
      %s229 = sphi 0, %s227
      %s230 = sphi 0, %s229
      %s244 = sphi 0, %s230
      %s248 = sphi 0, %s248
      %s250 = sphi 0, %s248
      %s251 = sphi 0, %s250
      %s265 = sphi 0, %s251
      %s271 = sphi 0, %s273
      %s274 = sphi 0, %s271
      %s275 = sphi 0, %s274
      %s291 = sphi 0, %s275
    $region4: #{tpu_custom_call.1} parent=1 // loop_header_branch
      %28 = sbr.rel (%p26) target = $region8
    $region5: #{tpu_custom_call.1} parent=1 // loop_body
      %s30 = ssub.s32 %s25, 1
      %s31 = ssub.s32 %s25, 2
      %s32 = sadd.s32 %s25, 1
      %s33 = ssub.s32 %s25, %s32
      %p34 = scmp.eq.s32.totalorder %s33, 0
      %s36 = sadd.s32 %s35, 1
      %s37 = scalar_select %p34, %s35, %s36
      %p40 = pneg %p34
      %p41 = scmp.eq.s32.totalorder %s25, 1
      %p42 = por %p40, %p41
      %p43 = scmp.ne.s32.totalorder %s35, %s38
      %p44 = scmp.eq.s32.totalorder %s25, 0
      %p45 = por %p43, %p44
      %p46 = scmp.ne.s32.totalorder %s35, %s38
      %p47 = scmp.eq.s32.totalorder %s30, 1
      %p48 = por %p46, %p47
      %p49 = scmp.ne.s32.totalorder %s38, %s39
      %p50 = scmp.eq.s32.totalorder %s30, 0
      %p51 = por %p49, %p50
      %p52 = scmp.ne.s32.totalorder %s38, %s39
      %p53 = scmp.eq.s32.totalorder %s31, 1
      %p54 = por %p52, %p53
      %p56 = scmp.ne.s32.totalorder %s39, %s55
      %p57 = scmp.eq.s32.totalorder %s31, 0
      %p58 = por %p56, %p57
      %s60 = sadd.s32 %s59, 1
      %p63 = scmp.eq.s32.totalorder %s25, 1
      %p64 = scmp.ne.s32.totalorder %s59, %s61
      %p65 = scmp.eq.s32.totalorder %s25, 0
      %p66 = por %p64, %p65
      %p67 = scmp.ne.s32.totalorder %s59, %s61
      %p68 = scmp.eq.s32.totalorder %s30, 1
      %p69 = por %p67, %p68
      %p70 = scmp.ne.s32.totalorder %s61, %s62
      %p71 = scmp.eq.s32.totalorder %s30, 0
      %p72 = por %p70, %p71
      %p73 = scmp.ne.s32.totalorder %s61, %s62
      %p74 = scmp.eq.s32.totalorder %s31, 1
      %p75 = por %p73, %p74
      %p77 = scmp.ne.s32.totalorder %s62, %s76
      %p78 = scmp.eq.s32.totalorder %s31, 0
      %p79 = por %p77, %p78
      %s81 = sadd.s32 %s80, 1
      %p84 = scmp.eq.s32.totalorder %s25, 1
      %p85 = scmp.ne.s32.totalorder %s80, %s82
      %p86 = scmp.eq.s32.totalorder %s25, 0
      %p87 = por %p85, %p86
      %p88 = scmp.ne.s32.totalorder %s80, %s82
      %p89 = scmp.eq.s32.totalorder %s30, 1
      %p90 = por %p88, %p89
      %p91 = scmp.ne.s32.totalorder %s82, %s83
      %p92 = scmp.eq.s32.totalorder %s30, 0
      %p93 = por %p91, %p92
      %p94 = scmp.ne.s32.totalorder %s82, %s83
      %p95 = scmp.eq.s32.totalorder %s31, 1
      %p96 = por %p94, %p95
      %p98 = scmp.ne.s32.totalorder %s83, %s97
      %p99 = scmp.eq.s32.totalorder %s31, 0
      %p100 = por %p98, %p99
      %s102 = sadd.s32 %s101, 1
      %p105 = scmp.eq.s32.totalorder %s25, 1
      %p106 = scmp.ne.s32.totalorder %s101, %s103
      %p107 = scmp.eq.s32.totalorder %s25, 0
      %p108 = por %p106, %p107
      %p109 = scmp.ne.s32.totalorder %s101, %s103
      %p110 = scmp.eq.s32.totalorder %s30, 1
      %p111 = por %p109, %p110
      %p112 = scmp.ne.s32.totalorder %s103, %s104
      %p113 = scmp.eq.s32.totalorder %s30, 0
      %p114 = por %p112, %p113
      %p115 = scmp.ne.s32.totalorder %s103, %s104
      %p116 = scmp.eq.s32.totalorder %s31, 1
      %p117 = por %p115, %p116
      %p119 = scmp.ne.s32.totalorder %s104, %s118
      %p120 = scmp.eq.s32.totalorder %s31, 0
      %p121 = por %p119, %p120
      %s123 = sadd.s32 %s122, 1
      %p126 = scmp.eq.s32.totalorder %s25, 1
      %p127 = scmp.ne.s32.totalorder %s122, %s124
      %p128 = scmp.eq.s32.totalorder %s25, 0
      %p129 = por %p127, %p128
      %p130 = scmp.ne.s32.totalorder %s122, %s124
      %p131 = scmp.eq.s32.totalorder %s30, 1
      %p132 = por %p130, %p131
      %p133 = scmp.ne.s32.totalorder %s124, %s125
      %p134 = scmp.eq.s32.totalorder %s30, 0
      %p135 = por %p133, %p134
      %p136 = scmp.ne.s32.totalorder %s124, %s125
      %p137 = scmp.eq.s32.totalorder %s31, 1
      %p138 = por %p136, %p137
      %p140 = scmp.ne.s32.totalorder %s125, %s139
      %p141 = scmp.eq.s32.totalorder %s31, 0
      %p142 = por %p140, %p141
      %s144 = sadd.s32 %s143, 1
      %p147 = scmp.eq.s32.totalorder %s25, 1
      %p148 = scmp.ne.s32.totalorder %s143, %s145
      %p149 = scmp.eq.s32.totalorder %s25, 0
      %p150 = por %p148, %p149
      %p151 = scmp.ne.s32.totalorder %s143, %s145
      %p152 = scmp.eq.s32.totalorder %s30, 1
      %p153 = por %p151, %p152
      %p154 = scmp.ne.s32.totalorder %s145, %s146
      %p155 = scmp.eq.s32.totalorder %s30, 0
      %p156 = por %p154, %p155
      %p157 = scmp.ne.s32.totalorder %s145, %s146
      %p158 = scmp.eq.s32.totalorder %s31, 1
      %p159 = por %p157, %p158
      %p161 = scmp.ne.s32.totalorder %s146, %s160
      %p162 = scmp.eq.s32.totalorder %s31, 0
      %p163 = por %p161, %p162
      %s165 = sadd.s32 %s164, 1
      %p168 = scmp.eq.s32.totalorder %s25, 1
      %p169 = scmp.ne.s32.totalorder %s164, %s166
      %p170 = scmp.eq.s32.totalorder %s25, 0
      %p171 = por %p169, %p170
      %p172 = scmp.ne.s32.totalorder %s164, %s166
      %p173 = scmp.eq.s32.totalorder %s30, 1
      %p174 = por %p172, %p173
      %p175 = scmp.ne.s32.totalorder %s166, %s167
      %p176 = scmp.eq.s32.totalorder %s30, 0
      %p177 = por %p175, %p176
      %p178 = scmp.ne.s32.totalorder %s166, %s167
      %p179 = scmp.eq.s32.totalorder %s31, 1
      %p180 = por %p178, %p179
      %p182 = scmp.ne.s32.totalorder %s167, %s181
      %p183 = scmp.eq.s32.totalorder %s31, 0
      %p184 = por %p182, %p183
      %s186 = sadd.s32 %s185, 1
      %p189 = scmp.eq.s32.totalorder %s25, 1
      %p190 = scmp.ne.s32.totalorder %s185, %s187
      %p191 = scmp.eq.s32.totalorder %s25, 0
      %p192 = por %p190, %p191
      %p193 = scmp.ne.s32.totalorder %s185, %s187
      %p194 = scmp.eq.s32.totalorder %s30, 1
      %p195 = por %p193, %p194
      %p196 = scmp.ne.s32.totalorder %s187, %s188
      %p197 = scmp.eq.s32.totalorder %s30, 0
      %p198 = por %p196, %p197
      %p199 = scmp.ne.s32.totalorder %s187, %s188
      %p200 = scmp.eq.s32.totalorder %s31, 1
      %p201 = por %p199, %p200
      %p203 = scmp.ne.s32.totalorder %s188, %s202
      %p204 = scmp.eq.s32.totalorder %s31, 0
      %p205 = por %p203, %p204
      %s207 = sadd.s32 %s206, 1
      %p210 = scmp.eq.s32.totalorder %s25, 1
      %p211 = scmp.ne.s32.totalorder %s206, %s208
      %p212 = scmp.eq.s32.totalorder %s25, 0
      %p213 = por %p211, %p212
      %p214 = scmp.ne.s32.totalorder %s206, %s208
      %p215 = scmp.eq.s32.totalorder %s30, 1
      %p216 = por %p214, %p215
      %p217 = scmp.ne.s32.totalorder %s208, %s209
      %p218 = scmp.eq.s32.totalorder %s30, 0
      %p219 = por %p217, %p218
      %p220 = scmp.ne.s32.totalorder %s208, %s209
      %p221 = scmp.eq.s32.totalorder %s31, 1
      %p222 = por %p220, %p221
      %p224 = scmp.ne.s32.totalorder %s209, %s223
      %p225 = scmp.eq.s32.totalorder %s31, 0
      %p226 = por %p224, %p225
      %s228 = sadd.s32 %s227, 1
      %p231 = scmp.eq.s32.totalorder %s25, 1
      %p232 = scmp.ne.s32.totalorder %s227, %s229
      %p233 = scmp.eq.s32.totalorder %s25, 0
      %p234 = por %p232, %p233
      %p235 = scmp.ne.s32.totalorder %s227, %s229
      %p236 = scmp.eq.s32.totalorder %s30, 1
      %p237 = por %p235, %p236
      %p238 = scmp.ne.s32.totalorder %s229, %s230
      %p239 = scmp.eq.s32.totalorder %s30, 0
      %p240 = por %p238, %p239
      %p241 = scmp.ne.s32.totalorder %s229, %s230
      %p242 = scmp.eq.s32.totalorder %s31, 1
      %p243 = por %p241, %p242
      %p245 = scmp.ne.s32.totalorder %s230, %s244
      %p246 = scmp.eq.s32.totalorder %s31, 0
      %p247 = por %p245, %p246
      %s249 = sadd.s32 %s248, 1
      %p252 = scmp.eq.s32.totalorder %s25, 1
      %p253 = scmp.ne.s32.totalorder %s248, %s250
      %p254 = scmp.eq.s32.totalorder %s25, 0
      %p255 = por %p253, %p254
      %p256 = scmp.ne.s32.totalorder %s248, %s250
      %p257 = scmp.eq.s32.totalorder %s30, 1
      %p258 = por %p256, %p257
      %p259 = scmp.ne.s32.totalorder %s250, %s251
      %p260 = scmp.eq.s32.totalorder %s30, 0
      %p261 = por %p259, %p260
      %p262 = scmp.ne.s32.totalorder %s250, %s251
      %p263 = scmp.eq.s32.totalorder %s31, 1
      %p264 = por %p262, %p263
      %p266 = scmp.ne.s32.totalorder %s251, %s265
      %p267 = scmp.eq.s32.totalorder %s31, 0
      %p268 = por %p266, %p267
      %s269 = ssub.s32 %s25, %s32
      %p270 = scmp.eq.s32.totalorder %s269, 0
      %s272 = sadd.s32 %s271, 1
      %s273 = scalar_select %p270, %s271, %s272
      %p276 = pneg %p270
      %p277 = scmp.eq.s32.totalorder %s25, 1
      %p278 = por %p276, %p277
      %p279 = scmp.ne.s32.totalorder %s271, %s274
      %p280 = scmp.eq.s32.totalorder %s25, 0
      %p281 = por %p279, %p280
      %p282 = scmp.ne.s32.totalorder %s271, %s274
      %p283 = scmp.eq.s32.totalorder %s30, 1
      %p284 = por %p282, %p283
      %p285 = scmp.ne.s32.totalorder %s274, %s275
      %p286 = scmp.eq.s32.totalorder %s30, 0
      %p287 = por %p285, %p286
      %p288 = scmp.ne.s32.totalorder %s274, %s275
      %p289 = scmp.eq.s32.totalorder %s31, 1
      %p290 = por %p288, %p289
      %p292 = scmp.ne.s32.totalorder %s275, %s291
      %p293 = scmp.eq.s32.totalorder %s31, 0
      %p294 = por %p292, %p293
      %p295 = scmp.le.s32.totalorder 1, %s25
      %p296 = scmp.lt.s32.totalorder %s25, 3
      %p297 = pnand %p295, %p296
      %p298 = pneg %p297
      // Predicated region
      $region9: #{tpu_custom_call.1} parent=5 // pred_check
        _
      $region10: #{tpu_custom_call.1} parent=5 // pred_check_branch
        %300 = sbr.rel (%p297) target = $region12
      $region11: #{tpu_custom_call.1} parent=5 // pred_region
        %s301 = ssub.s32 %s25, 1
        // Predicated region
        $region13: #{tpu_custom_call.1} parent=11 // pred_check
          %p302 = pneg %p72
        $region14: #{tpu_custom_call.1} parent=11 // pred_check_branch
          %304 = sbr.rel (%p302) target = $region16
        $region15: #{tpu_custom_call.1} parent=11 // pred_region
          %s306 = ssub.s32 512, 512
          %307 = vsyncadd [#allocation3], %s306
          %s308 = sshll.u32 [#allocation2], 4
          %s309 = int_to_ptr.vmem [resolvable:$true] %s308
          %314 = dma.hbm_to_vmem [thread:$0]  %s1, 512, %s309, [#allocation3], 128, 128, 8
        $region16: #{tpu_custom_call.1} parent=11 // pred_fallthru
          _
        // Predicated region
        $region17: #{tpu_custom_call.1} parent=11 // pred_check
          %p315 = pneg %p93
        $region18: #{tpu_custom_call.1} parent=11 // pred_check_branch
          %317 = sbr.rel (%p315) target = $region20
        $region19: #{tpu_custom_call.1} parent=11 // pred_region
          %s319 = ssub.s32 64, 64
          %320 = vsyncadd [#allocation6], %s319
          %s322 = sshll.u32 [#allocation5], 4
          %s323 = int_to_ptr.vmem [resolvable:$true] %s322
          %325 = dma.hbm_to_vmem [thread:$0]  %s2, 64, %s323, [#allocation6]
        $region20: #{tpu_custom_call.1} parent=11 // pred_fallthru
          _
        // Predicated region
        $region21: #{tpu_custom_call.1} parent=11 // pred_check
          %p326 = pneg %p114
        $region22: #{tpu_custom_call.1} parent=11 // pred_check_branch
          %328 = sbr.rel (%p326) target = $region24
        $region23: #{tpu_custom_call.1} parent=11 // pred_region
          %s330 = ssub.s32 128, 128
          %331 = vsyncadd [#allocation6], %s330
          %s333 = sshll.u32 [#allocation7], 4
          %s334 = int_to_ptr.vmem [resolvable:$true] %s333
          %336 = dma.hbm_to_vmem [thread:$0]  %s3, 128, %s334, [#allocation6]
        $region24: #{tpu_custom_call.1} parent=11 // pred_fallthru
          _
        // Predicated region
        $region25: #{tpu_custom_call.1} parent=11 // pred_check
          %p337 = pneg %p135
        $region26: #{tpu_custom_call.1} parent=11 // pred_check_branch
          %339 = sbr.rel (%p337) target = $region28
        $region27: #{tpu_custom_call.1} parent=11 // pred_region
          %s341 = ssub.s32 512, 512
          %342 = vsyncadd [#allocation9], %s341
          %s343 = sshll.u32 [#allocation8], 4
          %s344 = int_to_ptr.vmem [resolvable:$true] %s343
          %349 = dma.hbm_to_vmem [thread:$0]  %s4, 512, %s344, [#allocation9], 128, 128, 8
        $region28: #{tpu_custom_call.1} parent=11 // pred_fallthru
          _
        // Predicated region
        $region29: #{tpu_custom_call.1} parent=11 // pred_check
          %p350 = pneg %p156
        $region30: #{tpu_custom_call.1} parent=11 // pred_check_branch
          %352 = sbr.rel (%p350) target = $region32
        $region31: #{tpu_custom_call.1} parent=11 // pred_region
          %s354 = ssub.s32 128, 128
          %355 = vsyncadd [#allocation9], %s354
          %s357 = sshll.u32 [#allocation10], 4
          %s358 = int_to_ptr.vmem [resolvable:$true] %s357
          %360 = dma.hbm_to_vmem [thread:$0]  %s5, 128, %s358, [#allocation9]
        $region32: #{tpu_custom_call.1} parent=11 // pred_fallthru
          _
        // Predicated region
        $region33: #{tpu_custom_call.1} parent=11 // pred_check
          %p361 = pneg %p177
        $region34: #{tpu_custom_call.1} parent=11 // pred_check_branch
          %363 = sbr.rel (%p361) target = $region36
        $region35: #{tpu_custom_call.1} parent=11 // pred_region
          _
        $region36: #{tpu_custom_call.1} parent=11 // pred_fallthru
          _
        // Predicated region
        $region37: #{tpu_custom_call.1} parent=11 // pred_check
          %p364 = pneg %p198
        $region38: #{tpu_custom_call.1} parent=11 // pred_check_branch
          %366 = sbr.rel (%p364) target = $region40
        $region39: #{tpu_custom_call.1} parent=11 // pred_region
          %s368 = ssub.s32 1536, 1536
          %369 = vsyncadd [#allocation12], %s368
          %s370 = sshll.u32 [#allocation11], 4
          %s371 = int_to_ptr.vmem [resolvable:$true] %s370
          %376 = dma.hbm_to_vmem [thread:$0]  %s7, 1536, %s371, [#allocation12], 384, 384, 24
        $region40: #{tpu_custom_call.1} parent=11 // pred_fallthru
          _
        // Predicated region
        $region41: #{tpu_custom_call.1} parent=11 // pred_check
          %p377 = pneg %p219
        $region42: #{tpu_custom_call.1} parent=11 // pred_check_branch
          %379 = sbr.rel (%p377) target = $region44
        $region43: #{tpu_custom_call.1} parent=11 // pred_region
          %s381 = ssub.s32 48, 48
          %382 = vsyncadd [#allocation12], %s381
          %s384 = sshll.u32 [#allocation13], 4
          %s385 = int_to_ptr.vmem [resolvable:$true] %s384
          %387 = dma.hbm_to_vmem [thread:$0]  %s8, 48, %s385, [#allocation12]
        $region44: #{tpu_custom_call.1} parent=11 // pred_fallthru
          _
        // Predicated region
        $region45: #{tpu_custom_call.1} parent=11 // pred_check
          %p388 = pneg %p240
        $region46: #{tpu_custom_call.1} parent=11 // pred_check_branch
          %390 = sbr.rel (%p388) target = $region48
        $region47: #{tpu_custom_call.1} parent=11 // pred_region
          _
        $region48: #{tpu_custom_call.1} parent=11 // pred_fallthru
          _
        // Predicated region
        $region49: #{tpu_custom_call.1} parent=11 // pred_check
          %p391 = pneg %p261
        $region50: #{tpu_custom_call.1} parent=11 // pred_check_branch
          %393 = sbr.rel (%p391) target = $region52
        $region51: #{tpu_custom_call.1} parent=11 // pred_region
          %s395 = ssub.s32 64, 64
          %396 = vsyncadd [#allocation15], %s395
          %s398 = sshll.u32 [#allocation14], 4
          %s399 = int_to_ptr.vmem [resolvable:$true] %s398
          %401 = dma.hbm_to_vmem [thread:$0]  %s10, 64, %s399, [#allocation15]
        $region52: #{tpu_custom_call.1} parent=11 // pred_fallthru
          _
      $region12: #{tpu_custom_call.1} parent=5 // pred_fallthru
        _
      %p402 = scmp.lt.s32.totalorder %s25, 2
      // Predicated region
      $region53: #{tpu_custom_call.1} parent=5 // pred_check
        %p403 = pneg %p402
      $region54: #{tpu_custom_call.1} parent=5 // pred_check_branch
        %405 = sbr.rel (%p403) target = $region56
      $region55: #{tpu_custom_call.1} parent=5 // pred_region
        // Predicated region
        $region57: #{tpu_custom_call.1} parent=55 // pred_check
          %p406 = pneg %p45
        $region58: #{tpu_custom_call.1} parent=55 // pred_check_branch
          %408 = sbr.rel (%p406) target = $region60
        $region59: #{tpu_custom_call.1} parent=55 // pred_region
          %s409 = smul.u32 16, %s25
          %p410 = scmp.lt.s32.totalorder %s409, 31
          %s411 = scalar_select %p410, %s409, 31
          %s412 = smul.addr %s411, 8
          %s413 = scalar_lea.vmem %s0, %s412
          %s414 = smul.u32 16, %s25
        $region60: #{tpu_custom_call.1} parent=55 // pred_fallthru
          _
      $region56: #{tpu_custom_call.1} parent=5 // pred_fallthru
        _
      %p415 = scmp.le.s32.totalorder 1, %s25
      %p416 = scmp.lt.s32.totalorder %s25, 3
      %p417 = pnand %p415, %p416
      %p418 = pneg %p417
      // Predicated region
      $region61: #{tpu_custom_call.1} parent=5 // pred_check
        _
      $region62: #{tpu_custom_call.1} parent=5 // pred_check_branch
        %420 = sbr.rel (%p417) target = $region64
      $region63: #{tpu_custom_call.1} parent=5 // pred_region
        %s421 = ssub.s32 %s25, 1
        // Predicated region
        $region65: #{tpu_custom_call.1} parent=63 // pred_check
          %p422 = pneg %p72
        $region66: #{tpu_custom_call.1} parent=63 // pred_check_branch
          %424 = sbr.rel (%p422) target = $region68
        $region67: #{tpu_custom_call.1} parent=63 // pred_region
          %425 = dma.done [#allocation3], 512
        $region68: #{tpu_custom_call.1} parent=63 // pred_fallthru
          _
        // Predicated region
        $region69: #{tpu_custom_call.1} parent=63 // pred_check
          %p426 = pneg %p93
        $region70: #{tpu_custom_call.1} parent=63 // pred_check_branch
          %428 = sbr.rel (%p426) target = $region72
        $region71: #{tpu_custom_call.1} parent=63 // pred_region
          %429 = dma.done [#allocation6], 64
        $region72: #{tpu_custom_call.1} parent=63 // pred_fallthru
          _
        // Predicated region
        $region73: #{tpu_custom_call.1} parent=63 // pred_check
          %p430 = pneg %p114
        $region74: #{tpu_custom_call.1} parent=63 // pred_check_branch
          %432 = sbr.rel (%p430) target = $region76
        $region75: #{tpu_custom_call.1} parent=63 // pred_region
          %433 = dma.done [#allocation6], 128
        $region76: #{tpu_custom_call.1} parent=63 // pred_fallthru
          _
        // Predicated region
        $region77: #{tpu_custom_call.1} parent=63 // pred_check
          %p434 = pneg %p135
        $region78: #{tpu_custom_call.1} parent=63 // pred_check_branch
          %436 = sbr.rel (%p434) target = $region80
        $region79: #{tpu_custom_call.1} parent=63 // pred_region
          %437 = dma.done [#allocation9], 512
        $region80: #{tpu_custom_call.1} parent=63 // pred_fallthru
          _
        // Predicated region
        $region81: #{tpu_custom_call.1} parent=63 // pred_check
          %p438 = pneg %p156
        $region82: #{tpu_custom_call.1} parent=63 // pred_check_branch
          %440 = sbr.rel (%p438) target = $region84
        $region83: #{tpu_custom_call.1} parent=63 // pred_region
          %441 = dma.done [#allocation9], 128
        $region84: #{tpu_custom_call.1} parent=63 // pred_fallthru
          _
        // Predicated region
        $region85: #{tpu_custom_call.1} parent=63 // pred_check
          %p442 = pneg %p198
        $region86: #{tpu_custom_call.1} parent=63 // pred_check_branch
          %444 = sbr.rel (%p442) target = $region88
        $region87: #{tpu_custom_call.1} parent=63 // pred_region
          %445 = dma.done [#allocation12], 1536
        $region88: #{tpu_custom_call.1} parent=63 // pred_fallthru
          _
        // Predicated region
        $region89: #{tpu_custom_call.1} parent=63 // pred_check
          %p446 = pneg %p219
        $region90: #{tpu_custom_call.1} parent=63 // pred_check_branch
          %448 = sbr.rel (%p446) target = $region92
        $region91: #{tpu_custom_call.1} parent=63 // pred_region
          %449 = dma.done [#allocation12], 48
        $region92: #{tpu_custom_call.1} parent=63 // pred_fallthru
          _
        // Predicated region
        $region93: #{tpu_custom_call.1} parent=63 // pred_check
          %p450 = pneg %p261
        $region94: #{tpu_custom_call.1} parent=63 // pred_check_branch
          %452 = sbr.rel (%p450) target = $region96
        $region95: #{tpu_custom_call.1} parent=63 // pred_region
          %453 = dma.done [#allocation15], 64
        $region96: #{tpu_custom_call.1} parent=63 // pred_fallthru
          _
        %s454 = smul.u32 16, %s30
        %p455 = scmp.lt.s32.totalorder %s454, 31
        %s456 = scalar_select %p455, %s454, 31
        %s457 = smul.addr %s456, 8
        %s458 = scalar_lea.vmem %s0, %s457
        %p459 = pneg %p51
        %p460 = pneg %p48
        %p461 = pneg %p72
        %p462 = pneg %p69
        %p463 = pneg %p93
        %p464 = pneg %p90
        %p465 = pneg %p114
        %p466 = pneg %p111
        %p467 = pneg %p135
        %p468 = pneg %p132
        %p469 = pneg %p156
        %p470 = pneg %p153
        %p471 = pneg %p177
        %p472 = pneg %p174
        %p473 = pneg %p198
        %p474 = pneg %p195
        %p475 = pneg %p219
        %p476 = pneg %p216
        %p477 = pneg %p240
        %p478 = pneg %p237
        %p479 = pneg %p261
        %p480 = pneg %p258
        %p481 = pneg %p287
        %p482 = pneg %p284
        %s483 = sand.u32 %s274, 1
        %s484 = scalar_lea.sflag [#allocation4], %s483
        %s485 = sand.u32 %s274, 1
        %s486 = smul.addr %s485, 128
        %s487 = scalar_lea.vmem [#allocation16], %s486
        %s488 = smul.u32 16, %s30
        %p489 = scmp.lt.s32.totalorder %s488, 31
        %s490 = scalar_select %p489, %s488, 31
        %s491 = smul.addr %s490, 8
        %s492 = scalar_lea.vmem %s0, %s491
        %s493 = smul.u32 16, %s30
        %s494 = smul.u32 16, %s30
        %v495 = vld [vmem:[%s492] sm:$0xff]
        %v496 = vld [vmem:[%s492 + $0x8] sm:$0xff]
        %v497 = vld [vmem:[%s492 + $0x10] sm:$0xff]
        %v498 = vld [vmem:[%s492 + $0x18] sm:$0xff]
        %v499 = vld [vmem:[%s492 + $0x20] sm:$0xff]
        %v500 = vld [vmem:[%s492 + $0x28] sm:$0xff]
        %v501 = vld [vmem:[%s492 + $0x30] sm:$0xff]
        %v502 = vld [vmem:[%s492 + $0x38] sm:$0xff]
        %v503 = vld [vmem:[%s492 + $0x40] sm:$0xff]
        %v504 = vld [vmem:[%s492 + $0x48] sm:$0xff]
        %v505 = vld [vmem:[%s492 + $0x50] sm:$0xff]
        %v506 = vld [vmem:[%s492 + $0x58] sm:$0xff]
        %v507 = vld [vmem:[%s492 + $0x60] sm:$0xff]
        %v508 = vld [vmem:[%s492 + $0x68] sm:$0xff]
        %v509 = vld [vmem:[%s492 + $0x70] sm:$0xff]
        %v510 = vld [vmem:[%s492 + $0x78] sm:$0xff]
        %v511 = vld [vmem:[#allocation5] sm:$0x7]
        %v512 = vld [vmem:[#allocation2] sm:$0xff]
        %v513 = vld [vmem:[#allocation2 + $0x8] sm:$0xff]
        %v514 = vld [vmem:[#allocation2 + $0x10] sm:$0xff]
        %v515 = vld [vmem:[#allocation2 + $0x18] sm:$0xff]
        %v516 = vlaneseq
        %v517 = vshrl.u32 %v516, 7
        %v518 = vsub.s32 0, %v517
        %v519 = vrot.slane %v511, %v518
        %vm520 = vcmask 261120
        %v522 = vsel %vm520, %v495, 0
        %v525 = vsel %vm520, %v496, 0
        %v528 = vsel %vm520, %v497, 0
        %v531 = vsel %vm520, %v498, 0
        %v534 = vsel %vm520, %v499, 0
        %v537 = vsel %vm520, %v500, 0
        %v540 = vsel %vm520, %v501, 0
        %v543 = vsel %vm520, %v502, 0
        %v546 = vsel %vm520, %v503, 0
        %v549 = vsel %vm520, %v504, 0
        %v552 = vsel %vm520, %v505, 0
        %v555 = vsel %vm520, %v506, 0
        %v558 = vsel %vm520, %v507, 0
        %v561 = vsel %vm520, %v508, 0
        %v564 = vsel %vm520, %v509, 0
        %v567 = vsel %vm520, %v510, 0
        %569 = vmatprep.subr.mxu0 0.0
        %570 = vmatpush1.msra.mxu0 0.0
        %571 = vmatprep.subr.mxu0 0.0
        %572 = vmatpush1.msra.mxu0 0.0
        %573 = vmatprep.subr.mxu0 0.0
        %574 = vmatpush1.msra.mxu0 0.0
        %575 = vmatprep.subr.mxu0 0.0
        %576 = vmatpush1.msra.mxu0 0.0
        %577 = vmatprep.subr.mxu0 0.0
        %578 = vmatpush1.msra.mxu0 0.0
        %579 = vmatprep.subr.mxu0 0.0
        %580 = vmatpush1.msra.mxu0 0.0
        %581 = vmatprep.subr.mxu0 0.0
        %582 = vmatpush1.msra.mxu0 0.0
        %583 = vmatprep.subr.mxu0 0.0
        %584 = vmatpush1.msra.mxu0 0.0
        %585 = vmatprep.subr.mxu0 0.0
        %586 = vmatpush1.msra.mxu0 0.0
        %587 = vmatprep.subr.mxu0 0.0
        %588 = vmatpush1.msra.mxu0 0.0
        %589 = vmatprep.subr.mxu0 0.0
        %590 = vmatpush1.msra.mxu0 0.0
        %591 = vmatprep.subr.mxu0 0.0
        %592 = vmatpush1.msra.mxu0 0.0
        %593 = vmatprep.subr.mxu0 0.0
        %594 = vmatpush1.msra.mxu0 %v515
        %595 = vmatprep.subr.mxu0 0.0
        %596 = vmatpush1.msra.mxu0 %v514
        %597 = vmatprep.subr.mxu0 0.0
        %598 = vmatpush1.msra.mxu0 %v513
        %599 = vmatprep.subr.mxu0 0.0
        %600 = vmatpush1.msra.mxu0 %v512
        %601 = vmatprep.subr.mxu0 0.0
        %602 = vmatpush2.msra.mxu0 0.0
        %603 = vmatprep.subr.mxu0 0.0
        %604 = vmatpush2.msra.mxu0 0.0
        %605 = vmatprep.subr.mxu0 0.0
        %606 = vmatpush2.msra.mxu0 0.0
        %607 = vmatprep.subr.mxu0 0.0
        %608 = vmatpush2.msra.mxu0 0.0
        %609 = vmatprep.subr.mxu0 0.0
        %610 = vmatpush2.msra.mxu0 0.0
        %611 = vmatprep.subr.mxu0 0.0
        %612 = vmatpush2.msra.mxu0 0.0
        %613 = vmatprep.subr.mxu0 0.0
        %614 = vmatpush2.msra.mxu0 0.0
        %615 = vmatprep.subr.mxu0 0.0
        %616 = vmatpush2.msra.mxu0 0.0
        %617 = vmatprep.subr.mxu0 0.0
        %618 = vmatpush2.msra.mxu0 0.0
        %619 = vmatprep.subr.mxu0 0.0
        %620 = vmatpush2.msra.mxu0 0.0
        %621 = vmatprep.subr.mxu0 0.0
        %622 = vmatpush2.msra.mxu0 0.0
        %623 = vmatprep.subr.mxu0 0.0
        %624 = vmatpush2.msra.mxu0 0.0
        %625 = vmatprep.subr.mxu0 0.0
        %626 = vmatpush2.msra.mxu0 0.0
        %627 = vmatprep.subr.mxu0 0.0
        %628 = vmatpush2.msra.mxu0 0.0
        %629 = vmatprep.subr.mxu0 0.0
        %630 = vmatpush2.msra.mxu0 0.0
        %631 = vmatprep.subr.mxu0 0.0
        %632 = vmatpush2.msra.mxu0 0.0
        %633 = vmatprep.mubr.f32.mxu0 0.0
        %634 = vmatmul.mubr.f32.gmra.mxu0 %v522
        %v635 = vpop.f32.mrf.mxu0
        %v636 = vadd.f32 %v519, %v635
        %v637 = vpop.f32.mrf.mxu0
        %638 = vmatprep.mubr.f32.mxu0 0.0
        %639 = vmatmul.mubr.f32.gmra.mxu0 %v525
        %v640 = vpop.f32.mrf.mxu0
        %v641 = vadd.f32 %v519, %v640
        %v642 = vpop.f32.mrf.mxu0
        %643 = vmatprep.mubr.f32.mxu0 0.0
        %644 = vmatmul.mubr.f32.gmra.mxu0 %v528
        %v645 = vpop.f32.mrf.mxu0
        %v646 = vadd.f32 %v519, %v645
        %v647 = vpop.f32.mrf.mxu0
        %648 = vmatprep.mubr.f32.mxu0 0.0
        %649 = vmatmul.mubr.f32.gmra.mxu0 %v531
        %v650 = vpop.f32.mrf.mxu0
        %v651 = vadd.f32 %v519, %v650
        %v652 = vpop.f32.mrf.mxu0
        %653 = vmatprep.mubr.f32.mxu0 0.0
        %654 = vmatmul.mubr.f32.gmra.mxu0 %v534
        %v655 = vpop.f32.mrf.mxu0
        %v656 = vadd.f32 %v519, %v655
        %v657 = vpop.f32.mrf.mxu0
        %658 = vmatprep.mubr.f32.mxu0 0.0
        %659 = vmatmul.mubr.f32.gmra.mxu0 %v537
        %v660 = vpop.f32.mrf.mxu0
        %v661 = vadd.f32 %v519, %v660
        %v662 = vpop.f32.mrf.mxu0
        %663 = vmatprep.mubr.f32.mxu0 0.0
        %664 = vmatmul.mubr.f32.gmra.mxu0 %v540
        %v665 = vpop.f32.mrf.mxu0
        %v666 = vadd.f32 %v519, %v665
        %v667 = vpop.f32.mrf.mxu0
        %668 = vmatprep.mubr.f32.mxu0 0.0
        %669 = vmatmul.mubr.f32.gmra.mxu0 %v543
        %v670 = vpop.f32.mrf.mxu0
        %v671 = vadd.f32 %v519, %v670
        %v672 = vpop.f32.mrf.mxu0
        %673 = vmatprep.mubr.f32.mxu0 0.0
        %674 = vmatmul.mubr.f32.gmra.mxu0 %v546
        %v675 = vpop.f32.mrf.mxu0
        %v676 = vadd.f32 %v519, %v675
        %v677 = vpop.f32.mrf.mxu0
        %678 = vmatprep.mubr.f32.mxu0 0.0
        %679 = vmatmul.mubr.f32.gmra.mxu0 %v549
        %v680 = vpop.f32.mrf.mxu0
        %v681 = vadd.f32 %v519, %v680
        %v682 = vpop.f32.mrf.mxu0
        %683 = vmatprep.mubr.f32.mxu0 0.0
        %684 = vmatmul.mubr.f32.gmra.mxu0 %v552
        %v685 = vpop.f32.mrf.mxu0
        %v686 = vadd.f32 %v519, %v685
        %v687 = vpop.f32.mrf.mxu0
        %688 = vmatprep.mubr.f32.mxu0 0.0
        %689 = vmatmul.mubr.f32.gmra.mxu0 %v555
        %v690 = vpop.f32.mrf.mxu0
        %v691 = vadd.f32 %v519, %v690
        %v692 = vpop.f32.mrf.mxu0
        %693 = vmatprep.mubr.f32.mxu0 0.0
        %694 = vmatmul.mubr.f32.gmra.mxu0 %v558
        %v695 = vpop.f32.mrf.mxu0
        %v696 = vadd.f32 %v519, %v695
        %v697 = vpop.f32.mrf.mxu0
        %698 = vmatprep.mubr.f32.mxu0 0.0
        %699 = vmatmul.mubr.f32.gmra.mxu0 %v561
        %v700 = vpop.f32.mrf.mxu0
        %v701 = vadd.f32 %v519, %v700
        %v702 = vpop.f32.mrf.mxu0
        %703 = vmatprep.mubr.f32.mxu0 0.0
        %704 = vmatmul.mubr.f32.gmra.mxu0 %v564
        %v705 = vpop.f32.mrf.mxu0
        %v706 = vadd.f32 %v519, %v705
        %v707 = vpop.f32.mrf.mxu0
        %708 = vmatprep.mubr.f32.mxu0 0.0
        %709 = vmatmul.mubr.f32.gmra.mxu0 %v567
        %v710 = vpop.f32.mrf.mxu0
        %v711 = vadd.f32 %v519, %v710
        %v712 = vpop.f32.mrf.mxu0
        %713 = vdwg.mxu0
        %v714 = vmax.f32 %v636, 0.0
        %v715 = vmax.f32 %v641, 0.0
        %v716 = vmax.f32 %v646, 0.0
        %v717 = vmax.f32 %v651, 0.0
        %v718 = vmax.f32 %v656, 0.0
        %v719 = vmax.f32 %v661, 0.0
        %v720 = vmax.f32 %v666, 0.0
        %v721 = vmax.f32 %v671, 0.0
        %v722 = vmax.f32 %v676, 0.0
        %v723 = vmax.f32 %v681, 0.0
        %v724 = vmax.f32 %v686, 0.0
        %v725 = vmax.f32 %v691, 0.0
        %v726 = vmax.f32 %v696, 0.0
        %v727 = vmax.f32 %v701, 0.0
        %v728 = vmax.f32 %v706, 0.0
        %v729 = vmax.f32 %v711, 0.0
        %v730 = vadd.f32 %v495, %v714
        %v731 = vadd.f32 %v496, %v715
        %v732 = vadd.f32 %v497, %v716
        %v733 = vadd.f32 %v498, %v717
        %v734 = vadd.f32 %v499, %v718
        %v735 = vadd.f32 %v500, %v719
        %v736 = vadd.f32 %v501, %v720
        %v737 = vadd.f32 %v502, %v721
        %v738 = vadd.f32 %v503, %v722
        %v739 = vadd.f32 %v504, %v723
        %v740 = vadd.f32 %v505, %v724
        %v741 = vadd.f32 %v506, %v725
        %v742 = vadd.f32 %v507, %v726
        %v743 = vadd.f32 %v508, %v727
        %v744 = vadd.f32 %v509, %v728
        %v745 = vadd.f32 %v510, %v729
        %v746 = vsel %vm520, %v730, 0.0
        %747 = vadd.xlane.f32.xlu0 %v746
        %v748 = vpop.xlane.xlu0 %747
        %v749 = vsel %vm520, %v731, 0.0
        %750 = vadd.xlane.f32.xlu0 %v749
        %v751 = vpop.xlane.xlu0 %750
        %v752 = vsel %vm520, %v732, 0.0
        %753 = vadd.xlane.f32.xlu0 %v752
        %v754 = vpop.xlane.xlu0 %753
        %v755 = vsel %vm520, %v733, 0.0
        %756 = vadd.xlane.f32.xlu0 %v755
        %v757 = vpop.xlane.xlu0 %756
        %v758 = vsel %vm520, %v734, 0.0
        %759 = vadd.xlane.f32.xlu0 %v758
        %v760 = vpop.xlane.xlu0 %759
        %v761 = vsel %vm520, %v735, 0.0
        %762 = vadd.xlane.f32.xlu0 %v761
        %v763 = vpop.xlane.xlu0 %762
        %v764 = vsel %vm520, %v736, 0.0
        %765 = vadd.xlane.f32.xlu0 %v764
        %v766 = vpop.xlane.xlu0 %765
        %v767 = vsel %vm520, %v737, 0.0
        %768 = vadd.xlane.f32.xlu0 %v767
        %v769 = vpop.xlane.xlu0 %768
        %v770 = vsel %vm520, %v738, 0.0
        %771 = vadd.xlane.f32.xlu0 %v770
        %v772 = vpop.xlane.xlu0 %771
        %v773 = vsel %vm520, %v739, 0.0
        %774 = vadd.xlane.f32.xlu0 %v773
        %v775 = vpop.xlane.xlu0 %774
        %v776 = vsel %vm520, %v740, 0.0
        %777 = vadd.xlane.f32.xlu0 %v776
        %v778 = vpop.xlane.xlu0 %777
        %v779 = vsel %vm520, %v741, 0.0
        %780 = vadd.xlane.f32.xlu0 %v779
        %v781 = vpop.xlane.xlu0 %780
        %v782 = vsel %vm520, %v742, 0.0
        %783 = vadd.xlane.f32.xlu0 %v782
        %v784 = vpop.xlane.xlu0 %783
        %v785 = vsel %vm520, %v743, 0.0
        %786 = vadd.xlane.f32.xlu0 %v785
        %v787 = vpop.xlane.xlu0 %786
        %v788 = vsel %vm520, %v744, 0.0
        %789 = vadd.xlane.f32.xlu0 %v788
        %v790 = vpop.xlane.xlu0 %789
        %v791 = vsel %vm520, %v745, 0.0
        %792 = vadd.xlane.f32.xlu0 %v791
        %v793 = vpop.xlane.xlu0 %792
        %v794 = vmul.f32 %v748, 0.03125
        %v795 = vmul.f32 %v751, 0.03125
        %v796 = vmul.f32 %v754, 0.03125
        %v797 = vmul.f32 %v757, 0.03125
        %v798 = vmul.f32 %v760, 0.03125
        %v799 = vmul.f32 %v763, 0.03125
        %v800 = vmul.f32 %v766, 0.03125
        %v801 = vmul.f32 %v769, 0.03125
        %v802 = vmul.f32 %v772, 0.03125
        %v803 = vmul.f32 %v775, 0.03125
        %v804 = vmul.f32 %v778, 0.03125
        %v805 = vmul.f32 %v781, 0.03125
        %v806 = vmul.f32 %v784, 0.03125
        %v807 = vmul.f32 %v787, 0.03125
        %v808 = vmul.f32 %v790, 0.03125
        %v809 = vmul.f32 %v793, 0.03125
        %v810 = vsub.f32 %v730, %v794
        %v811 = vsub.f32 %v731, %v795
        %v812 = vsub.f32 %v732, %v796
        %v813 = vsub.f32 %v733, %v797
        %v814 = vsub.f32 %v734, %v798
        %v815 = vsub.f32 %v735, %v799
        %v816 = vsub.f32 %v736, %v800
        %v817 = vsub.f32 %v737, %v801
        %v818 = vsub.f32 %v738, %v802
        %v819 = vsub.f32 %v739, %v803
        %v820 = vsub.f32 %v740, %v804
        %v821 = vsub.f32 %v741, %v805
        %v822 = vsub.f32 %v742, %v806
        %v823 = vsub.f32 %v743, %v807
        %v824 = vsub.f32 %v744, %v808
        %v825 = vsub.f32 %v745, %v809
        %v826 = vmul.f32 %v810, %v810
        %v827 = vmul.f32 %v811, %v811
        %v828 = vmul.f32 %v812, %v812
        %v829 = vmul.f32 %v813, %v813
        %v830 = vmul.f32 %v814, %v814
        %v831 = vmul.f32 %v815, %v815
        %v832 = vmul.f32 %v816, %v816
        %v833 = vmul.f32 %v817, %v817
        %v834 = vmul.f32 %v818, %v818
        %v835 = vmul.f32 %v819, %v819
        %v836 = vmul.f32 %v820, %v820
        %v837 = vmul.f32 %v821, %v821
        %v838 = vmul.f32 %v822, %v822
        %v839 = vmul.f32 %v823, %v823
        %v840 = vmul.f32 %v824, %v824
        %v841 = vmul.f32 %v825, %v825
        %v842 = vsel %vm520, %v826, 0.0
        %843 = vadd.xlane.f32.xlu0 %v842
        %v844 = vpop.xlane.xlu0 %843
        %v845 = vsel %vm520, %v827, 0.0
        %846 = vadd.xlane.f32.xlu0 %v845
        %v847 = vpop.xlane.xlu0 %846
        %v848 = vsel %vm520, %v828, 0.0
        %849 = vadd.xlane.f32.xlu0 %v848
        %v850 = vpop.xlane.xlu0 %849
        %v851 = vsel %vm520, %v829, 0.0
        %852 = vadd.xlane.f32.xlu0 %v851
        %v853 = vpop.xlane.xlu0 %852
        %v854 = vsel %vm520, %v830, 0.0
        %855 = vadd.xlane.f32.xlu0 %v854
        %v856 = vpop.xlane.xlu0 %855
        %v857 = vsel %vm520, %v831, 0.0
        %858 = vadd.xlane.f32.xlu0 %v857
        %v859 = vpop.xlane.xlu0 %858
        %v860 = vsel %vm520, %v832, 0.0
        %861 = vadd.xlane.f32.xlu0 %v860
        %v862 = vpop.xlane.xlu0 %861
        %v863 = vsel %vm520, %v833, 0.0
        %864 = vadd.xlane.f32.xlu0 %v863
        %v865 = vpop.xlane.xlu0 %864
        %v866 = vsel %vm520, %v834, 0.0
        %867 = vadd.xlane.f32.xlu0 %v866
        %v868 = vpop.xlane.xlu0 %867
        %v869 = vsel %vm520, %v835, 0.0
        %870 = vadd.xlane.f32.xlu0 %v869
        %v871 = vpop.xlane.xlu0 %870
        %v872 = vsel %vm520, %v836, 0.0
        %873 = vadd.xlane.f32.xlu0 %v872
        %v874 = vpop.xlane.xlu0 %873
        %v875 = vsel %vm520, %v837, 0.0
        %876 = vadd.xlane.f32.xlu0 %v875
        %v877 = vpop.xlane.xlu0 %876
        %v878 = vsel %vm520, %v838, 0.0
        %879 = vadd.xlane.f32.xlu0 %v878
        %v880 = vpop.xlane.xlu0 %879
        %v881 = vsel %vm520, %v839, 0.0
        %882 = vadd.xlane.f32.xlu0 %v881
        %v883 = vpop.xlane.xlu0 %882
        %v884 = vsel %vm520, %v840, 0.0
        %885 = vadd.xlane.f32.xlu0 %v884
        %v886 = vpop.xlane.xlu0 %885
        %v887 = vsel %vm520, %v841, 0.0
        %888 = vadd.xlane.f32.xlu0 %v887
        %v889 = vpop.xlane.xlu0 %888
        %v890 = vmul.f32 %v844, 0.03125
        %v891 = vmul.f32 %v847, 0.03125
        %v892 = vmul.f32 %v850, 0.03125
        %v893 = vmul.f32 %v853, 0.03125
        %v894 = vmul.f32 %v856, 0.03125
        %v895 = vmul.f32 %v859, 0.03125
        %v896 = vmul.f32 %v862, 0.03125
        %v897 = vmul.f32 %v865, 0.03125
        %v898 = vmul.f32 %v868, 0.03125
        %v899 = vmul.f32 %v871, 0.03125
        %v900 = vmul.f32 %v874, 0.03125
        %v901 = vmul.f32 %v877, 0.03125
        %v902 = vmul.f32 %v880, 0.03125
        %v903 = vmul.f32 %v883, 0.03125
        %v904 = vmul.f32 %v886, 0.03125
        %v905 = vmul.f32 %v889, 0.03125
        %v906 = vadd.f32 %v890, 1e-05
        %v907 = vadd.f32 %v891, 1e-05
        %v908 = vadd.f32 %v892, 1e-05
        %v909 = vadd.f32 %v893, 1e-05
        %v910 = vadd.f32 %v894, 1e-05
        %v911 = vadd.f32 %v895, 1e-05
        %v912 = vadd.f32 %v896, 1e-05
        %v913 = vadd.f32 %v897, 1e-05
        %v914 = vadd.f32 %v898, 1e-05
        %v915 = vadd.f32 %v899, 1e-05
        %v916 = vadd.f32 %v900, 1e-05
        %v917 = vadd.f32 %v901, 1e-05
        %v918 = vadd.f32 %v902, 1e-05
        %v919 = vadd.f32 %v903, 1e-05
        %v920 = vadd.f32 %v904, 1e-05
        %v921 = vadd.f32 %v905, 1e-05
        %v922 = vrsqrt.pop %v906
        %v923 = vrsqrt.pop %v907
        %v924 = vrsqrt.pop %v908
        %v925 = vrsqrt.pop %v909
        %v926 = vrsqrt.pop %v910
        %v927 = vrsqrt.pop %v911
        %v928 = vrsqrt.pop %v912
        %v929 = vrsqrt.pop %v913
        %v930 = vrsqrt.pop %v914
        %v931 = vrsqrt.pop %v915
        %v932 = vrsqrt.pop %v916
        %v933 = vrsqrt.pop %v917
        %v934 = vrsqrt.pop %v918
        %v935 = vrsqrt.pop %v919
        %v936 = vrsqrt.pop %v920
        %v937 = vrsqrt.pop %v921
        %v938 = vmul.f32 %v810, %v922
        %v939 = vmul.f32 %v811, %v923
        %v940 = vmul.f32 %v812, %v924
        %v941 = vmul.f32 %v813, %v925
        %v942 = vmul.f32 %v814, %v926
        %v943 = vmul.f32 %v815, %v927
        %v944 = vmul.f32 %v816, %v928
        %v945 = vmul.f32 %v817, %v929
        %v946 = vmul.f32 %v818, %v930
        %v947 = vmul.f32 %v819, %v931
        %v948 = vmul.f32 %v820, %v932
        %v949 = vmul.f32 %v821, %v933
        %v950 = vmul.f32 %v822, %v934
        %v951 = vmul.f32 %v823, %v935
        %v952 = vmul.f32 %v824, %v936
        %v953 = vmul.f32 %v825, %v937
        %v954 = vlaneseq
        %v955 = vshrl.u32 %v954, 7
        %v956 = vsub.s32 1, %v955
        %v957 = vrot.slane %v511, %v956
        %v958 = vmul.f32 %v938, %v957
        %v959 = vmul.f32 %v939, %v957
        %v960 = vmul.f32 %v940, %v957
        %v961 = vmul.f32 %v941, %v957
        %v962 = vmul.f32 %v942, %v957
        %v963 = vmul.f32 %v943, %v957
        %v964 = vmul.f32 %v944, %v957
        %v965 = vmul.f32 %v945, %v957
        %v966 = vmul.f32 %v946, %v957
        %v967 = vmul.f32 %v947, %v957
        %v968 = vmul.f32 %v948, %v957
        %v969 = vmul.f32 %v949, %v957
        %v970 = vmul.f32 %v950, %v957
        %v971 = vmul.f32 %v951, %v957
        %v972 = vmul.f32 %v952, %v957
        %v973 = vmul.f32 %v953, %v957
        %v974 = vlaneseq
        %v975 = vshrl.u32 %v974, 7
        %v976 = vsub.s32 2, %v975
        %v977 = vrot.slane %v511, %v976
        %v978 = vadd.f32 %v958, %v977
        %v979 = vadd.f32 %v959, %v977
        %v980 = vadd.f32 %v960, %v977
        %v981 = vadd.f32 %v961, %v977
        %v982 = vadd.f32 %v962, %v977
        %v983 = vadd.f32 %v963, %v977
        %v984 = vadd.f32 %v964, %v977
        %v985 = vadd.f32 %v965, %v977
        %v986 = vadd.f32 %v966, %v977
        %v987 = vadd.f32 %v967, %v977
        %v988 = vadd.f32 %v968, %v977
        %v989 = vadd.f32 %v969, %v977
        %v990 = vadd.f32 %v970, %v977
        %v991 = vadd.f32 %v971, %v977
        %v992 = vadd.f32 %v972, %v977
        %v993 = vadd.f32 %v973, %v977
        %v994 = vld [vmem:[#allocation10] sm:$0x1f]
        %v995 = vld [vmem:[#allocation7] sm:$0x3f]
        %996 = vrot.lane.b32.xlu0 %v495, 96
        %v997 = vpop.permute.xlu0 %996
        %998 = vrot.lane.b32.xlu0 %v496, 96
        %v999 = vpop.permute.xlu0 %998
        %1000 = vrot.lane.b32.xlu0 %v497, 96
        %v1001 = vpop.permute.xlu0 %1000
        %1002 = vrot.lane.b32.xlu0 %v498, 96
        %v1003 = vpop.permute.xlu0 %1002
        %1004 = vrot.lane.b32.xlu0 %v499, 96
        %v1005 = vpop.permute.xlu0 %1004
        %1006 = vrot.lane.b32.xlu0 %v500, 96
        %v1007 = vpop.permute.xlu0 %1006
        %1008 = vrot.lane.b32.xlu0 %v501, 96
        %v1009 = vpop.permute.xlu0 %1008
        %1010 = vrot.lane.b32.xlu0 %v502, 96
        %v1011 = vpop.permute.xlu0 %1010
        %1012 = vrot.lane.b32.xlu0 %v503, 96
        %v1013 = vpop.permute.xlu0 %1012
        %1014 = vrot.lane.b32.xlu0 %v504, 96
        %v1015 = vpop.permute.xlu0 %1014
        %1016 = vrot.lane.b32.xlu0 %v505, 96
        %v1017 = vpop.permute.xlu0 %1016
        %1018 = vrot.lane.b32.xlu0 %v506, 96
        %v1019 = vpop.permute.xlu0 %1018
        %1020 = vrot.lane.b32.xlu0 %v507, 96
        %v1021 = vpop.permute.xlu0 %1020
        %1022 = vrot.lane.b32.xlu0 %v508, 96
        %v1023 = vpop.permute.xlu0 %1022
        %1024 = vrot.lane.b32.xlu0 %v509, 96
        %v1025 = vpop.permute.xlu0 %1024
        %1026 = vrot.lane.b32.xlu0 %v510, 96
        %v1027 = vpop.permute.xlu0 %1026
        %vm1028 = vcmask 48128
        %v1029 = vsel %vm1028, %v997, 0
        %v1031 = vsel %vm1028, %v999, 0
        %v1033 = vsel %vm1028, %v1001, 0
        %v1035 = vsel %vm1028, %v1003, 0
        %v1037 = vsel %vm1028, %v1005, 0
        %v1039 = vsel %vm1028, %v1007, 0
        %v1041 = vsel %vm1028, %v1009, 0
        %v1043 = vsel %vm1028, %v1011, 0
        %v1045 = vsel %vm1028, %v1013, 0
        %v1047 = vsel %vm1028, %v1015, 0
        %v1049 = vsel %vm1028, %v1017, 0
        %v1051 = vsel %vm1028, %v1019, 0
        %v1053 = vsel %vm1028, %v1021, 0
        %v1055 = vsel %vm1028, %v1023, 0
        %v1057 = vsel %vm1028, %v1025, 0
        %v1059 = vsel %vm1028, %v1027, 0
        %vm1061 = vcmask 1045504
        %v1063 = vsel %vm1061, %v995, 0
        %1065 = vmatprep.subr.mxu0 0.0
        %1066 = vmatpush1.msra.mxu0 0.0
        %1067 = vmatprep.subr.mxu0 0.0
        %1068 = vmatpush1.msra.mxu0 0.0
        %1069 = vmatprep.subr.mxu0 0.0
        %1070 = vmatpush1.msra.mxu0 0.0
        %1071 = vmatprep.subr.mxu0 0.0
        %1072 = vmatpush1.msra.mxu0 0.0
        %1073 = vmatprep.subr.mxu0 0.0
        %1074 = vmatpush1.msra.mxu0 0.0
        %1075 = vmatprep.subr.mxu0 0.0
        %1076 = vmatpush1.msra.mxu0 0.0
        %1077 = vmatprep.subr.mxu0 0.0
        %1078 = vmatpush1.msra.mxu0 0.0
        %1079 = vmatprep.subr.mxu0 0.0
        %1080 = vmatpush1.msra.mxu0 0.0
        %1081 = vmatprep.subr.mxu0 0.0
        %1082 = vmatpush1.msra.mxu0 0.0
        %1083 = vmatprep.subr.mxu0 0.0
        %1084 = vmatpush1.msra.mxu0 0.0
        %1085 = vmatprep.subr.mxu0 0.0
        %1086 = vmatpush1.msra.mxu0 0.0
        %1087 = vmatprep.subr.mxu0 0.0
        %1088 = vmatpush1.msra.mxu0 0.0
        %1089 = vmatprep.subr.mxu0 0.0
        %1090 = vmatpush1.msra.mxu0 0.0
        %1091 = vmatprep.subr.mxu0 0.0
        %1092 = vmatpush1.msra.mxu0 0.0
        %1093 = vmatprep.subr.mxu0 0.0
        %1094 = vmatpush1.msra.mxu0 0.0
        %1095 = vmatprep.subr.mxu0 0.0
        %1096 = vmatpush1.msra.mxu0 %v1063
        %1097 = vmatprep.subr.mxu0 0.0
        %1098 = vmatpush2.msra.mxu0 0.0
        %1099 = vmatprep.subr.mxu0 0.0
        %1100 = vmatpush2.msra.mxu0 0.0
        %1101 = vmatprep.subr.mxu0 0.0
        %1102 = vmatpush2.msra.mxu0 0.0
        %1103 = vmatprep.subr.mxu0 0.0
        %1104 = vmatpush2.msra.mxu0 0.0
        %1105 = vmatprep.subr.mxu0 0.0
        %1106 = vmatpush2.msra.mxu0 0.0
        %1107 = vmatprep.subr.mxu0 0.0
        %1108 = vmatpush2.msra.mxu0 0.0
        %1109 = vmatprep.subr.mxu0 0.0
        %1110 = vmatpush2.msra.mxu0 0.0
        %1111 = vmatprep.subr.mxu0 0.0
        %1112 = vmatpush2.msra.mxu0 0.0
        %1113 = vmatprep.subr.mxu0 0.0
        %1114 = vmatpush2.msra.mxu0 0.0
        %1115 = vmatprep.subr.mxu0 0.0
        %1116 = vmatpush2.msra.mxu0 0.0
        %1117 = vmatprep.subr.mxu0 0.0
        %1118 = vmatpush2.msra.mxu0 0.0
        %1119 = vmatprep.subr.mxu0 0.0
        %1120 = vmatpush2.msra.mxu0 0.0
        %1121 = vmatprep.subr.mxu0 0.0
        %1122 = vmatpush2.msra.mxu0 0.0
        %1123 = vmatprep.subr.mxu0 0.0
        %1124 = vmatpush2.msra.mxu0 0.0
        %1125 = vmatprep.subr.mxu0 0.0
        %1126 = vmatpush2.msra.mxu0 0.0
        %1127 = vmatprep.subr.mxu0 0.0
        %1128 = vmatpush2.msra.mxu0 0.0
        %1129 = vmatprep.mubr.f32.mxu0 0.0
        %1130 = vmatmul.mubr.f32.gmra.mxu0 %v1029
        %v1131 = vpop.f32.mrf.mxu0
        %v1132 = vadd.f32 0.0, %v1131
        %v1133 = vpop.f32.mrf.mxu0
        %1134 = vmatprep.mubr.f32.mxu0 0.0
        %1135 = vmatmul.mubr.f32.gmra.mxu0 %v1031
        %v1136 = vpop.f32.mrf.mxu0
        %v1137 = vadd.f32 0.0, %v1136
        %v1138 = vpop.f32.mrf.mxu0
        %1139 = vmatprep.mubr.f32.mxu0 0.0
        %1140 = vmatmul.mubr.f32.gmra.mxu0 %v1033
        %v1141 = vpop.f32.mrf.mxu0
        %v1142 = vadd.f32 0.0, %v1141
        %v1143 = vpop.f32.mrf.mxu0
        %1144 = vmatprep.mubr.f32.mxu0 0.0
        %1145 = vmatmul.mubr.f32.gmra.mxu0 %v1035
        %v1146 = vpop.f32.mrf.mxu0
        %v1147 = vadd.f32 0.0, %v1146
        %v1148 = vpop.f32.mrf.mxu0
        %1149 = vmatprep.mubr.f32.mxu0 0.0
        %1150 = vmatmul.mubr.f32.gmra.mxu0 %v1037
        %v1151 = vpop.f32.mrf.mxu0
        %v1152 = vadd.f32 0.0, %v1151
        %v1153 = vpop.f32.mrf.mxu0
        %1154 = vmatprep.mubr.f32.mxu0 0.0
        %1155 = vmatmul.mubr.f32.gmra.mxu0 %v1039
        %v1156 = vpop.f32.mrf.mxu0
        %v1157 = vadd.f32 0.0, %v1156
        %v1158 = vpop.f32.mrf.mxu0
        %1159 = vmatprep.mubr.f32.mxu0 0.0
        %1160 = vmatmul.mubr.f32.gmra.mxu0 %v1041
        %v1161 = vpop.f32.mrf.mxu0
        %v1162 = vadd.f32 0.0, %v1161
        %v1163 = vpop.f32.mrf.mxu0
        %1164 = vmatprep.mubr.f32.mxu0 0.0
        %1165 = vmatmul.mubr.f32.gmra.mxu0 %v1043
        %v1166 = vpop.f32.mrf.mxu0
        %v1167 = vadd.f32 0.0, %v1166
        %v1168 = vpop.f32.mrf.mxu0
        %1169 = vmatprep.mubr.f32.mxu0 0.0
        %1170 = vmatmul.mubr.f32.gmra.mxu0 %v1045
        %v1171 = vpop.f32.mrf.mxu0
        %v1172 = vadd.f32 0.0, %v1171
        %v1173 = vpop.f32.mrf.mxu0
        %1174 = vmatprep.mubr.f32.mxu0 0.0
        %1175 = vmatmul.mubr.f32.gmra.mxu0 %v1047
        %v1176 = vpop.f32.mrf.mxu0
        %v1177 = vadd.f32 0.0, %v1176
        %v1178 = vpop.f32.mrf.mxu0
        %1179 = vmatprep.mubr.f32.mxu0 0.0
        %1180 = vmatmul.mubr.f32.gmra.mxu0 %v1049
        %v1181 = vpop.f32.mrf.mxu0
        %v1182 = vadd.f32 0.0, %v1181
        %v1183 = vpop.f32.mrf.mxu0
        %1184 = vmatprep.mubr.f32.mxu0 0.0
        %1185 = vmatmul.mubr.f32.gmra.mxu0 %v1051
        %v1186 = vpop.f32.mrf.mxu0
        %v1187 = vadd.f32 0.0, %v1186
        %v1188 = vpop.f32.mrf.mxu0
        %1189 = vmatprep.mubr.f32.mxu0 0.0
        %1190 = vmatmul.mubr.f32.gmra.mxu0 %v1053
        %v1191 = vpop.f32.mrf.mxu0
        %v1192 = vadd.f32 0.0, %v1191
        %v1193 = vpop.f32.mrf.mxu0
        %1194 = vmatprep.mubr.f32.mxu0 0.0
        %1195 = vmatmul.mubr.f32.gmra.mxu0 %v1055
        %v1196 = vpop.f32.mrf.mxu0
        %v1197 = vadd.f32 0.0, %v1196
        %v1198 = vpop.f32.mrf.mxu0
        %1199 = vmatprep.mubr.f32.mxu0 0.0
        %1200 = vmatmul.mubr.f32.gmra.mxu0 %v1057
        %v1201 = vpop.f32.mrf.mxu0
        %v1202 = vadd.f32 0.0, %v1201
        %v1203 = vpop.f32.mrf.mxu0
        %1204 = vmatprep.mubr.f32.mxu0 0.0
        %1205 = vmatmul.mubr.f32.gmra.mxu0 %v1059
        %v1206 = vpop.f32.mrf.mxu0
        %v1207 = vadd.f32 0.0, %v1206
        %v1208 = vpop.f32.mrf.mxu0
        %1209 = vdwg.mxu0
        %v1210 = vlaneseq
        %v1211 = vshrl.u32 %v1210, 7
        %v1212 = vsub.s32 0, %v1211
        %v1213 = vrot.slane %v994, %v1212
        %v1214 = vadd.f32 %v1132, %v1213
        %v1215 = vadd.f32 %v1137, %v1213
        %v1216 = vadd.f32 %v1142, %v1213
        %v1217 = vadd.f32 %v1147, %v1213
        %v1218 = vadd.f32 %v1152, %v1213
        %v1219 = vadd.f32 %v1157, %v1213
        %v1220 = vadd.f32 %v1162, %v1213
        %v1221 = vadd.f32 %v1167, %v1213
        %v1222 = vadd.f32 %v1172, %v1213
        %v1223 = vadd.f32 %v1177, %v1213
        %v1224 = vadd.f32 %v1182, %v1213
        %v1225 = vadd.f32 %v1187, %v1213
        %v1226 = vadd.f32 %v1192, %v1213
        %v1227 = vadd.f32 %v1197, %v1213
        %v1228 = vadd.f32 %v1202, %v1213
        %v1229 = vadd.f32 %v1207, %v1213
        %v1230 = vlaneseq
        %v1231 = vshrl.u32 %v1230, 7
        %v1232 = vsub.s32 1, %v1231
        %v1233 = vrot.slane %v994, %v1232
        %1235 = vrot.lane.b32.xlu0 %v1233, 32
        %v1236 = vpop.permute.xlu0 %1235
        %v1238 = vadd.f32 %v1132, %v1236
        %v1239 = vadd.f32 %v1137, %v1236
        %v1240 = vadd.f32 %v1142, %v1236
        %v1241 = vadd.f32 %v1147, %v1236
        %v1242 = vadd.f32 %v1152, %v1236
        %v1243 = vadd.f32 %v1157, %v1236
        %v1244 = vadd.f32 %v1162, %v1236
        %v1245 = vadd.f32 %v1167, %v1236
        %v1246 = vadd.f32 %v1172, %v1236
        %v1247 = vadd.f32 %v1177, %v1236
        %v1248 = vadd.f32 %v1182, %v1236
        %v1249 = vadd.f32 %v1187, %v1236
        %v1250 = vadd.f32 %v1192, %v1236
        %v1251 = vadd.f32 %v1197, %v1236
        %v1252 = vadd.f32 %v1202, %v1236
        %v1253 = vadd.f32 %v1207, %v1236
        %v1254 = vmax.f32 %v1238, 0.0
        %v1255 = vmax.f32 %v1239, 0.0
        %v1256 = vmax.f32 %v1240, 0.0
        %v1257 = vmax.f32 %v1241, 0.0
        %v1258 = vmax.f32 %v1242, 0.0
        %v1259 = vmax.f32 %v1243, 0.0
        %v1260 = vmax.f32 %v1244, 0.0
        %v1261 = vmax.f32 %v1245, 0.0
        %v1262 = vmax.f32 %v1246, 0.0
        %v1263 = vmax.f32 %v1247, 0.0
        %v1264 = vmax.f32 %v1248, 0.0
        %v1265 = vmax.f32 %v1249, 0.0
        %v1266 = vmax.f32 %v1250, 0.0
        %v1267 = vmax.f32 %v1251, 0.0
        %v1268 = vmax.f32 %v1252, 0.0
        %v1269 = vmax.f32 %v1253, 0.0
        %v1270 = vld [vmem:[#allocation8] sm:$0xff]
        %v1271 = vld [vmem:[#allocation8 + $0x8] sm:$0xff]
        %v1272 = vld [vmem:[#allocation8 + $0x10] sm:$0xff]
        %v1273 = vld [vmem:[#allocation8 + $0x18] sm:$0xff]
        %1290 = vrot.lane.b32.xlu0 %v1254, 96
        %v1291 = vpop.permute.xlu0 %1290
        %1292 = vrot.lane.b32.xlu0 %v1255, 96
        %v1293 = vpop.permute.xlu0 %1292
        %1294 = vrot.lane.b32.xlu0 %v1256, 96
        %v1295 = vpop.permute.xlu0 %1294
        %1296 = vrot.lane.b32.xlu0 %v1257, 96
        %v1297 = vpop.permute.xlu0 %1296
        %1298 = vrot.lane.b32.xlu0 %v1258, 96
        %v1299 = vpop.permute.xlu0 %1298
        %1300 = vrot.lane.b32.xlu0 %v1259, 96
        %v1301 = vpop.permute.xlu0 %1300
        %1302 = vrot.lane.b32.xlu0 %v1260, 96
        %v1303 = vpop.permute.xlu0 %1302
        %1304 = vrot.lane.b32.xlu0 %v1261, 96
        %v1305 = vpop.permute.xlu0 %1304
        %1306 = vrot.lane.b32.xlu0 %v1262, 96
        %v1307 = vpop.permute.xlu0 %1306
        %1308 = vrot.lane.b32.xlu0 %v1263, 96
        %v1309 = vpop.permute.xlu0 %1308
        %1310 = vrot.lane.b32.xlu0 %v1264, 96
        %v1311 = vpop.permute.xlu0 %1310
        %1312 = vrot.lane.b32.xlu0 %v1265, 96
        %v1313 = vpop.permute.xlu0 %1312
        %1314 = vrot.lane.b32.xlu0 %v1266, 96
        %v1315 = vpop.permute.xlu0 %1314
        %1316 = vrot.lane.b32.xlu0 %v1267, 96
        %v1317 = vpop.permute.xlu0 %1316
        %1318 = vrot.lane.b32.xlu0 %v1268, 96
        %v1319 = vpop.permute.xlu0 %1318
        %1320 = vrot.lane.b32.xlu0 %v1269, 96
        %v1321 = vpop.permute.xlu0 %1320
        %v1322 = vsel %vm520, %v1291, 0
        %v1324 = vsel %vm520, %v1293, 0
        %v1326 = vsel %vm520, %v1295, 0
        %v1328 = vsel %vm520, %v1297, 0
        %v1330 = vsel %vm520, %v1299, 0
        %v1332 = vsel %vm520, %v1301, 0
        %v1334 = vsel %vm520, %v1303, 0
        %v1336 = vsel %vm520, %v1305, 0
        %v1338 = vsel %vm520, %v1307, 0
        %v1340 = vsel %vm520, %v1309, 0
        %v1342 = vsel %vm520, %v1311, 0
        %v1344 = vsel %vm520, %v1313, 0
        %v1346 = vsel %vm520, %v1315, 0
        %v1348 = vsel %vm520, %v1317, 0
        %v1350 = vsel %vm520, %v1319, 0
        %v1352 = vsel %vm520, %v1321, 0
        %1354 = vmatprep.subr.mxu0 0.0
        %1355 = vmatpush1.msra.mxu0 0.0
        %1356 = vmatprep.subr.mxu0 0.0
        %1357 = vmatpush1.msra.mxu0 0.0
        %1358 = vmatprep.subr.mxu0 0.0
        %1359 = vmatpush1.msra.mxu0 0.0
        %1360 = vmatprep.subr.mxu0 0.0
        %1361 = vmatpush1.msra.mxu0 0.0
        %1362 = vmatprep.subr.mxu0 0.0
        %1363 = vmatpush1.msra.mxu0 0.0
        %1364 = vmatprep.subr.mxu0 0.0
        %1365 = vmatpush1.msra.mxu0 0.0
        %1366 = vmatprep.subr.mxu0 0.0
        %1367 = vmatpush1.msra.mxu0 0.0
        %1368 = vmatprep.subr.mxu0 0.0
        %1369 = vmatpush1.msra.mxu0 0.0
        %1370 = vmatprep.subr.mxu0 0.0
        %1371 = vmatpush1.msra.mxu0 0.0
        %1372 = vmatprep.subr.mxu0 0.0
        %1373 = vmatpush1.msra.mxu0 0.0
        %1374 = vmatprep.subr.mxu0 0.0
        %1375 = vmatpush1.msra.mxu0 0.0
        %1376 = vmatprep.subr.mxu0 0.0
        %1377 = vmatpush1.msra.mxu0 0.0
        %1378 = vmatprep.subr.mxu0 0.0
        %1379 = vmatpush1.msra.mxu0 %v1273
        %1380 = vmatprep.subr.mxu0 0.0
        %1381 = vmatpush1.msra.mxu0 %v1272
        %1382 = vmatprep.subr.mxu0 0.0
        %1383 = vmatpush1.msra.mxu0 %v1271
        %1384 = vmatprep.subr.mxu0 0.0
        %1385 = vmatpush1.msra.mxu0 %v1270
        %1386 = vmatprep.subr.mxu0 0.0
        %1387 = vmatpush2.msra.mxu0 0.0
        %1388 = vmatprep.subr.mxu0 0.0
        %1389 = vmatpush2.msra.mxu0 0.0
        %1390 = vmatprep.subr.mxu0 0.0
        %1391 = vmatpush2.msra.mxu0 0.0
        %1392 = vmatprep.subr.mxu0 0.0
        %1393 = vmatpush2.msra.mxu0 0.0
        %1394 = vmatprep.subr.mxu0 0.0
        %1395 = vmatpush2.msra.mxu0 0.0
        %1396 = vmatprep.subr.mxu0 0.0
        %1397 = vmatpush2.msra.mxu0 0.0
        %1398 = vmatprep.subr.mxu0 0.0
        %1399 = vmatpush2.msra.mxu0 0.0
        %1400 = vmatprep.subr.mxu0 0.0
        %1401 = vmatpush2.msra.mxu0 0.0
        %1402 = vmatprep.subr.mxu0 0.0
        %1403 = vmatpush2.msra.mxu0 0.0
        %1404 = vmatprep.subr.mxu0 0.0
        %1405 = vmatpush2.msra.mxu0 0.0
        %1406 = vmatprep.subr.mxu0 0.0
        %1407 = vmatpush2.msra.mxu0 0.0
        %1408 = vmatprep.subr.mxu0 0.0
        %1409 = vmatpush2.msra.mxu0 0.0
        %1410 = vmatprep.subr.mxu0 0.0
        %1411 = vmatpush2.msra.mxu0 0.0
        %1412 = vmatprep.subr.mxu0 0.0
        %1413 = vmatpush2.msra.mxu0 0.0
        %1414 = vmatprep.subr.mxu0 0.0
        %1415 = vmatpush2.msra.mxu0 0.0
        %1416 = vmatprep.subr.mxu0 0.0
        %1417 = vmatpush2.msra.mxu0 0.0
        %1418 = vmatprep.mubr.f32.mxu0 0.0
        %1419 = vmatmul.mubr.f32.gmra.mxu0 %v1322
        %v1420 = vpop.f32.mrf.mxu0
        %v1421 = vadd.f32 0.0, %v1420
        %v1422 = vpop.f32.mrf.mxu0
        %1423 = vmatprep.mubr.f32.mxu0 0.0
        %1424 = vmatmul.mubr.f32.gmra.mxu0 %v1324
        %v1425 = vpop.f32.mrf.mxu0
        %v1426 = vadd.f32 0.0, %v1425
        %v1427 = vpop.f32.mrf.mxu0
        %1428 = vmatprep.mubr.f32.mxu0 0.0
        %1429 = vmatmul.mubr.f32.gmra.mxu0 %v1326
        %v1430 = vpop.f32.mrf.mxu0
        %v1431 = vadd.f32 0.0, %v1430
        %v1432 = vpop.f32.mrf.mxu0
        %1433 = vmatprep.mubr.f32.mxu0 0.0
        %1434 = vmatmul.mubr.f32.gmra.mxu0 %v1328
        %v1435 = vpop.f32.mrf.mxu0
        %v1436 = vadd.f32 0.0, %v1435
        %v1437 = vpop.f32.mrf.mxu0
        %1438 = vmatprep.mubr.f32.mxu0 0.0
        %1439 = vmatmul.mubr.f32.gmra.mxu0 %v1330
        %v1440 = vpop.f32.mrf.mxu0
        %v1441 = vadd.f32 0.0, %v1440
        %v1442 = vpop.f32.mrf.mxu0
        %1443 = vmatprep.mubr.f32.mxu0 0.0
        %1444 = vmatmul.mubr.f32.gmra.mxu0 %v1332
        %v1445 = vpop.f32.mrf.mxu0
        %v1446 = vadd.f32 0.0, %v1445
        %v1447 = vpop.f32.mrf.mxu0
        %1448 = vmatprep.mubr.f32.mxu0 0.0
        %1449 = vmatmul.mubr.f32.gmra.mxu0 %v1334
        %v1450 = vpop.f32.mrf.mxu0
        %v1451 = vadd.f32 0.0, %v1450
        %v1452 = vpop.f32.mrf.mxu0
        %1453 = vmatprep.mubr.f32.mxu0 0.0
        %1454 = vmatmul.mubr.f32.gmra.mxu0 %v1336
        %v1455 = vpop.f32.mrf.mxu0
        %v1456 = vadd.f32 0.0, %v1455
        %v1457 = vpop.f32.mrf.mxu0
        %1458 = vmatprep.mubr.f32.mxu0 0.0
        %1459 = vmatmul.mubr.f32.gmra.mxu0 %v1338
        %v1460 = vpop.f32.mrf.mxu0
        %v1461 = vadd.f32 0.0, %v1460
        %v1462 = vpop.f32.mrf.mxu0
        %1463 = vmatprep.mubr.f32.mxu0 0.0
        %1464 = vmatmul.mubr.f32.gmra.mxu0 %v1340
        %v1465 = vpop.f32.mrf.mxu0
        %v1466 = vadd.f32 0.0, %v1465
        %v1467 = vpop.f32.mrf.mxu0
        %1468 = vmatprep.mubr.f32.mxu0 0.0
        %1469 = vmatmul.mubr.f32.gmra.mxu0 %v1342
        %v1470 = vpop.f32.mrf.mxu0
        %v1471 = vadd.f32 0.0, %v1470
        %v1472 = vpop.f32.mrf.mxu0
        %1473 = vmatprep.mubr.f32.mxu0 0.0
        %1474 = vmatmul.mubr.f32.gmra.mxu0 %v1344
        %v1475 = vpop.f32.mrf.mxu0
        %v1476 = vadd.f32 0.0, %v1475
        %v1477 = vpop.f32.mrf.mxu0
        %1478 = vmatprep.mubr.f32.mxu0 0.0
        %1479 = vmatmul.mubr.f32.gmra.mxu0 %v1346
        %v1480 = vpop.f32.mrf.mxu0
        %v1481 = vadd.f32 0.0, %v1480
        %v1482 = vpop.f32.mrf.mxu0
        %1483 = vmatprep.mubr.f32.mxu0 0.0
        %1484 = vmatmul.mubr.f32.gmra.mxu0 %v1348
        %v1485 = vpop.f32.mrf.mxu0
        %v1486 = vadd.f32 0.0, %v1485
        %v1487 = vpop.f32.mrf.mxu0
        %1488 = vmatprep.mubr.f32.mxu0 0.0
        %1489 = vmatmul.mubr.f32.gmra.mxu0 %v1350
        %v1490 = vpop.f32.mrf.mxu0
        %v1491 = vadd.f32 0.0, %v1490
        %v1492 = vpop.f32.mrf.mxu0
        %1493 = vmatprep.mubr.f32.mxu0 0.0
        %1494 = vmatmul.mubr.f32.gmra.mxu0 %v1352
        %v1495 = vpop.f32.mrf.mxu0
        %v1496 = vadd.f32 0.0, %v1495
        %v1497 = vpop.f32.mrf.mxu0
        %1498 = vdwg.mxu0
        %v1499 = vadd.f32 %v1214, %v1421
        %v1500 = vadd.f32 %v1215, %v1426
        %v1501 = vadd.f32 %v1216, %v1431
        %v1502 = vadd.f32 %v1217, %v1436
        %v1503 = vadd.f32 %v1218, %v1441
        %v1504 = vadd.f32 %v1219, %v1446
        %v1505 = vadd.f32 %v1220, %v1451
        %v1506 = vadd.f32 %v1221, %v1456
        %v1507 = vadd.f32 %v1222, %v1461
        %v1508 = vadd.f32 %v1223, %v1466
        %v1509 = vadd.f32 %v1224, %v1471
        %v1510 = vadd.f32 %v1225, %v1476
        %v1511 = vadd.f32 %v1226, %v1481
        %v1512 = vadd.f32 %v1227, %v1486
        %v1513 = vadd.f32 %v1228, %v1491
        %v1514 = vadd.f32 %v1229, %v1496
        %v1515 = vlaneseq
        %v1516 = vshrl.u32 %v1515, 7
        %v1517 = vsub.s32 2, %v1516
        %v1518 = vrot.slane %v994, %v1517
        %v1519 = vadd.f32 %v1499, %v1518
        %v1520 = vadd.f32 %v1500, %v1518
        %v1521 = vadd.f32 %v1501, %v1518
        %v1522 = vadd.f32 %v1502, %v1518
        %v1523 = vadd.f32 %v1503, %v1518
        %v1524 = vadd.f32 %v1504, %v1518
        %v1525 = vadd.f32 %v1505, %v1518
        %v1526 = vadd.f32 %v1506, %v1518
        %v1527 = vadd.f32 %v1507, %v1518
        %v1528 = vadd.f32 %v1508, %v1518
        %v1529 = vadd.f32 %v1509, %v1518
        %v1530 = vadd.f32 %v1510, %v1518
        %v1531 = vadd.f32 %v1511, %v1518
        %v1532 = vadd.f32 %v1512, %v1518
        %v1533 = vadd.f32 %v1513, %v1518
        %v1534 = vadd.f32 %v1514, %v1518
        %v1535 = vsel %vm520, %v1519, 0.0
        %1536 = vadd.xlane.f32.xlu0 %v1535
        %v1537 = vpop.xlane.xlu0 %1536
        %v1538 = vsel %vm520, %v1520, 0.0
        %1539 = vadd.xlane.f32.xlu0 %v1538
        %v1540 = vpop.xlane.xlu0 %1539
        %v1541 = vsel %vm520, %v1521, 0.0
        %1542 = vadd.xlane.f32.xlu0 %v1541
        %v1543 = vpop.xlane.xlu0 %1542
        %v1544 = vsel %vm520, %v1522, 0.0
        %1545 = vadd.xlane.f32.xlu0 %v1544
        %v1546 = vpop.xlane.xlu0 %1545
        %v1547 = vsel %vm520, %v1523, 0.0
        %1548 = vadd.xlane.f32.xlu0 %v1547
        %v1549 = vpop.xlane.xlu0 %1548
        %v1550 = vsel %vm520, %v1524, 0.0
        %1551 = vadd.xlane.f32.xlu0 %v1550
        %v1552 = vpop.xlane.xlu0 %1551
        %v1553 = vsel %vm520, %v1525, 0.0
        %1554 = vadd.xlane.f32.xlu0 %v1553
        %v1555 = vpop.xlane.xlu0 %1554
        %v1556 = vsel %vm520, %v1526, 0.0
        %1557 = vadd.xlane.f32.xlu0 %v1556
        %v1558 = vpop.xlane.xlu0 %1557
        %v1559 = vsel %vm520, %v1527, 0.0
        %1560 = vadd.xlane.f32.xlu0 %v1559
        %v1561 = vpop.xlane.xlu0 %1560
        %v1562 = vsel %vm520, %v1528, 0.0
        %1563 = vadd.xlane.f32.xlu0 %v1562
        %v1564 = vpop.xlane.xlu0 %1563
        %v1565 = vsel %vm520, %v1529, 0.0
        %1566 = vadd.xlane.f32.xlu0 %v1565
        %v1567 = vpop.xlane.xlu0 %1566
        %v1568 = vsel %vm520, %v1530, 0.0
        %1569 = vadd.xlane.f32.xlu0 %v1568
        %v1570 = vpop.xlane.xlu0 %1569
        %v1571 = vsel %vm520, %v1531, 0.0
        %1572 = vadd.xlane.f32.xlu0 %v1571
        %v1573 = vpop.xlane.xlu0 %1572
        %v1574 = vsel %vm520, %v1532, 0.0
        %1575 = vadd.xlane.f32.xlu0 %v1574
        %v1576 = vpop.xlane.xlu0 %1575
        %v1577 = vsel %vm520, %v1533, 0.0
        %1578 = vadd.xlane.f32.xlu0 %v1577
        %v1579 = vpop.xlane.xlu0 %1578
        %v1580 = vsel %vm520, %v1534, 0.0
        %1581 = vadd.xlane.f32.xlu0 %v1580
        %v1582 = vpop.xlane.xlu0 %1581
        %v1583 = vmul.f32 %v1537, 0.03125
        %v1584 = vmul.f32 %v1540, 0.03125
        %v1585 = vmul.f32 %v1543, 0.03125
        %v1586 = vmul.f32 %v1546, 0.03125
        %v1587 = vmul.f32 %v1549, 0.03125
        %v1588 = vmul.f32 %v1552, 0.03125
        %v1589 = vmul.f32 %v1555, 0.03125
        %v1590 = vmul.f32 %v1558, 0.03125
        %v1591 = vmul.f32 %v1561, 0.03125
        %v1592 = vmul.f32 %v1564, 0.03125
        %v1593 = vmul.f32 %v1567, 0.03125
        %v1594 = vmul.f32 %v1570, 0.03125
        %v1595 = vmul.f32 %v1573, 0.03125
        %v1596 = vmul.f32 %v1576, 0.03125
        %v1597 = vmul.f32 %v1579, 0.03125
        %v1598 = vmul.f32 %v1582, 0.03125
        %v1599 = vsub.f32 %v1519, %v1583
        %v1600 = vsub.f32 %v1520, %v1584
        %v1601 = vsub.f32 %v1521, %v1585
        %v1602 = vsub.f32 %v1522, %v1586
        %v1603 = vsub.f32 %v1523, %v1587
        %v1604 = vsub.f32 %v1524, %v1588
        %v1605 = vsub.f32 %v1525, %v1589
        %v1606 = vsub.f32 %v1526, %v1590
        %v1607 = vsub.f32 %v1527, %v1591
        %v1608 = vsub.f32 %v1528, %v1592
        %v1609 = vsub.f32 %v1529, %v1593
        %v1610 = vsub.f32 %v1530, %v1594
        %v1611 = vsub.f32 %v1531, %v1595
        %v1612 = vsub.f32 %v1532, %v1596
        %v1613 = vsub.f32 %v1533, %v1597
        %v1614 = vsub.f32 %v1534, %v1598
        %v1615 = vmul.f32 %v1599, %v1599
        %v1616 = vmul.f32 %v1600, %v1600
        %v1617 = vmul.f32 %v1601, %v1601
        %v1618 = vmul.f32 %v1602, %v1602
        %v1619 = vmul.f32 %v1603, %v1603
        %v1620 = vmul.f32 %v1604, %v1604
        %v1621 = vmul.f32 %v1605, %v1605
        %v1622 = vmul.f32 %v1606, %v1606
        %v1623 = vmul.f32 %v1607, %v1607
        %v1624 = vmul.f32 %v1608, %v1608
        %v1625 = vmul.f32 %v1609, %v1609
        %v1626 = vmul.f32 %v1610, %v1610
        %v1627 = vmul.f32 %v1611, %v1611
        %v1628 = vmul.f32 %v1612, %v1612
        %v1629 = vmul.f32 %v1613, %v1613
        %v1630 = vmul.f32 %v1614, %v1614
        %v1631 = vsel %vm520, %v1615, 0.0
        %1632 = vadd.xlane.f32.xlu0 %v1631
        %v1633 = vpop.xlane.xlu0 %1632
        %v1634 = vsel %vm520, %v1616, 0.0
        %1635 = vadd.xlane.f32.xlu0 %v1634
        %v1636 = vpop.xlane.xlu0 %1635
        %v1637 = vsel %vm520, %v1617, 0.0
        %1638 = vadd.xlane.f32.xlu0 %v1637
        %v1639 = vpop.xlane.xlu0 %1638
        %v1640 = vsel %vm520, %v1618, 0.0
        %1641 = vadd.xlane.f32.xlu0 %v1640
        %v1642 = vpop.xlane.xlu0 %1641
        %v1643 = vsel %vm520, %v1619, 0.0
        %1644 = vadd.xlane.f32.xlu0 %v1643
        %v1645 = vpop.xlane.xlu0 %1644
        %v1646 = vsel %vm520, %v1620, 0.0
        %1647 = vadd.xlane.f32.xlu0 %v1646
        %v1648 = vpop.xlane.xlu0 %1647
        %v1649 = vsel %vm520, %v1621, 0.0
        %1650 = vadd.xlane.f32.xlu0 %v1649
        %v1651 = vpop.xlane.xlu0 %1650
        %v1652 = vsel %vm520, %v1622, 0.0
        %1653 = vadd.xlane.f32.xlu0 %v1652
        %v1654 = vpop.xlane.xlu0 %1653
        %v1655 = vsel %vm520, %v1623, 0.0
        %1656 = vadd.xlane.f32.xlu0 %v1655
        %v1657 = vpop.xlane.xlu0 %1656
        %v1658 = vsel %vm520, %v1624, 0.0
        %1659 = vadd.xlane.f32.xlu0 %v1658
        %v1660 = vpop.xlane.xlu0 %1659
        %v1661 = vsel %vm520, %v1625, 0.0
        %1662 = vadd.xlane.f32.xlu0 %v1661
        %v1663 = vpop.xlane.xlu0 %1662
        %v1664 = vsel %vm520, %v1626, 0.0
        %1665 = vadd.xlane.f32.xlu0 %v1664
        %v1666 = vpop.xlane.xlu0 %1665
        %v1667 = vsel %vm520, %v1627, 0.0
        %1668 = vadd.xlane.f32.xlu0 %v1667
        %v1669 = vpop.xlane.xlu0 %1668
        %v1670 = vsel %vm520, %v1628, 0.0
        %1671 = vadd.xlane.f32.xlu0 %v1670
        %v1672 = vpop.xlane.xlu0 %1671
        %v1673 = vsel %vm520, %v1629, 0.0
        %1674 = vadd.xlane.f32.xlu0 %v1673
        %v1675 = vpop.xlane.xlu0 %1674
        %v1676 = vsel %vm520, %v1630, 0.0
        %1677 = vadd.xlane.f32.xlu0 %v1676
        %v1678 = vpop.xlane.xlu0 %1677
        %v1679 = vmul.f32 %v1633, 0.03125
        %v1680 = vmul.f32 %v1636, 0.03125
        %v1681 = vmul.f32 %v1639, 0.03125
        %v1682 = vmul.f32 %v1642, 0.03125
        %v1683 = vmul.f32 %v1645, 0.03125
        %v1684 = vmul.f32 %v1648, 0.03125
        %v1685 = vmul.f32 %v1651, 0.03125
        %v1686 = vmul.f32 %v1654, 0.03125
        %v1687 = vmul.f32 %v1657, 0.03125
        %v1688 = vmul.f32 %v1660, 0.03125
        %v1689 = vmul.f32 %v1663, 0.03125
        %v1690 = vmul.f32 %v1666, 0.03125
        %v1691 = vmul.f32 %v1669, 0.03125
        %v1692 = vmul.f32 %v1672, 0.03125
        %v1693 = vmul.f32 %v1675, 0.03125
        %v1694 = vmul.f32 %v1678, 0.03125
        %v1695 = vadd.f32 %v1679, 1e-05
        %v1696 = vadd.f32 %v1680, 1e-05
        %v1697 = vadd.f32 %v1681, 1e-05
        %v1698 = vadd.f32 %v1682, 1e-05
        %v1699 = vadd.f32 %v1683, 1e-05
        %v1700 = vadd.f32 %v1684, 1e-05
        %v1701 = vadd.f32 %v1685, 1e-05
        %v1702 = vadd.f32 %v1686, 1e-05
        %v1703 = vadd.f32 %v1687, 1e-05
        %v1704 = vadd.f32 %v1688, 1e-05
        %v1705 = vadd.f32 %v1689, 1e-05
        %v1706 = vadd.f32 %v1690, 1e-05
        %v1707 = vadd.f32 %v1691, 1e-05
        %v1708 = vadd.f32 %v1692, 1e-05
        %v1709 = vadd.f32 %v1693, 1e-05
        %v1710 = vadd.f32 %v1694, 1e-05
        %v1711 = vrsqrt.pop %v1695
        %v1712 = vrsqrt.pop %v1696
        %v1713 = vrsqrt.pop %v1697
        %v1714 = vrsqrt.pop %v1698
        %v1715 = vrsqrt.pop %v1699
        %v1716 = vrsqrt.pop %v1700
        %v1717 = vrsqrt.pop %v1701
        %v1718 = vrsqrt.pop %v1702
        %v1719 = vrsqrt.pop %v1703
        %v1720 = vrsqrt.pop %v1704
        %v1721 = vrsqrt.pop %v1705
        %v1722 = vrsqrt.pop %v1706
        %v1723 = vrsqrt.pop %v1707
        %v1724 = vrsqrt.pop %v1708
        %v1725 = vrsqrt.pop %v1709
        %v1726 = vrsqrt.pop %v1710
        %v1727 = vmul.f32 %v1599, %v1711
        %v1728 = vmul.f32 %v1600, %v1712
        %v1729 = vmul.f32 %v1601, %v1713
        %v1730 = vmul.f32 %v1602, %v1714
        %v1731 = vmul.f32 %v1603, %v1715
        %v1732 = vmul.f32 %v1604, %v1716
        %v1733 = vmul.f32 %v1605, %v1717
        %v1734 = vmul.f32 %v1606, %v1718
        %v1735 = vmul.f32 %v1607, %v1719
        %v1736 = vmul.f32 %v1608, %v1720
        %v1737 = vmul.f32 %v1609, %v1721
        %v1738 = vmul.f32 %v1610, %v1722
        %v1739 = vmul.f32 %v1611, %v1723
        %v1740 = vmul.f32 %v1612, %v1724
        %v1741 = vmul.f32 %v1613, %v1725
        %v1742 = vmul.f32 %v1614, %v1726
        %v1743 = vlaneseq
        %v1744 = vshrl.u32 %v1743, 7
        %v1745 = vsub.s32 3, %v1744
        %v1746 = vrot.slane %v994, %v1745
        %v1747 = vmul.f32 %v1727, %v1746
        %v1748 = vmul.f32 %v1728, %v1746
        %v1749 = vmul.f32 %v1729, %v1746
        %v1750 = vmul.f32 %v1730, %v1746
        %v1751 = vmul.f32 %v1731, %v1746
        %v1752 = vmul.f32 %v1732, %v1746
        %v1753 = vmul.f32 %v1733, %v1746
        %v1754 = vmul.f32 %v1734, %v1746
        %v1755 = vmul.f32 %v1735, %v1746
        %v1756 = vmul.f32 %v1736, %v1746
        %v1757 = vmul.f32 %v1737, %v1746
        %v1758 = vmul.f32 %v1738, %v1746
        %v1759 = vmul.f32 %v1739, %v1746
        %v1760 = vmul.f32 %v1740, %v1746
        %v1761 = vmul.f32 %v1741, %v1746
        %v1762 = vmul.f32 %v1742, %v1746
        %v1763 = vlaneseq
        %v1764 = vshrl.u32 %v1763, 7
        %v1765 = vsub.s32 4, %v1764
        %v1766 = vrot.slane %v994, %v1765
        %v1767 = vadd.f32 %v1747, %v1766
        %v1768 = vadd.f32 %v1748, %v1766
        %v1769 = vadd.f32 %v1749, %v1766
        %v1770 = vadd.f32 %v1750, %v1766
        %v1771 = vadd.f32 %v1751, %v1766
        %v1772 = vadd.f32 %v1752, %v1766
        %v1773 = vadd.f32 %v1753, %v1766
        %v1774 = vadd.f32 %v1754, %v1766
        %v1775 = vadd.f32 %v1755, %v1766
        %v1776 = vadd.f32 %v1756, %v1766
        %v1777 = vadd.f32 %v1757, %v1766
        %v1778 = vadd.f32 %v1758, %v1766
        %v1779 = vadd.f32 %v1759, %v1766
        %v1780 = vadd.f32 %v1760, %v1766
        %v1781 = vadd.f32 %v1761, %v1766
        %v1782 = vadd.f32 %v1762, %v1766
        %v1783 = vld [vmem:[%s6] sm:$0xff]
        %v1784 = vld [vmem:[%s6 + $0x8] sm:$0xff]
        %v1785 = vld [vmem:[%s6 + $0x10] sm:$0xff]
        %v1786 = vld [vmem:[%s6 + $0x18] sm:$0xff]
        %v1787 = vld [vmem:[%s6 + $0x20] sm:$0xff]
        %v1788 = vld [vmem:[%s6 + $0x28] sm:$0xff]
        %v1789 = vld [vmem:[%s6 + $0x30] sm:$0xff]
        %v1790 = vld [vmem:[%s6 + $0x38] sm:$0xff]
        %v1791 = vld [vmem:[%s6 + $0x40] sm:$0xff]
        %v1792 = vld [vmem:[%s6 + $0x48] sm:$0xff]
        %v1793 = vld [vmem:[%s6 + $0x50] sm:$0xff]
        %v1794 = vld [vmem:[%s6 + $0x58] sm:$0xff]
        %v1795 = vld [vmem:[#allocation11] sm:$0xff]
        %v1796 = vld [vmem:[#allocation11 + $0x8] sm:$0xff]
        %v1797 = vld [vmem:[#allocation11 + $0x10] sm:$0xff]
        %v1798 = vld [vmem:[#allocation11 + $0x18] sm:$0xff]
        %v1799 = vld [vmem:[#allocation11 + $0x20] sm:$0xff]
        %v1800 = vld [vmem:[#allocation11 + $0x28] sm:$0xff]
        %v1801 = vld [vmem:[#allocation11 + $0x30] sm:$0xff]
        %v1802 = vld [vmem:[#allocation11 + $0x38] sm:$0xff]
        %v1803 = vld [vmem:[#allocation11 + $0x40] sm:$0xff]
        %v1804 = vld [vmem:[#allocation11 + $0x48] sm:$0xff]
        %v1805 = vld [vmem:[#allocation11 + $0x50] sm:$0xff]
        %v1806 = vld [vmem:[#allocation11 + $0x58] sm:$0xff]
        %v1808 = vsel %vm520, %v1767, 0
        %v1811 = vsel %vm520, %v1768, 0
        %v1814 = vsel %vm520, %v1769, 0
        %v1817 = vsel %vm520, %v1770, 0
        %v1820 = vsel %vm520, %v1771, 0
        %v1823 = vsel %vm520, %v1772, 0
        %v1826 = vsel %vm520, %v1773, 0
        %v1829 = vsel %vm520, %v1774, 0
        %v1832 = vsel %vm520, %v1775, 0
        %v1835 = vsel %vm520, %v1776, 0
        %v1838 = vsel %vm520, %v1777, 0
        %v1841 = vsel %vm520, %v1778, 0
        %v1844 = vsel %vm520, %v1779, 0
        %v1847 = vsel %vm520, %v1780, 0
        %v1850 = vsel %vm520, %v1781, 0
        %v1853 = vsel %vm520, %v1782, 0
        %1855 = vmatprep.subr.mxu0 0.0
        %1856 = vmatpush1.msra.mxu0 0.0
        %1857 = vmatprep.subr.mxu0 0.0
        %1858 = vmatpush1.msra.mxu0 0.0
        %1859 = vmatprep.subr.mxu0 0.0
        %1860 = vmatpush1.msra.mxu0 0.0
        %1861 = vmatprep.subr.mxu0 0.0
        %1862 = vmatpush1.msra.mxu0 0.0
        %1863 = vmatprep.subr.mxu0 0.0
        %1864 = vmatpush1.msra.mxu0 0.0
        %1865 = vmatprep.subr.mxu0 0.0
        %1866 = vmatpush1.msra.mxu0 0.0
        %1867 = vmatprep.subr.mxu0 0.0
        %1868 = vmatpush1.msra.mxu0 0.0
        %1869 = vmatprep.subr.mxu0 0.0
        %1870 = vmatpush1.msra.mxu0 0.0
        %1871 = vmatprep.subr.mxu0 0.0
        %1872 = vmatpush1.msra.mxu0 0.0
        %1873 = vmatprep.subr.mxu0 0.0
        %1874 = vmatpush1.msra.mxu0 0.0
        %1875 = vmatprep.subr.mxu0 0.0
        %1876 = vmatpush1.msra.mxu0 0.0
        %1877 = vmatprep.subr.mxu0 0.0
        %1878 = vmatpush1.msra.mxu0 0.0
        %1879 = vmatprep.subr.mxu0 %v1805
        %1880 = vmatpush1.msra.mxu0 %v1804
        %1881 = vmatprep.subr.mxu0 %v1802
        %1882 = vmatpush1.msra.mxu0 %v1801
        %1883 = vmatprep.subr.mxu0 %v1799
        %1884 = vmatpush1.msra.mxu0 %v1798
        %1885 = vmatprep.subr.mxu0 %v1796
        %1886 = vmatpush1.msra.mxu0 %v1795
        %1887 = vmatprep.subr.mxu0 0.0
        %1888 = vmatpush2.msra.mxu0 0.0
        %1889 = vmatprep.subr.mxu0 0.0
        %1890 = vmatpush2.msra.mxu0 0.0
        %1891 = vmatprep.subr.mxu0 0.0
        %1892 = vmatpush2.msra.mxu0 0.0
        %1893 = vmatprep.subr.mxu0 0.0
        %1894 = vmatpush2.msra.mxu0 0.0
        %1895 = vmatprep.subr.mxu0 0.0
        %1896 = vmatpush2.msra.mxu0 0.0
        %1897 = vmatprep.subr.mxu0 0.0
        %1898 = vmatpush2.msra.mxu0 0.0
        %1899 = vmatprep.subr.mxu0 0.0
        %1900 = vmatpush2.msra.mxu0 0.0
        %1901 = vmatprep.subr.mxu0 0.0
        %1902 = vmatpush2.msra.mxu0 0.0
        %1903 = vmatprep.subr.mxu0 0.0
        %1904 = vmatpush2.msra.mxu0 0.0
        %1905 = vmatprep.subr.mxu0 0.0
        %1906 = vmatpush2.msra.mxu0 0.0
        %1907 = vmatprep.subr.mxu0 0.0
        %1908 = vmatpush2.msra.mxu0 0.0
        %1909 = vmatprep.subr.mxu0 0.0
        %1910 = vmatpush2.msra.mxu0 0.0
        %1911 = vmatprep.subr.mxu0 0.0
        %1912 = vmatpush2.msra.mxu0 0.0
        %1913 = vmatprep.subr.mxu0 0.0
        %1914 = vmatpush2.msra.mxu0 0.0
        %1915 = vmatprep.subr.mxu0 0.0
        %1916 = vmatpush2.msra.mxu0 0.0
        %1917 = vmatprep.subr.mxu0 0.0
        %1918 = vmatpush2.msra.mxu0 0.0
        %1919 = vmatprep.mubr.f32.mxu0 0.0
        %1920 = vmatmul.mubr.f32.gmra.mxu0 %v1808
        %v1921 = vpop.f32.mrf.mxu0
        %v1922 = vadd.f32 0.0, %v1921
        %v1923 = vpop.f32.mrf.mxu0
        %v1924 = vadd.f32 0.0, %v1923
        %1925 = vmatprep.mubr.f32.mxu0 0.0
        %1926 = vmatmul.mubr.f32.gmra.mxu0 %v1811
        %v1927 = vpop.f32.mrf.mxu0
        %v1928 = vadd.f32 0.0, %v1927
        %v1929 = vpop.f32.mrf.mxu0
        %v1930 = vadd.f32 0.0, %v1929
        %1931 = vmatprep.mubr.f32.mxu0 0.0
        %1932 = vmatmul.mubr.f32.gmra.mxu0 %v1814
        %v1933 = vpop.f32.mrf.mxu0
        %v1934 = vadd.f32 0.0, %v1933
        %v1935 = vpop.f32.mrf.mxu0
        %v1936 = vadd.f32 0.0, %v1935
        %1937 = vmatprep.mubr.f32.mxu0 0.0
        %1938 = vmatmul.mubr.f32.gmra.mxu0 %v1817
        %v1939 = vpop.f32.mrf.mxu0
        %v1940 = vadd.f32 0.0, %v1939
        %v1941 = vpop.f32.mrf.mxu0
        %v1942 = vadd.f32 0.0, %v1941
        %1943 = vmatprep.mubr.f32.mxu0 0.0
        %1944 = vmatmul.mubr.f32.gmra.mxu0 %v1820
        %v1945 = vpop.f32.mrf.mxu0
        %v1946 = vadd.f32 0.0, %v1945
        %v1947 = vpop.f32.mrf.mxu0
        %v1948 = vadd.f32 0.0, %v1947
        %1949 = vmatprep.mubr.f32.mxu0 0.0
        %1950 = vmatmul.mubr.f32.gmra.mxu0 %v1823
        %v1951 = vpop.f32.mrf.mxu0
        %v1952 = vadd.f32 0.0, %v1951
        %v1953 = vpop.f32.mrf.mxu0
        %v1954 = vadd.f32 0.0, %v1953
        %1955 = vmatprep.mubr.f32.mxu0 0.0
        %1956 = vmatmul.mubr.f32.gmra.mxu0 %v1826
        %v1957 = vpop.f32.mrf.mxu0
        %v1958 = vadd.f32 0.0, %v1957
        %v1959 = vpop.f32.mrf.mxu0
        %v1960 = vadd.f32 0.0, %v1959
        %1961 = vmatprep.mubr.f32.mxu0 0.0
        %1962 = vmatmul.mubr.f32.gmra.mxu0 %v1829
        %v1963 = vpop.f32.mrf.mxu0
        %v1964 = vadd.f32 0.0, %v1963
        %v1965 = vpop.f32.mrf.mxu0
        %v1966 = vadd.f32 0.0, %v1965
        %1967 = vmatprep.mubr.f32.mxu0 0.0
        %1968 = vmatmul.mubr.f32.gmra.mxu0 %v1832
        %v1969 = vpop.f32.mrf.mxu0
        %v1970 = vadd.f32 0.0, %v1969
        %v1971 = vpop.f32.mrf.mxu0
        %v1972 = vadd.f32 0.0, %v1971
        %1973 = vmatprep.mubr.f32.mxu0 0.0
        %1974 = vmatmul.mubr.f32.gmra.mxu0 %v1835
        %v1975 = vpop.f32.mrf.mxu0
        %v1976 = vadd.f32 0.0, %v1975
        %v1977 = vpop.f32.mrf.mxu0
        %v1978 = vadd.f32 0.0, %v1977
        %1979 = vmatprep.mubr.f32.mxu0 0.0
        %1980 = vmatmul.mubr.f32.gmra.mxu0 %v1838
        %v1981 = vpop.f32.mrf.mxu0
        %v1982 = vadd.f32 0.0, %v1981
        %v1983 = vpop.f32.mrf.mxu0
        %v1984 = vadd.f32 0.0, %v1983
        %1985 = vmatprep.mubr.f32.mxu0 0.0
        %1986 = vmatmul.mubr.f32.gmra.mxu0 %v1841
        %v1987 = vpop.f32.mrf.mxu0
        %v1988 = vadd.f32 0.0, %v1987
        %v1989 = vpop.f32.mrf.mxu0
        %v1990 = vadd.f32 0.0, %v1989
        %1991 = vmatprep.mubr.f32.mxu0 0.0
        %1992 = vmatmul.mubr.f32.gmra.mxu0 %v1844
        %v1993 = vpop.f32.mrf.mxu0
        %v1994 = vadd.f32 0.0, %v1993
        %v1995 = vpop.f32.mrf.mxu0
        %v1996 = vadd.f32 0.0, %v1995
        %1997 = vmatprep.mubr.f32.mxu0 0.0
        %1998 = vmatmul.mubr.f32.gmra.mxu0 %v1847
        %v1999 = vpop.f32.mrf.mxu0
        %v2000 = vadd.f32 0.0, %v1999
        %v2001 = vpop.f32.mrf.mxu0
        %v2002 = vadd.f32 0.0, %v2001
        %2003 = vmatprep.mubr.f32.mxu0 0.0
        %2004 = vmatmul.mubr.f32.gmra.mxu0 %v1850
        %v2005 = vpop.f32.mrf.mxu0
        %v2006 = vadd.f32 0.0, %v2005
        %v2007 = vpop.f32.mrf.mxu0
        %v2008 = vadd.f32 0.0, %v2007
        %2009 = vmatprep.mubr.f32.mxu0 0.0
        %2010 = vmatmul.mubr.f32.gmra.mxu0 %v1853
        %v2011 = vpop.f32.mrf.mxu0
        %v2012 = vadd.f32 0.0, %v2011
        %v2013 = vpop.f32.mrf.mxu0
        %v2014 = vadd.f32 0.0, %v2013
        %2015 = vdwg.mxu0
        %2016 = vmatprep.subr.mxu0 0.0
        %2017 = vmatpush1.msra.mxu0 0.0
        %2018 = vmatprep.subr.mxu0 0.0
        %2019 = vmatpush1.msra.mxu0 0.0
        %2020 = vmatprep.subr.mxu0 0.0
        %2021 = vmatpush1.msra.mxu0 0.0
        %2022 = vmatprep.subr.mxu0 0.0
        %2023 = vmatpush1.msra.mxu0 0.0
        %2024 = vmatprep.subr.mxu0 0.0
        %2025 = vmatpush1.msra.mxu0 0.0
        %2026 = vmatprep.subr.mxu0 0.0
        %2027 = vmatpush1.msra.mxu0 0.0
        %2028 = vmatprep.subr.mxu0 0.0
        %2029 = vmatpush1.msra.mxu0 0.0
        %2030 = vmatprep.subr.mxu0 0.0
        %2031 = vmatpush1.msra.mxu0 0.0
        %2032 = vmatprep.subr.mxu0 0.0
        %2033 = vmatpush1.msra.mxu0 0.0
        %2034 = vmatprep.subr.mxu0 0.0
        %2035 = vmatpush1.msra.mxu0 0.0
        %2036 = vmatprep.subr.mxu0 0.0
        %2037 = vmatpush1.msra.mxu0 0.0
        %2038 = vmatprep.subr.mxu0 0.0
        %2039 = vmatpush1.msra.mxu0 0.0
        %2040 = vmatprep.subr.mxu0 0.0
        %2041 = vmatpush1.msra.mxu0 %v1806
        %2042 = vmatprep.subr.mxu0 0.0
        %2043 = vmatpush1.msra.mxu0 %v1803
        %2044 = vmatprep.subr.mxu0 0.0
        %2045 = vmatpush1.msra.mxu0 %v1800
        %2046 = vmatprep.subr.mxu0 0.0
        %2047 = vmatpush1.msra.mxu0 %v1797
        %2048 = vmatprep.subr.mxu0 0.0
        %2049 = vmatpush2.msra.mxu0 0.0
        %2050 = vmatprep.subr.mxu0 0.0
        %2051 = vmatpush2.msra.mxu0 0.0
        %2052 = vmatprep.subr.mxu0 0.0
        %2053 = vmatpush2.msra.mxu0 0.0
        %2054 = vmatprep.subr.mxu0 0.0
        %2055 = vmatpush2.msra.mxu0 0.0
        %2056 = vmatprep.subr.mxu0 0.0
        %2057 = vmatpush2.msra.mxu0 0.0
        %2058 = vmatprep.subr.mxu0 0.0
        %2059 = vmatpush2.msra.mxu0 0.0
        %2060 = vmatprep.subr.mxu0 0.0
        %2061 = vmatpush2.msra.mxu0 0.0
        %2062 = vmatprep.subr.mxu0 0.0
        %2063 = vmatpush2.msra.mxu0 0.0
        %2064 = vmatprep.subr.mxu0 0.0
        %2065 = vmatpush2.msra.mxu0 0.0
        %2066 = vmatprep.subr.mxu0 0.0
        %2067 = vmatpush2.msra.mxu0 0.0
        %2068 = vmatprep.subr.mxu0 0.0
        %2069 = vmatpush2.msra.mxu0 0.0
        %2070 = vmatprep.subr.mxu0 0.0
        %2071 = vmatpush2.msra.mxu0 0.0
        %2072 = vmatprep.subr.mxu0 0.0
        %2073 = vmatpush2.msra.mxu0 0.0
        %2074 = vmatprep.subr.mxu0 0.0
        %2075 = vmatpush2.msra.mxu0 0.0
        %2076 = vmatprep.subr.mxu0 0.0
        %2077 = vmatpush2.msra.mxu0 0.0
        %2078 = vmatprep.subr.mxu0 0.0
        %2079 = vmatpush2.msra.mxu0 0.0
        %2080 = vmatprep.mubr.f32.mxu0 0.0
        %2081 = vmatmul.mubr.f32.gmra.mxu0 %v1808
        %v2082 = vpop.f32.mrf.mxu0
        %v2083 = vadd.f32 0.0, %v2082
        %v2084 = vpop.f32.mrf.mxu0
        %2085 = vmatprep.mubr.f32.mxu0 0.0
        %2086 = vmatmul.mubr.f32.gmra.mxu0 %v1811
        %v2087 = vpop.f32.mrf.mxu0
        %v2088 = vadd.f32 0.0, %v2087
        %v2089 = vpop.f32.mrf.mxu0
        %2090 = vmatprep.mubr.f32.mxu0 0.0
        %2091 = vmatmul.mubr.f32.gmra.mxu0 %v1814
        %v2092 = vpop.f32.mrf.mxu0
        %v2093 = vadd.f32 0.0, %v2092
        %v2094 = vpop.f32.mrf.mxu0
        %2095 = vmatprep.mubr.f32.mxu0 0.0
        %2096 = vmatmul.mubr.f32.gmra.mxu0 %v1817
        %v2097 = vpop.f32.mrf.mxu0
        %v2098 = vadd.f32 0.0, %v2097
        %v2099 = vpop.f32.mrf.mxu0
        %2100 = vmatprep.mubr.f32.mxu0 0.0
        %2101 = vmatmul.mubr.f32.gmra.mxu0 %v1820
        %v2102 = vpop.f32.mrf.mxu0
        %v2103 = vadd.f32 0.0, %v2102
        %v2104 = vpop.f32.mrf.mxu0
        %2105 = vmatprep.mubr.f32.mxu0 0.0
        %2106 = vmatmul.mubr.f32.gmra.mxu0 %v1823
        %v2107 = vpop.f32.mrf.mxu0
        %v2108 = vadd.f32 0.0, %v2107
        %v2109 = vpop.f32.mrf.mxu0
        %2110 = vmatprep.mubr.f32.mxu0 0.0
        %2111 = vmatmul.mubr.f32.gmra.mxu0 %v1826
        %v2112 = vpop.f32.mrf.mxu0
        %v2113 = vadd.f32 0.0, %v2112
        %v2114 = vpop.f32.mrf.mxu0
        %2115 = vmatprep.mubr.f32.mxu0 0.0
        %2116 = vmatmul.mubr.f32.gmra.mxu0 %v1829
        %v2117 = vpop.f32.mrf.mxu0
        %v2118 = vadd.f32 0.0, %v2117
        %v2119 = vpop.f32.mrf.mxu0
        %2120 = vmatprep.mubr.f32.mxu0 0.0
        %2121 = vmatmul.mubr.f32.gmra.mxu0 %v1832
        %v2122 = vpop.f32.mrf.mxu0
        %v2123 = vadd.f32 0.0, %v2122
        %v2124 = vpop.f32.mrf.mxu0
        %2125 = vmatprep.mubr.f32.mxu0 0.0
        %2126 = vmatmul.mubr.f32.gmra.mxu0 %v1835
        %v2127 = vpop.f32.mrf.mxu0
        %v2128 = vadd.f32 0.0, %v2127
        %v2129 = vpop.f32.mrf.mxu0
        %2130 = vmatprep.mubr.f32.mxu0 0.0
        %2131 = vmatmul.mubr.f32.gmra.mxu0 %v1838
        %v2132 = vpop.f32.mrf.mxu0
        %v2133 = vadd.f32 0.0, %v2132
        %v2134 = vpop.f32.mrf.mxu0
        %2135 = vmatprep.mubr.f32.mxu0 0.0
        %2136 = vmatmul.mubr.f32.gmra.mxu0 %v1841
        %v2137 = vpop.f32.mrf.mxu0
        %v2138 = vadd.f32 0.0, %v2137
        %v2139 = vpop.f32.mrf.mxu0
        %2140 = vmatprep.mubr.f32.mxu0 0.0
        %2141 = vmatmul.mubr.f32.gmra.mxu0 %v1844
        %v2142 = vpop.f32.mrf.mxu0
        %v2143 = vadd.f32 0.0, %v2142
        %v2144 = vpop.f32.mrf.mxu0
        %2145 = vmatprep.mubr.f32.mxu0 0.0
        %2146 = vmatmul.mubr.f32.gmra.mxu0 %v1847
        %v2147 = vpop.f32.mrf.mxu0
        %v2148 = vadd.f32 0.0, %v2147
        %v2149 = vpop.f32.mrf.mxu0
        %2150 = vmatprep.mubr.f32.mxu0 0.0
        %2151 = vmatmul.mubr.f32.gmra.mxu0 %v1850
        %v2152 = vpop.f32.mrf.mxu0
        %v2153 = vadd.f32 0.0, %v2152
        %v2154 = vpop.f32.mrf.mxu0
        %2155 = vmatprep.mubr.f32.mxu0 0.0
        %2156 = vmatmul.mubr.f32.gmra.mxu0 %v1853
        %v2157 = vpop.f32.mrf.mxu0
        %v2158 = vadd.f32 0.0, %v2157
        %v2159 = vpop.f32.mrf.mxu0
        %2160 = vdwg.mxu0
        %v2162 = vsel %vm520, %v978, 0
        %v2165 = vsel %vm520, %v979, 0
        %v2168 = vsel %vm520, %v980, 0
        %v2171 = vsel %vm520, %v981, 0
        %v2174 = vsel %vm520, %v982, 0
        %v2177 = vsel %vm520, %v983, 0
        %v2180 = vsel %vm520, %v984, 0
        %v2183 = vsel %vm520, %v985, 0
        %v2186 = vsel %vm520, %v986, 0
        %v2189 = vsel %vm520, %v987, 0
        %v2192 = vsel %vm520, %v988, 0
        %v2195 = vsel %vm520, %v989, 0
        %v2198 = vsel %vm520, %v990, 0
        %v2201 = vsel %vm520, %v991, 0
        %v2204 = vsel %vm520, %v992, 0
        %v2207 = vsel %vm520, %v993, 0
        %2209 = vmatprep.subr.mxu0 0.0
        %2210 = vmatpush1.msra.mxu0 0.0
        %2211 = vmatprep.subr.mxu0 0.0
        %2212 = vmatpush1.msra.mxu0 0.0
        %2213 = vmatprep.subr.mxu0 0.0
        %2214 = vmatpush1.msra.mxu0 0.0
        %2215 = vmatprep.subr.mxu0 0.0
        %2216 = vmatpush1.msra.mxu0 0.0
        %2217 = vmatprep.subr.mxu0 0.0
        %2218 = vmatpush1.msra.mxu0 0.0
        %2219 = vmatprep.subr.mxu0 0.0
        %2220 = vmatpush1.msra.mxu0 0.0
        %2221 = vmatprep.subr.mxu0 0.0
        %2222 = vmatpush1.msra.mxu0 0.0
        %2223 = vmatprep.subr.mxu0 0.0
        %2224 = vmatpush1.msra.mxu0 0.0
        %2225 = vmatprep.subr.mxu0 0.0
        %2226 = vmatpush1.msra.mxu0 0.0
        %2227 = vmatprep.subr.mxu0 0.0
        %2228 = vmatpush1.msra.mxu0 0.0
        %2229 = vmatprep.subr.mxu0 0.0
        %2230 = vmatpush1.msra.mxu0 0.0
        %2231 = vmatprep.subr.mxu0 0.0
        %2232 = vmatpush1.msra.mxu0 0.0
        %2233 = vmatprep.subr.mxu0 %v1793
        %2234 = vmatpush1.msra.mxu0 %v1792
        %2235 = vmatprep.subr.mxu0 %v1790
        %2236 = vmatpush1.msra.mxu0 %v1789
        %2237 = vmatprep.subr.mxu0 %v1787
        %2238 = vmatpush1.msra.mxu0 %v1786
        %2239 = vmatprep.subr.mxu0 %v1784
        %2240 = vmatpush1.msra.mxu0 %v1783
        %2241 = vmatprep.subr.mxu0 0.0
        %2242 = vmatpush2.msra.mxu0 0.0
        %2243 = vmatprep.subr.mxu0 0.0
        %2244 = vmatpush2.msra.mxu0 0.0
        %2245 = vmatprep.subr.mxu0 0.0
        %2246 = vmatpush2.msra.mxu0 0.0
        %2247 = vmatprep.subr.mxu0 0.0
        %2248 = vmatpush2.msra.mxu0 0.0
        %2249 = vmatprep.subr.mxu0 0.0
        %2250 = vmatpush2.msra.mxu0 0.0
        %2251 = vmatprep.subr.mxu0 0.0
        %2252 = vmatpush2.msra.mxu0 0.0
        %2253 = vmatprep.subr.mxu0 0.0
        %2254 = vmatpush2.msra.mxu0 0.0
        %2255 = vmatprep.subr.mxu0 0.0
        %2256 = vmatpush2.msra.mxu0 0.0
        %2257 = vmatprep.subr.mxu0 0.0
        %2258 = vmatpush2.msra.mxu0 0.0
        %2259 = vmatprep.subr.mxu0 0.0
        %2260 = vmatpush2.msra.mxu0 0.0
        %2261 = vmatprep.subr.mxu0 0.0
        %2262 = vmatpush2.msra.mxu0 0.0
        %2263 = vmatprep.subr.mxu0 0.0
        %2264 = vmatpush2.msra.mxu0 0.0
        %2265 = vmatprep.subr.mxu0 0.0
        %2266 = vmatpush2.msra.mxu0 0.0
        %2267 = vmatprep.subr.mxu0 0.0
        %2268 = vmatpush2.msra.mxu0 0.0
        %2269 = vmatprep.subr.mxu0 0.0
        %2270 = vmatpush2.msra.mxu0 0.0
        %2271 = vmatprep.subr.mxu0 0.0
        %2272 = vmatpush2.msra.mxu0 0.0
        %2273 = vmatprep.mubr.f32.mxu0 0.0
        %2274 = vmatmul.mubr.f32.gmra.mxu0 %v2162
        %v2275 = vpop.f32.mrf.mxu0
        %v2276 = vadd.f32 %v1922, %v2275
        %v2277 = vpop.f32.mrf.mxu0
        %v2278 = vadd.f32 %v1924, %v2277
        %2279 = vmatprep.mubr.f32.mxu0 0.0
        %2280 = vmatmul.mubr.f32.gmra.mxu0 %v2165
        %v2281 = vpop.f32.mrf.mxu0
        %v2282 = vadd.f32 %v1928, %v2281
        %v2283 = vpop.f32.mrf.mxu0
        %v2284 = vadd.f32 %v1930, %v2283
        %2285 = vmatprep.mubr.f32.mxu0 0.0
        %2286 = vmatmul.mubr.f32.gmra.mxu0 %v2168
        %v2287 = vpop.f32.mrf.mxu0
        %v2288 = vadd.f32 %v1934, %v2287
        %v2289 = vpop.f32.mrf.mxu0
        %v2290 = vadd.f32 %v1936, %v2289
        %2291 = vmatprep.mubr.f32.mxu0 0.0
        %2292 = vmatmul.mubr.f32.gmra.mxu0 %v2171
        %v2293 = vpop.f32.mrf.mxu0
        %v2294 = vadd.f32 %v1940, %v2293
        %v2295 = vpop.f32.mrf.mxu0
        %v2296 = vadd.f32 %v1942, %v2295
        %2297 = vmatprep.mubr.f32.mxu0 0.0
        %2298 = vmatmul.mubr.f32.gmra.mxu0 %v2174
        %v2299 = vpop.f32.mrf.mxu0
        %v2300 = vadd.f32 %v1946, %v2299
        %v2301 = vpop.f32.mrf.mxu0
        %v2302 = vadd.f32 %v1948, %v2301
        %2303 = vmatprep.mubr.f32.mxu0 0.0
        %2304 = vmatmul.mubr.f32.gmra.mxu0 %v2177
        %v2305 = vpop.f32.mrf.mxu0
        %v2306 = vadd.f32 %v1952, %v2305
        %v2307 = vpop.f32.mrf.mxu0
        %v2308 = vadd.f32 %v1954, %v2307
        %2309 = vmatprep.mubr.f32.mxu0 0.0
        %2310 = vmatmul.mubr.f32.gmra.mxu0 %v2180
        %v2311 = vpop.f32.mrf.mxu0
        %v2312 = vadd.f32 %v1958, %v2311
        %v2313 = vpop.f32.mrf.mxu0
        %v2314 = vadd.f32 %v1960, %v2313
        %2315 = vmatprep.mubr.f32.mxu0 0.0
        %2316 = vmatmul.mubr.f32.gmra.mxu0 %v2183
        %v2317 = vpop.f32.mrf.mxu0
        %v2318 = vadd.f32 %v1964, %v2317
        %v2319 = vpop.f32.mrf.mxu0
        %v2320 = vadd.f32 %v1966, %v2319
        %2321 = vmatprep.mubr.f32.mxu0 0.0
        %2322 = vmatmul.mubr.f32.gmra.mxu0 %v2186
        %v2323 = vpop.f32.mrf.mxu0
        %v2324 = vadd.f32 %v1970, %v2323
        %v2325 = vpop.f32.mrf.mxu0
        %v2326 = vadd.f32 %v1972, %v2325
        %2327 = vmatprep.mubr.f32.mxu0 0.0
        %2328 = vmatmul.mubr.f32.gmra.mxu0 %v2189
        %v2329 = vpop.f32.mrf.mxu0
        %v2330 = vadd.f32 %v1976, %v2329
        %v2331 = vpop.f32.mrf.mxu0
        %v2332 = vadd.f32 %v1978, %v2331
        %2333 = vmatprep.mubr.f32.mxu0 0.0
        %2334 = vmatmul.mubr.f32.gmra.mxu0 %v2192
        %v2335 = vpop.f32.mrf.mxu0
        %v2336 = vadd.f32 %v1982, %v2335
        %v2337 = vpop.f32.mrf.mxu0
        %v2338 = vadd.f32 %v1984, %v2337
        %2339 = vmatprep.mubr.f32.mxu0 0.0
        %2340 = vmatmul.mubr.f32.gmra.mxu0 %v2195
        %v2341 = vpop.f32.mrf.mxu0
        %v2342 = vadd.f32 %v1988, %v2341
        %v2343 = vpop.f32.mrf.mxu0
        %v2344 = vadd.f32 %v1990, %v2343
        %2345 = vmatprep.mubr.f32.mxu0 0.0
        %2346 = vmatmul.mubr.f32.gmra.mxu0 %v2198
        %v2347 = vpop.f32.mrf.mxu0
        %v2348 = vadd.f32 %v1994, %v2347
        %v2349 = vpop.f32.mrf.mxu0
        %v2350 = vadd.f32 %v1996, %v2349
        %2351 = vmatprep.mubr.f32.mxu0 0.0
        %2352 = vmatmul.mubr.f32.gmra.mxu0 %v2201
        %v2353 = vpop.f32.mrf.mxu0
        %v2354 = vadd.f32 %v2000, %v2353
        %v2355 = vpop.f32.mrf.mxu0
        %v2356 = vadd.f32 %v2002, %v2355
        %2357 = vmatprep.mubr.f32.mxu0 0.0
        %2358 = vmatmul.mubr.f32.gmra.mxu0 %v2204
        %v2359 = vpop.f32.mrf.mxu0
        %v2360 = vadd.f32 %v2006, %v2359
        %v2361 = vpop.f32.mrf.mxu0
        %v2362 = vadd.f32 %v2008, %v2361
        %2363 = vmatprep.mubr.f32.mxu0 0.0
        %2364 = vmatmul.mubr.f32.gmra.mxu0 %v2207
        %v2365 = vpop.f32.mrf.mxu0
        %v2366 = vadd.f32 %v2012, %v2365
        %v2367 = vpop.f32.mrf.mxu0
        %v2368 = vadd.f32 %v2014, %v2367
        %2369 = vdwg.mxu0
        %2370 = vmatprep.subr.mxu0 0.0
        %2371 = vmatpush1.msra.mxu0 0.0
        %2372 = vmatprep.subr.mxu0 0.0
        %2373 = vmatpush1.msra.mxu0 0.0
        %2374 = vmatprep.subr.mxu0 0.0
        %2375 = vmatpush1.msra.mxu0 0.0
        %2376 = vmatprep.subr.mxu0 0.0
        %2377 = vmatpush1.msra.mxu0 0.0
        %2378 = vmatprep.subr.mxu0 0.0
        %2379 = vmatpush1.msra.mxu0 0.0
        %2380 = vmatprep.subr.mxu0 0.0
        %2381 = vmatpush1.msra.mxu0 0.0
        %2382 = vmatprep.subr.mxu0 0.0
        %2383 = vmatpush1.msra.mxu0 0.0
        %2384 = vmatprep.subr.mxu0 0.0
        %2385 = vmatpush1.msra.mxu0 0.0
        %2386 = vmatprep.subr.mxu0 0.0
        %2387 = vmatpush1.msra.mxu0 0.0
        %2388 = vmatprep.subr.mxu0 0.0
        %2389 = vmatpush1.msra.mxu0 0.0
        %2390 = vmatprep.subr.mxu0 0.0
        %2391 = vmatpush1.msra.mxu0 0.0
        %2392 = vmatprep.subr.mxu0 0.0
        %2393 = vmatpush1.msra.mxu0 0.0
        %2394 = vmatprep.subr.mxu0 0.0
        %2395 = vmatpush1.msra.mxu0 %v1794
        %2396 = vmatprep.subr.mxu0 0.0
        %2397 = vmatpush1.msra.mxu0 %v1791
        %2398 = vmatprep.subr.mxu0 0.0
        %2399 = vmatpush1.msra.mxu0 %v1788
        %2400 = vmatprep.subr.mxu0 0.0
        %2401 = vmatpush1.msra.mxu0 %v1785
        %2402 = vmatprep.subr.mxu0 0.0
        %2403 = vmatpush2.msra.mxu0 0.0
        %2404 = vmatprep.subr.mxu0 0.0
        %2405 = vmatpush2.msra.mxu0 0.0
        %2406 = vmatprep.subr.mxu0 0.0
        %2407 = vmatpush2.msra.mxu0 0.0
        %2408 = vmatprep.subr.mxu0 0.0
        %2409 = vmatpush2.msra.mxu0 0.0
        %2410 = vmatprep.subr.mxu0 0.0
        %2411 = vmatpush2.msra.mxu0 0.0
        %2412 = vmatprep.subr.mxu0 0.0
        %2413 = vmatpush2.msra.mxu0 0.0
        %2414 = vmatprep.subr.mxu0 0.0
        %2415 = vmatpush2.msra.mxu0 0.0
        %2416 = vmatprep.subr.mxu0 0.0
        %2417 = vmatpush2.msra.mxu0 0.0
        %2418 = vmatprep.subr.mxu0 0.0
        %2419 = vmatpush2.msra.mxu0 0.0
        %2420 = vmatprep.subr.mxu0 0.0
        %2421 = vmatpush2.msra.mxu0 0.0
        %2422 = vmatprep.subr.mxu0 0.0
        %2423 = vmatpush2.msra.mxu0 0.0
        %2424 = vmatprep.subr.mxu0 0.0
        %2425 = vmatpush2.msra.mxu0 0.0
        %2426 = vmatprep.subr.mxu0 0.0
        %2427 = vmatpush2.msra.mxu0 0.0
        %2428 = vmatprep.subr.mxu0 0.0
        %2429 = vmatpush2.msra.mxu0 0.0
        %2430 = vmatprep.subr.mxu0 0.0
        %2431 = vmatpush2.msra.mxu0 0.0
        %2432 = vmatprep.subr.mxu0 0.0
        %2433 = vmatpush2.msra.mxu0 0.0
        %2434 = vmatprep.mubr.f32.mxu0 0.0
        %2435 = vmatmul.mubr.f32.gmra.mxu0 %v2162
        %v2436 = vpop.f32.mrf.mxu0
        %v2437 = vadd.f32 %v2083, %v2436
        %v2438 = vpop.f32.mrf.mxu0
        %2439 = vmatprep.mubr.f32.mxu0 0.0
        %2440 = vmatmul.mubr.f32.gmra.mxu0 %v2165
        %v2441 = vpop.f32.mrf.mxu0
        %v2442 = vadd.f32 %v2088, %v2441
        %v2443 = vpop.f32.mrf.mxu0
        %2444 = vmatprep.mubr.f32.mxu0 0.0
        %2445 = vmatmul.mubr.f32.gmra.mxu0 %v2168
        %v2446 = vpop.f32.mrf.mxu0
        %v2447 = vadd.f32 %v2093, %v2446
        %v2448 = vpop.f32.mrf.mxu0
        %2449 = vmatprep.mubr.f32.mxu0 0.0
        %2450 = vmatmul.mubr.f32.gmra.mxu0 %v2171
        %v2451 = vpop.f32.mrf.mxu0
        %v2452 = vadd.f32 %v2098, %v2451
        %v2453 = vpop.f32.mrf.mxu0
        %2454 = vmatprep.mubr.f32.mxu0 0.0
        %2455 = vmatmul.mubr.f32.gmra.mxu0 %v2174
        %v2456 = vpop.f32.mrf.mxu0
        %v2457 = vadd.f32 %v2103, %v2456
        %v2458 = vpop.f32.mrf.mxu0
        %2459 = vmatprep.mubr.f32.mxu0 0.0
        %2460 = vmatmul.mubr.f32.gmra.mxu0 %v2177
        %v2461 = vpop.f32.mrf.mxu0
        %v2462 = vadd.f32 %v2108, %v2461
        %v2463 = vpop.f32.mrf.mxu0
        %2464 = vmatprep.mubr.f32.mxu0 0.0
        %2465 = vmatmul.mubr.f32.gmra.mxu0 %v2180
        %v2466 = vpop.f32.mrf.mxu0
        %v2467 = vadd.f32 %v2113, %v2466
        %v2468 = vpop.f32.mrf.mxu0
        %2469 = vmatprep.mubr.f32.mxu0 0.0
        %2470 = vmatmul.mubr.f32.gmra.mxu0 %v2183
        %v2471 = vpop.f32.mrf.mxu0
        %v2472 = vadd.f32 %v2118, %v2471
        %v2473 = vpop.f32.mrf.mxu0
        %2474 = vmatprep.mubr.f32.mxu0 0.0
        %2475 = vmatmul.mubr.f32.gmra.mxu0 %v2186
        %v2476 = vpop.f32.mrf.mxu0
        %v2477 = vadd.f32 %v2123, %v2476
        %v2478 = vpop.f32.mrf.mxu0
        %2479 = vmatprep.mubr.f32.mxu0 0.0
        %2480 = vmatmul.mubr.f32.gmra.mxu0 %v2189
        %v2481 = vpop.f32.mrf.mxu0
        %v2482 = vadd.f32 %v2128, %v2481
        %v2483 = vpop.f32.mrf.mxu0
        %2484 = vmatprep.mubr.f32.mxu0 0.0
        %2485 = vmatmul.mubr.f32.gmra.mxu0 %v2192
        %v2486 = vpop.f32.mrf.mxu0
        %v2487 = vadd.f32 %v2133, %v2486
        %v2488 = vpop.f32.mrf.mxu0
        %2489 = vmatprep.mubr.f32.mxu0 0.0
        %2490 = vmatmul.mubr.f32.gmra.mxu0 %v2195
        %v2491 = vpop.f32.mrf.mxu0
        %v2492 = vadd.f32 %v2138, %v2491
        %v2493 = vpop.f32.mrf.mxu0
        %2494 = vmatprep.mubr.f32.mxu0 0.0
        %2495 = vmatmul.mubr.f32.gmra.mxu0 %v2198
        %v2496 = vpop.f32.mrf.mxu0
        %v2497 = vadd.f32 %v2143, %v2496
        %v2498 = vpop.f32.mrf.mxu0
        %2499 = vmatprep.mubr.f32.mxu0 0.0
        %2500 = vmatmul.mubr.f32.gmra.mxu0 %v2201
        %v2501 = vpop.f32.mrf.mxu0
        %v2502 = vadd.f32 %v2148, %v2501
        %v2503 = vpop.f32.mrf.mxu0
        %2504 = vmatprep.mubr.f32.mxu0 0.0
        %2505 = vmatmul.mubr.f32.gmra.mxu0 %v2204
        %v2506 = vpop.f32.mrf.mxu0
        %v2507 = vadd.f32 %v2153, %v2506
        %v2508 = vpop.f32.mrf.mxu0
        %2509 = vmatprep.mubr.f32.mxu0 0.0
        %2510 = vmatmul.mubr.f32.gmra.mxu0 %v2207
        %v2511 = vpop.f32.mrf.mxu0
        %v2512 = vadd.f32 %v2158, %v2511
        %v2513 = vpop.f32.mrf.mxu0
        %2514 = vdwg.mxu0
        %v2515 = vld [vmem:[#allocation13] sm:$0x7]
        %v2517 = vlaneseq
        %v2518 = vshrl.u32 %v2517, 7
        %v2519 = vsub.s32 0, %v2518
        %v2520 = vrot.slane %v2515, %v2519
        %v2521 = vlaneseq
        %v2522 = vshrl.u32 %v2521, 7
        %v2523 = vsub.s32 1, %v2522
        %v2524 = vrot.slane %v2515, %v2523
        %v2525 = vlaneseq
        %v2526 = vshrl.u32 %v2525, 7
        %v2527 = vsub.s32 2, %v2526
        %v2528 = vrot.slane %v2515, %v2527
        %v2532 = vadd.f32 %v2276, %v2520
        %v2533 = vadd.f32 %v2278, %v2524
        %v2534 = vadd.f32 %v2437, %v2528
        %v2535 = vadd.f32 %v2282, %v2520
        %v2536 = vadd.f32 %v2284, %v2524
        %v2537 = vadd.f32 %v2442, %v2528
        %v2538 = vadd.f32 %v2288, %v2520
        %v2539 = vadd.f32 %v2290, %v2524
        %v2540 = vadd.f32 %v2447, %v2528
        %v2541 = vadd.f32 %v2294, %v2520
        %v2542 = vadd.f32 %v2296, %v2524
        %v2543 = vadd.f32 %v2452, %v2528
        %v2544 = vadd.f32 %v2300, %v2520
        %v2545 = vadd.f32 %v2302, %v2524
        %v2546 = vadd.f32 %v2457, %v2528
        %v2547 = vadd.f32 %v2306, %v2520
        %v2548 = vadd.f32 %v2308, %v2524
        %v2549 = vadd.f32 %v2462, %v2528
        %v2550 = vadd.f32 %v2312, %v2520
        %v2551 = vadd.f32 %v2314, %v2524
        %v2552 = vadd.f32 %v2467, %v2528
        %v2553 = vadd.f32 %v2318, %v2520
        %v2554 = vadd.f32 %v2320, %v2524
        %v2555 = vadd.f32 %v2472, %v2528
        %v2556 = vadd.f32 %v2324, %v2520
        %v2557 = vadd.f32 %v2326, %v2524
        %v2558 = vadd.f32 %v2477, %v2528
        %v2559 = vadd.f32 %v2330, %v2520
        %v2560 = vadd.f32 %v2332, %v2524
        %v2561 = vadd.f32 %v2482, %v2528
        %v2562 = vadd.f32 %v2336, %v2520
        %v2563 = vadd.f32 %v2338, %v2524
        %v2564 = vadd.f32 %v2487, %v2528
        %v2565 = vadd.f32 %v2342, %v2520
        %v2566 = vadd.f32 %v2344, %v2524
        %v2567 = vadd.f32 %v2492, %v2528
        %v2568 = vadd.f32 %v2348, %v2520
        %v2569 = vadd.f32 %v2350, %v2524
        %v2570 = vadd.f32 %v2497, %v2528
        %v2571 = vadd.f32 %v2354, %v2520
        %v2572 = vadd.f32 %v2356, %v2524
        %v2573 = vadd.f32 %v2502, %v2528
        %v2574 = vadd.f32 %v2360, %v2520
        %v2575 = vadd.f32 %v2362, %v2524
        %v2576 = vadd.f32 %v2507, %v2528
        %v2577 = vadd.f32 %v2366, %v2520
        %v2578 = vadd.f32 %v2368, %v2524
        %v2579 = vadd.f32 %v2512, %v2528
        %v2580 = vmax.f32 %v2533, 0.0
        %v2581 = vmax.f32 %v2534, 0.0
        %v2582 = vmax.f32 %v2536, 0.0
        %v2583 = vmax.f32 %v2537, 0.0
        %v2584 = vmax.f32 %v2539, 0.0
        %v2585 = vmax.f32 %v2540, 0.0
        %v2586 = vmax.f32 %v2542, 0.0
        %v2587 = vmax.f32 %v2543, 0.0
        %v2588 = vmax.f32 %v2545, 0.0
        %v2589 = vmax.f32 %v2546, 0.0
        %v2590 = vmax.f32 %v2548, 0.0
        %v2591 = vmax.f32 %v2549, 0.0
        %v2592 = vmax.f32 %v2551, 0.0
        %v2593 = vmax.f32 %v2552, 0.0
        %v2594 = vmax.f32 %v2554, 0.0
        %v2595 = vmax.f32 %v2555, 0.0
        %v2596 = vmax.f32 %v2557, 0.0
        %v2597 = vmax.f32 %v2558, 0.0
        %v2598 = vmax.f32 %v2560, 0.0
        %v2599 = vmax.f32 %v2561, 0.0
        %v2600 = vmax.f32 %v2563, 0.0
        %v2601 = vmax.f32 %v2564, 0.0
        %v2602 = vmax.f32 %v2566, 0.0
        %v2603 = vmax.f32 %v2567, 0.0
        %v2604 = vmax.f32 %v2569, 0.0
        %v2605 = vmax.f32 %v2570, 0.0
        %v2606 = vmax.f32 %v2572, 0.0
        %v2607 = vmax.f32 %v2573, 0.0
        %v2608 = vmax.f32 %v2575, 0.0
        %v2609 = vmax.f32 %v2576, 0.0
        %v2610 = vmax.f32 %v2578, 0.0
        %v2611 = vmax.f32 %v2579, 0.0
        %v2612 = vld [vmem:[%s9] sm:$0xff]
        %v2613 = vld [vmem:[%s9 + $0x8] sm:$0xff]
        %v2614 = vld [vmem:[%s9 + $0x10] sm:$0xff]
        %v2615 = vld [vmem:[%s9 + $0x18] sm:$0xff]
        %v2616 = vld [vmem:[%s9 + $0x20] sm:$0xff]
        %v2617 = vld [vmem:[%s9 + $0x28] sm:$0xff]
        %v2618 = vld [vmem:[%s9 + $0x30] sm:$0xff]
        %v2619 = vld [vmem:[%s9 + $0x38] sm:$0xff]
        %v2620 = vld [vmem:[%s9 + $0x40] sm:$0xff]
        %v2621 = vld [vmem:[%s9 + $0x48] sm:$0xff]
        %v2622 = vld [vmem:[%s9 + $0x50] sm:$0xff]
        %v2623 = vld [vmem:[%s9 + $0x58] sm:$0xff]
        %v2624 = vld [vmem:[%s9 + $0x60] sm:$0xff]
        %v2625 = vld [vmem:[%s9 + $0x68] sm:$0xff]
        %v2626 = vld [vmem:[%s9 + $0x70] sm:$0xff]
        %v2627 = vld [vmem:[%s9 + $0x78] sm:$0xff]
        %v2628 = vld [vmem:[%s9 + $0x80] sm:$0xff]
        %v2629 = vld [vmem:[%s9 + $0x88] sm:$0xff]
        %v2630 = vld [vmem:[%s9 + $0x90] sm:$0xff]
        %v2631 = vld [vmem:[%s9 + $0x98] sm:$0xff]
        %v2632 = vld [vmem:[%s9 + $0xa0] sm:$0xff]
        %v2633 = vld [vmem:[%s9 + $0xa8] sm:$0xff]
        %v2634 = vld [vmem:[%s9 + $0xb0] sm:$0xff]
        %v2635 = vld [vmem:[%s9 + $0xb8] sm:$0xff]
        %v2636 = vld [vmem:[%s9 + $0xc0] sm:$0xff]
        %v2637 = vld [vmem:[%s9 + $0xc8] sm:$0xff]
        %v2638 = vld [vmem:[%s9 + $0xd0] sm:$0xff]
        %v2639 = vld [vmem:[%s9 + $0xd8] sm:$0xff]
        %v2640 = vld [vmem:[%s9 + $0xe0] sm:$0xff]
        %v2641 = vld [vmem:[%s9 + $0xe8] sm:$0xff]
        %v2642 = vld [vmem:[%s9 + $0xf0] sm:$0xff]
        %v2643 = vld [vmem:[%s9 + $0xf8] sm:$0xff]
        %2644 = vmatprep.subr.mxu0 0.0
        %2645 = vmatpush1.msra.mxu0 %v2627
        %2646 = vmatprep.subr.mxu0 0.0
        %2647 = vmatpush1.msra.mxu0 %v2626
        %2648 = vmatprep.subr.mxu0 0.0
        %2649 = vmatpush1.msra.mxu0 %v2625
        %2650 = vmatprep.subr.mxu0 0.0
        %2651 = vmatpush1.msra.mxu0 %v2624
        %2652 = vmatprep.subr.mxu0 0.0
        %2653 = vmatpush1.msra.mxu0 %v2623
        %2654 = vmatprep.subr.mxu0 0.0
        %2655 = vmatpush1.msra.mxu0 %v2622
        %2656 = vmatprep.subr.mxu0 0.0
        %2657 = vmatpush1.msra.mxu0 %v2621
        %2658 = vmatprep.subr.mxu0 0.0
        %2659 = vmatpush1.msra.mxu0 %v2620
        %2660 = vmatprep.subr.mxu0 0.0
        %2661 = vmatpush1.msra.mxu0 %v2619
        %2662 = vmatprep.subr.mxu0 0.0
        %2663 = vmatpush1.msra.mxu0 %v2618
        %2664 = vmatprep.subr.mxu0 0.0
        %2665 = vmatpush1.msra.mxu0 %v2617
        %2666 = vmatprep.subr.mxu0 0.0
        %2667 = vmatpush1.msra.mxu0 %v2616
        %2668 = vmatprep.subr.mxu0 0.0
        %2669 = vmatpush1.msra.mxu0 %v2615
        %2670 = vmatprep.subr.mxu0 0.0
        %2671 = vmatpush1.msra.mxu0 %v2614
        %2672 = vmatprep.subr.mxu0 0.0
        %2673 = vmatpush1.msra.mxu0 %v2613
        %2674 = vmatprep.subr.mxu0 0.0
        %2675 = vmatpush1.msra.mxu0 %v2612
        %2676 = vmatprep.subr.mxu0 0.0
        %2677 = vmatpush2.msra.mxu0 %v2643
        %2678 = vmatprep.subr.mxu0 0.0
        %2679 = vmatpush2.msra.mxu0 %v2642
        %2680 = vmatprep.subr.mxu0 0.0
        %2681 = vmatpush2.msra.mxu0 %v2641
        %2682 = vmatprep.subr.mxu0 0.0
        %2683 = vmatpush2.msra.mxu0 %v2640
        %2684 = vmatprep.subr.mxu0 0.0
        %2685 = vmatpush2.msra.mxu0 %v2639
        %2686 = vmatprep.subr.mxu0 0.0
        %2687 = vmatpush2.msra.mxu0 %v2638
        %2688 = vmatprep.subr.mxu0 0.0
        %2689 = vmatpush2.msra.mxu0 %v2637
        %2690 = vmatprep.subr.mxu0 0.0
        %2691 = vmatpush2.msra.mxu0 %v2636
        %2692 = vmatprep.subr.mxu0 0.0
        %2693 = vmatpush2.msra.mxu0 %v2635
        %2694 = vmatprep.subr.mxu0 0.0
        %2695 = vmatpush2.msra.mxu0 %v2634
        %2696 = vmatprep.subr.mxu0 0.0
        %2697 = vmatpush2.msra.mxu0 %v2633
        %2698 = vmatprep.subr.mxu0 0.0
        %2699 = vmatpush2.msra.mxu0 %v2632
        %2700 = vmatprep.subr.mxu0 0.0
        %2701 = vmatpush2.msra.mxu0 %v2631
        %2702 = vmatprep.subr.mxu0 0.0
        %2703 = vmatpush2.msra.mxu0 %v2630
        %2704 = vmatprep.subr.mxu0 0.0
        %2705 = vmatpush2.msra.mxu0 %v2629
        %2706 = vmatprep.subr.mxu0 0.0
        %2707 = vmatpush2.msra.mxu0 %v2628
        %2708 = vmatprep.mubr.f32.mxu0 %v2581
        %2709 = vmatmul.mubr.f32.gmra.mxu0 %v2580
        %v2710 = vpop.f32.mrf.mxu0
        %v2711 = vadd.f32 0.0, %v2710
        %v2712 = vpop.f32.mrf.mxu0
        %2713 = vmatprep.mubr.f32.mxu0 %v2583
        %2714 = vmatmul.mubr.f32.gmra.mxu0 %v2582
        %v2715 = vpop.f32.mrf.mxu0
        %v2716 = vadd.f32 0.0, %v2715
        %v2717 = vpop.f32.mrf.mxu0
        %2718 = vmatprep.mubr.f32.mxu0 %v2585
        %2719 = vmatmul.mubr.f32.gmra.mxu0 %v2584
        %v2720 = vpop.f32.mrf.mxu0
        %v2721 = vadd.f32 0.0, %v2720
        %v2722 = vpop.f32.mrf.mxu0
        %2723 = vmatprep.mubr.f32.mxu0 %v2587
        %2724 = vmatmul.mubr.f32.gmra.mxu0 %v2586
        %v2725 = vpop.f32.mrf.mxu0
        %v2726 = vadd.f32 0.0, %v2725
        %v2727 = vpop.f32.mrf.mxu0
        %2728 = vmatprep.mubr.f32.mxu0 %v2589
        %2729 = vmatmul.mubr.f32.gmra.mxu0 %v2588
        %v2730 = vpop.f32.mrf.mxu0
        %v2731 = vadd.f32 0.0, %v2730
        %v2732 = vpop.f32.mrf.mxu0
        %2733 = vmatprep.mubr.f32.mxu0 %v2591
        %2734 = vmatmul.mubr.f32.gmra.mxu0 %v2590
        %v2735 = vpop.f32.mrf.mxu0
        %v2736 = vadd.f32 0.0, %v2735
        %v2737 = vpop.f32.mrf.mxu0
        %2738 = vmatprep.mubr.f32.mxu0 %v2593
        %2739 = vmatmul.mubr.f32.gmra.mxu0 %v2592
        %v2740 = vpop.f32.mrf.mxu0
        %v2741 = vadd.f32 0.0, %v2740
        %v2742 = vpop.f32.mrf.mxu0
        %2743 = vmatprep.mubr.f32.mxu0 %v2595
        %2744 = vmatmul.mubr.f32.gmra.mxu0 %v2594
        %v2745 = vpop.f32.mrf.mxu0
        %v2746 = vadd.f32 0.0, %v2745
        %v2747 = vpop.f32.mrf.mxu0
        %2748 = vmatprep.mubr.f32.mxu0 %v2597
        %2749 = vmatmul.mubr.f32.gmra.mxu0 %v2596
        %v2750 = vpop.f32.mrf.mxu0
        %v2751 = vadd.f32 0.0, %v2750
        %v2752 = vpop.f32.mrf.mxu0
        %2753 = vmatprep.mubr.f32.mxu0 %v2599
        %2754 = vmatmul.mubr.f32.gmra.mxu0 %v2598
        %v2755 = vpop.f32.mrf.mxu0
        %v2756 = vadd.f32 0.0, %v2755
        %v2757 = vpop.f32.mrf.mxu0
        %2758 = vmatprep.mubr.f32.mxu0 %v2601
        %2759 = vmatmul.mubr.f32.gmra.mxu0 %v2600
        %v2760 = vpop.f32.mrf.mxu0
        %v2761 = vadd.f32 0.0, %v2760
        %v2762 = vpop.f32.mrf.mxu0
        %2763 = vmatprep.mubr.f32.mxu0 %v2603
        %2764 = vmatmul.mubr.f32.gmra.mxu0 %v2602
        %v2765 = vpop.f32.mrf.mxu0
        %v2766 = vadd.f32 0.0, %v2765
        %v2767 = vpop.f32.mrf.mxu0
        %2768 = vmatprep.mubr.f32.mxu0 %v2605
        %2769 = vmatmul.mubr.f32.gmra.mxu0 %v2604
        %v2770 = vpop.f32.mrf.mxu0
        %v2771 = vadd.f32 0.0, %v2770
        %v2772 = vpop.f32.mrf.mxu0
        %2773 = vmatprep.mubr.f32.mxu0 %v2607
        %2774 = vmatmul.mubr.f32.gmra.mxu0 %v2606
        %v2775 = vpop.f32.mrf.mxu0
        %v2776 = vadd.f32 0.0, %v2775
        %v2777 = vpop.f32.mrf.mxu0
        %2778 = vmatprep.mubr.f32.mxu0 %v2609
        %2779 = vmatmul.mubr.f32.gmra.mxu0 %v2608
        %v2780 = vpop.f32.mrf.mxu0
        %v2781 = vadd.f32 0.0, %v2780
        %v2782 = vpop.f32.mrf.mxu0
        %2783 = vmatprep.mubr.f32.mxu0 %v2611
        %2784 = vmatmul.mubr.f32.gmra.mxu0 %v2610
        %v2785 = vpop.f32.mrf.mxu0
        %v2786 = vadd.f32 0.0, %v2785
        %v2787 = vpop.f32.mrf.mxu0
        %2788 = vdwg.mxu0
        %v2789 = vld [vmem:[#allocation14] sm:$0x7]
        %v2790 = vadd.f32 %v2532, %v2711
        %v2791 = vadd.f32 %v2535, %v2716
        %v2792 = vadd.f32 %v2538, %v2721
        %v2793 = vadd.f32 %v2541, %v2726
        %v2794 = vadd.f32 %v2544, %v2731
        %v2795 = vadd.f32 %v2547, %v2736
        %v2796 = vadd.f32 %v2550, %v2741
        %v2797 = vadd.f32 %v2553, %v2746
        %v2798 = vadd.f32 %v2556, %v2751
        %v2799 = vadd.f32 %v2559, %v2756
        %v2800 = vadd.f32 %v2562, %v2761
        %v2801 = vadd.f32 %v2565, %v2766
        %v2802 = vadd.f32 %v2568, %v2771
        %v2803 = vadd.f32 %v2571, %v2776
        %v2804 = vadd.f32 %v2574, %v2781
        %v2805 = vadd.f32 %v2577, %v2786
        %v2806 = vlaneseq
        %v2807 = vshrl.u32 %v2806, 7
        %v2808 = vsub.s32 0, %v2807
        %v2809 = vrot.slane %v2789, %v2808
        %v2810 = vadd.f32 %v2790, %v2809
        %v2811 = vadd.f32 %v2791, %v2809
        %v2812 = vadd.f32 %v2792, %v2809
        %v2813 = vadd.f32 %v2793, %v2809
        %v2814 = vadd.f32 %v2794, %v2809
        %v2815 = vadd.f32 %v2795, %v2809
        %v2816 = vadd.f32 %v2796, %v2809
        %v2817 = vadd.f32 %v2797, %v2809
        %v2818 = vadd.f32 %v2798, %v2809
        %v2819 = vadd.f32 %v2799, %v2809
        %v2820 = vadd.f32 %v2800, %v2809
        %v2821 = vadd.f32 %v2801, %v2809
        %v2822 = vadd.f32 %v2802, %v2809
        %v2823 = vadd.f32 %v2803, %v2809
        %v2824 = vadd.f32 %v2804, %v2809
        %v2825 = vadd.f32 %v2805, %v2809
        %2826 = vadd.xlane.f32.xlu0 %v2810
        %v2827 = vpop.xlane.xlu0 %2826
        %2828 = vadd.xlane.f32.xlu0 %v2811
        %v2829 = vpop.xlane.xlu0 %2828
        %2830 = vadd.xlane.f32.xlu0 %v2812
        %v2831 = vpop.xlane.xlu0 %2830
        %2832 = vadd.xlane.f32.xlu0 %v2813
        %v2833 = vpop.xlane.xlu0 %2832
        %2834 = vadd.xlane.f32.xlu0 %v2814
        %v2835 = vpop.xlane.xlu0 %2834
        %2836 = vadd.xlane.f32.xlu0 %v2815
        %v2837 = vpop.xlane.xlu0 %2836
        %2838 = vadd.xlane.f32.xlu0 %v2816
        %v2839 = vpop.xlane.xlu0 %2838
        %2840 = vadd.xlane.f32.xlu0 %v2817
        %v2841 = vpop.xlane.xlu0 %2840
        %2842 = vadd.xlane.f32.xlu0 %v2818
        %v2843 = vpop.xlane.xlu0 %2842
        %2844 = vadd.xlane.f32.xlu0 %v2819
        %v2845 = vpop.xlane.xlu0 %2844
        %2846 = vadd.xlane.f32.xlu0 %v2820
        %v2847 = vpop.xlane.xlu0 %2846
        %2848 = vadd.xlane.f32.xlu0 %v2821
        %v2849 = vpop.xlane.xlu0 %2848
        %2850 = vadd.xlane.f32.xlu0 %v2822
        %v2851 = vpop.xlane.xlu0 %2850
        %2852 = vadd.xlane.f32.xlu0 %v2823
        %v2853 = vpop.xlane.xlu0 %2852
        %2854 = vadd.xlane.f32.xlu0 %v2824
        %v2855 = vpop.xlane.xlu0 %2854
        %2856 = vadd.xlane.f32.xlu0 %v2825
        %v2857 = vpop.xlane.xlu0 %2856
        %v2858 = vmul.f32 %v2827, 0.0078125
        %v2859 = vmul.f32 %v2829, 0.0078125
        %v2860 = vmul.f32 %v2831, 0.0078125
        %v2861 = vmul.f32 %v2833, 0.0078125
        %v2862 = vmul.f32 %v2835, 0.0078125
        %v2863 = vmul.f32 %v2837, 0.0078125
        %v2864 = vmul.f32 %v2839, 0.0078125
        %v2865 = vmul.f32 %v2841, 0.0078125
        %v2866 = vmul.f32 %v2843, 0.0078125
        %v2867 = vmul.f32 %v2845, 0.0078125
        %v2868 = vmul.f32 %v2847, 0.0078125
        %v2869 = vmul.f32 %v2849, 0.0078125
        %v2870 = vmul.f32 %v2851, 0.0078125
        %v2871 = vmul.f32 %v2853, 0.0078125
        %v2872 = vmul.f32 %v2855, 0.0078125
        %v2873 = vmul.f32 %v2857, 0.0078125
        %v2874 = vsub.f32 %v2810, %v2858
        %v2875 = vsub.f32 %v2811, %v2859
        %v2876 = vsub.f32 %v2812, %v2860
        %v2877 = vsub.f32 %v2813, %v2861
        %v2878 = vsub.f32 %v2814, %v2862
        %v2879 = vsub.f32 %v2815, %v2863
        %v2880 = vsub.f32 %v2816, %v2864
        %v2881 = vsub.f32 %v2817, %v2865
        %v2882 = vsub.f32 %v2818, %v2866
        %v2883 = vsub.f32 %v2819, %v2867
        %v2884 = vsub.f32 %v2820, %v2868
        %v2885 = vsub.f32 %v2821, %v2869
        %v2886 = vsub.f32 %v2822, %v2870
        %v2887 = vsub.f32 %v2823, %v2871
        %v2888 = vsub.f32 %v2824, %v2872
        %v2889 = vsub.f32 %v2825, %v2873
        %v2890 = vmul.f32 %v2874, %v2874
        %v2891 = vmul.f32 %v2875, %v2875
        %v2892 = vmul.f32 %v2876, %v2876
        %v2893 = vmul.f32 %v2877, %v2877
        %v2894 = vmul.f32 %v2878, %v2878
        %v2895 = vmul.f32 %v2879, %v2879
        %v2896 = vmul.f32 %v2880, %v2880
        %v2897 = vmul.f32 %v2881, %v2881
        %v2898 = vmul.f32 %v2882, %v2882
        %v2899 = vmul.f32 %v2883, %v2883
        %v2900 = vmul.f32 %v2884, %v2884
        %v2901 = vmul.f32 %v2885, %v2885
        %v2902 = vmul.f32 %v2886, %v2886
        %v2903 = vmul.f32 %v2887, %v2887
        %v2904 = vmul.f32 %v2888, %v2888
        %v2905 = vmul.f32 %v2889, %v2889
        %2906 = vadd.xlane.f32.xlu0 %v2890
        %v2907 = vpop.xlane.xlu0 %2906
        %2908 = vadd.xlane.f32.xlu0 %v2891
        %v2909 = vpop.xlane.xlu0 %2908
        %2910 = vadd.xlane.f32.xlu0 %v2892
        %v2911 = vpop.xlane.xlu0 %2910
        %2912 = vadd.xlane.f32.xlu0 %v2893
        %v2913 = vpop.xlane.xlu0 %2912
        %2914 = vadd.xlane.f32.xlu0 %v2894
        %v2915 = vpop.xlane.xlu0 %2914
        %2916 = vadd.xlane.f32.xlu0 %v2895
        %v2917 = vpop.xlane.xlu0 %2916
        %2918 = vadd.xlane.f32.xlu0 %v2896
        %v2919 = vpop.xlane.xlu0 %2918
        %2920 = vadd.xlane.f32.xlu0 %v2897
        %v2921 = vpop.xlane.xlu0 %2920
        %2922 = vadd.xlane.f32.xlu0 %v2898
        %v2923 = vpop.xlane.xlu0 %2922
        %2924 = vadd.xlane.f32.xlu0 %v2899
        %v2925 = vpop.xlane.xlu0 %2924
        %2926 = vadd.xlane.f32.xlu0 %v2900
        %v2927 = vpop.xlane.xlu0 %2926
        %2928 = vadd.xlane.f32.xlu0 %v2901
        %v2929 = vpop.xlane.xlu0 %2928
        %2930 = vadd.xlane.f32.xlu0 %v2902
        %v2931 = vpop.xlane.xlu0 %2930
        %2932 = vadd.xlane.f32.xlu0 %v2903
        %v2933 = vpop.xlane.xlu0 %2932
        %2934 = vadd.xlane.f32.xlu0 %v2904
        %v2935 = vpop.xlane.xlu0 %2934
        %2936 = vadd.xlane.f32.xlu0 %v2905
        %v2937 = vpop.xlane.xlu0 %2936
        %v2938 = vmul.f32 %v2907, 0.0078125
        %v2939 = vmul.f32 %v2909, 0.0078125
        %v2940 = vmul.f32 %v2911, 0.0078125
        %v2941 = vmul.f32 %v2913, 0.0078125
        %v2942 = vmul.f32 %v2915, 0.0078125
        %v2943 = vmul.f32 %v2917, 0.0078125
        %v2944 = vmul.f32 %v2919, 0.0078125
        %v2945 = vmul.f32 %v2921, 0.0078125
        %v2946 = vmul.f32 %v2923, 0.0078125
        %v2947 = vmul.f32 %v2925, 0.0078125
        %v2948 = vmul.f32 %v2927, 0.0078125
        %v2949 = vmul.f32 %v2929, 0.0078125
        %v2950 = vmul.f32 %v2931, 0.0078125
        %v2951 = vmul.f32 %v2933, 0.0078125
        %v2952 = vmul.f32 %v2935, 0.0078125
        %v2953 = vmul.f32 %v2937, 0.0078125
        %v2954 = vadd.f32 %v2938, 1e-05
        %v2955 = vadd.f32 %v2939, 1e-05
        %v2956 = vadd.f32 %v2940, 1e-05
        %v2957 = vadd.f32 %v2941, 1e-05
        %v2958 = vadd.f32 %v2942, 1e-05
        %v2959 = vadd.f32 %v2943, 1e-05
        %v2960 = vadd.f32 %v2944, 1e-05
        %v2961 = vadd.f32 %v2945, 1e-05
        %v2962 = vadd.f32 %v2946, 1e-05
        %v2963 = vadd.f32 %v2947, 1e-05
        %v2964 = vadd.f32 %v2948, 1e-05
        %v2965 = vadd.f32 %v2949, 1e-05
        %v2966 = vadd.f32 %v2950, 1e-05
        %v2967 = vadd.f32 %v2951, 1e-05
        %v2968 = vadd.f32 %v2952, 1e-05
        %v2969 = vadd.f32 %v2953, 1e-05
        %v2970 = vrsqrt.pop %v2954
        %v2971 = vrsqrt.pop %v2955
        %v2972 = vrsqrt.pop %v2956
        %v2973 = vrsqrt.pop %v2957
        %v2974 = vrsqrt.pop %v2958
        %v2975 = vrsqrt.pop %v2959
        %v2976 = vrsqrt.pop %v2960
        %v2977 = vrsqrt.pop %v2961
        %v2978 = vrsqrt.pop %v2962
        %v2979 = vrsqrt.pop %v2963
        %v2980 = vrsqrt.pop %v2964
        %v2981 = vrsqrt.pop %v2965
        %v2982 = vrsqrt.pop %v2966
        %v2983 = vrsqrt.pop %v2967
        %v2984 = vrsqrt.pop %v2968
        %v2985 = vrsqrt.pop %v2969
        %v2986 = vmul.f32 %v2874, %v2970
        %v2987 = vmul.f32 %v2875, %v2971
        %v2988 = vmul.f32 %v2876, %v2972
        %v2989 = vmul.f32 %v2877, %v2973
        %v2990 = vmul.f32 %v2878, %v2974
        %v2991 = vmul.f32 %v2879, %v2975
        %v2992 = vmul.f32 %v2880, %v2976
        %v2993 = vmul.f32 %v2881, %v2977
        %v2994 = vmul.f32 %v2882, %v2978
        %v2995 = vmul.f32 %v2883, %v2979
        %v2996 = vmul.f32 %v2884, %v2980
        %v2997 = vmul.f32 %v2885, %v2981
        %v2998 = vmul.f32 %v2886, %v2982
        %v2999 = vmul.f32 %v2887, %v2983
        %v3000 = vmul.f32 %v2888, %v2984
        %v3001 = vmul.f32 %v2889, %v2985
        %v3002 = vlaneseq
        %v3003 = vshrl.u32 %v3002, 7
        %v3004 = vsub.s32 1, %v3003
        %v3005 = vrot.slane %v2789, %v3004
        %v3006 = vmul.f32 %v2986, %v3005
        %v3007 = vmul.f32 %v2987, %v3005
        %v3008 = vmul.f32 %v2988, %v3005
        %v3009 = vmul.f32 %v2989, %v3005
        %v3010 = vmul.f32 %v2990, %v3005
        %v3011 = vmul.f32 %v2991, %v3005
        %v3012 = vmul.f32 %v2992, %v3005
        %v3013 = vmul.f32 %v2993, %v3005
        %v3014 = vmul.f32 %v2994, %v3005
        %v3015 = vmul.f32 %v2995, %v3005
        %v3016 = vmul.f32 %v2996, %v3005
        %v3017 = vmul.f32 %v2997, %v3005
        %v3018 = vmul.f32 %v2998, %v3005
        %v3019 = vmul.f32 %v2999, %v3005
        %v3020 = vmul.f32 %v3000, %v3005
        %v3021 = vmul.f32 %v3001, %v3005
        %v3022 = vlaneseq
        %v3023 = vshrl.u32 %v3022, 7
        %v3024 = vsub.s32 2, %v3023
        %v3025 = vrot.slane %v2789, %v3024
        %v3026 = vadd.f32 %v3006, %v3025
        %v3027 = vadd.f32 %v3007, %v3025
        %v3028 = vadd.f32 %v3008, %v3025
        %v3029 = vadd.f32 %v3009, %v3025
        %v3030 = vadd.f32 %v3010, %v3025
        %v3031 = vadd.f32 %v3011, %v3025
        %v3032 = vadd.f32 %v3012, %v3025
        %v3033 = vadd.f32 %v3013, %v3025
        %v3034 = vadd.f32 %v3014, %v3025
        %v3035 = vadd.f32 %v3015, %v3025
        %v3036 = vadd.f32 %v3016, %v3025
        %v3037 = vadd.f32 %v3017, %v3025
        %v3038 = vadd.f32 %v3018, %v3025
        %v3039 = vadd.f32 %v3019, %v3025
        %v3040 = vadd.f32 %v3020, %v3025
        %v3041 = vadd.f32 %v3021, %v3025
        %3042 = vst [vmem:[%s487] sm:$0xff] %v3026
        %3043 = vst [vmem:[%s487 + $0x8] sm:$0xff] %v3027
        %3044 = vst [vmem:[%s487 + $0x10] sm:$0xff] %v3028
        %3045 = vst [vmem:[%s487 + $0x18] sm:$0xff] %v3029
        %3046 = vst [vmem:[%s487 + $0x20] sm:$0xff] %v3030
        %3047 = vst [vmem:[%s487 + $0x28] sm:$0xff] %v3031
        %3048 = vst [vmem:[%s487 + $0x30] sm:$0xff] %v3032
        %3049 = vst [vmem:[%s487 + $0x38] sm:$0xff] %v3033
        %3050 = vst [vmem:[%s487 + $0x40] sm:$0xff] %v3034
        %3051 = vst [vmem:[%s487 + $0x48] sm:$0xff] %v3035
        %3052 = vst [vmem:[%s487 + $0x50] sm:$0xff] %v3036
        %3053 = vst [vmem:[%s487 + $0x58] sm:$0xff] %v3037
        %3054 = vst [vmem:[%s487 + $0x60] sm:$0xff] %v3038
        %3055 = vst [vmem:[%s487 + $0x68] sm:$0xff] %v3039
        %3056 = vst [vmem:[%s487 + $0x70] sm:$0xff] %v3040
        %3057 = vst [vmem:[%s487 + $0x78] sm:$0xff] %v3041
        %s3058 = sand.u32 %s274, 1
        %s3059 = scalar_lea.sflag [#allocation4], %s3058
        %s3060 = sand.u32 %s274, 1
        %s3061 = smul.addr %s3060, 128
        %s3062 = scalar_lea.vmem [#allocation16], %s3061
        // Predicated region
        $region97: #{tpu_custom_call.1} parent=63 // pred_check
          %p3063 = pneg %p284
        $region98: #{tpu_custom_call.1} parent=63 // pred_check_branch
          %3065 = sbr.rel (%p3063) target = $region100
        $region99: #{tpu_custom_call.1} parent=63 // pred_region
          %s3066 = smul.u32 16, %s30
          %s3068 = ssub.s32 2048, 2048
          %3069 = vsyncadd %s3059, %s3068
          %s3070 = smul.addr %s3066, 128
          %s3071 = scalar_lea.hbm %s11, %s3070
          %s3072 = sshll.u32 %s3062, 4
          %s3073 = int_to_ptr.vmem [resolvable:$true] %s3072
          %3078 = dma.vmem_to_hbm [thread:$0]  %s3073, 2048, %s3071, %s3059, 128, 128, 8
        $region100: #{tpu_custom_call.1} parent=63 // pred_fallthru
          _
      $region64: #{tpu_custom_call.1} parent=5 // pred_fallthru
        _
      %p3079 = scmp.le.s32.totalorder 2, %s25
      // Predicated region
      $region101: #{tpu_custom_call.1} parent=5 // pred_check
        %p3080 = pneg %p3079
      $region102: #{tpu_custom_call.1} parent=5 // pred_check_branch
        %3082 = sbr.rel (%p3080) target = $region104
      $region103: #{tpu_custom_call.1} parent=5 // pred_region
        %s3083 = ssub.s32 %s25, 2
        // Predicated region
        $region105: #{tpu_custom_call.1} parent=103 // pred_check
          %p3084 = pneg %p290
        $region106: #{tpu_custom_call.1} parent=103 // pred_check_branch
          %3086 = sbr.rel (%p3084) target = $region108
        $region107: #{tpu_custom_call.1} parent=103 // pred_region
          %s3087 = sand.u32 %s275, 1
          %s3088 = scalar_lea.sflag [#allocation4], %s3087
          %s3089 = sand.u32 %s275, 1
          %s3090 = smul.addr %s3089, 128
          %s3091 = scalar_lea.vmem [#allocation16], %s3090
          %3092 = dma.done %s3088, 2048
        $region108: #{tpu_custom_call.1} parent=103 // pred_fallthru
          _
      $region104: #{tpu_custom_call.1} parent=5 // pred_fallthru
        _
    $region6: #{tpu_custom_call.1} parent=1 // loop_footer
      %s29 = sadd.s32 1, %s25
    $region7: #{tpu_custom_call.1} parent=1 // loop_footer_branch
      %24 = sbr.rel target = $region3
    $region8: #{tpu_custom_call.1} parent=1 // loop_exit
      _
    %3093 = vsyncpa [#allocation3], 1
    %s3094 = scalar_lea.sflag [#allocation3], 1
    %3095 = vsyncpa %s3094, 1
    %3096 = vsyncpa [#allocation6], 1
    %3097 = vsyncpa [#allocation9], 1
    %3098 = vsyncpa [#allocation12], 1
    %3099 = vsyncpa [#allocation15], 1
    %3100 = vsyncpa [#allocation4], 1
    %s3101 = scalar_lea.sflag [#allocation4], 1
    %3102 = vsyncpa %s3101, 1

</llo_original>
